<compile_context>
chip_gen: v5e
topology: v5e:2x2
jax: 0.10.0
libtpu: 0.0.40
codegen_flags: <defaults>
</compile_context>

<pallas_src>
import functools

import jax
import jax.numpy as jnp
from jax.experimental import pallas as pl
from jax.experimental.pallas import tpu as pltpu

LEAKY_SLOPE = 0.01
BN_EPS = 1e-5
PAD_W = 8  # left halo width in the VMEM scratch (sublane-aligned)


def _leaky(x):
    return jnp.where(x > 0, x, LEAKY_SLOPE * x)


def _erf(x):
    # Abramowitz & Stegun 7.1.26, |err| < 1.5e-7; exp/mul/add/div only (EUP + VALU).
    a1, a2, a3, a4, a5 = 0.254829592, -0.284496736, 1.421413741, -1.453152027, 1.061405429
    p = 0.3275911
    s = jnp.where(x >= 0, 1.0, -1.0).astype(jnp.float32)
    ax = jnp.abs(x)
    t = 1.0 / (1.0 + p * ax)
    poly = ((((a5 * t + a4) * t + a3) * t + a2) * t + a1) * t
    return s * (1.0 - poly * jnp.exp(-ax * ax))


def _gelu_exact(x):
    return 0.5 * x * (1.0 + _erf(x * 0.7071067811865476))


def _sigmoid(x):
    return 1.0 / (1.0 + jnp.exp(-x))


# ---------------- fused kernel: expand + dwconv + SE + project + residual ----
def mbconv_fused_kernel(x_ref, we_ref, be_ref, wd_ref, bd_ref,
                        w1_ref, w2_ref, wp_ref, bp_ref,
                        o_ref, hpad_ref, *, H, W):
    hid = we_ref.shape[1]

    # ---- 1x1 expand (bn_pre & bn1 folded into We / be) + leaky ----
    xf = x_ref[0]                                               # (H*W, Cin)
    h = jnp.dot(xf, we_ref[...], preferred_element_type=jnp.float32) + be_ref[...]
    h = _leaky(h)                                               # (H*W, hid)

    # ---- depthwise 3x3, pad=1, via zero-filled VMEM halo scratch ----
    # scratch layout: (H+2, W+2*PAD_W, hid); interior at rows 1..H,
    # cols PAD_W..PAD_W+W-1 (sublane-aligned store since PAD_W, W are x8).
    hpad_ref[...] = jnp.zeros_like(hpad_ref)
    hpad_ref[1:H + 1, PAD_W:PAD_W + W, :] = h.reshape(H, W, hid)
    hp = hpad_ref[...]

    # 9 taps (bn2 scale folded into wd), pairwise-tree accumulation.
    wd = wd_ref[...]                                            # (9, hid), loaded once
    taps = [hp[di:di + H, PAD_W - 1 + dj:PAD_W - 1 + dj + W, :] * wd[3 * di + dj]
            for di in range(3) for dj in range(3)]
    while len(taps) > 1:
        nxt = [taps[i] + taps[i + 1] for i in range(0, len(taps) - 1, 2)]
        if len(taps) % 2:
            nxt.append(taps[-1])
        taps = nxt
    acc = _leaky(taps[0] + bd_ref[...])                         # (H, W, hid)
    af = acc.reshape(H * W, hid)

    # ---- SE: global average pool -> FC -> GELU -> FC -> sigmoid ----
    pooled = jnp.sum(af, axis=0, keepdims=True) * (1.0 / (H * W))   # (1, hid)
    z = jnp.dot(pooled, w1_ref[...], preferred_element_type=jnp.float32)
    z = _gelu_exact(z)
    z = jnp.dot(z, w2_ref[...], preferred_element_type=jnp.float32)
    gate = _sigmoid(z)                                          # (1, hid)

    # ---- apply gate: lane-aligned broadcast of (1,hid) over (H*W,hid) ----
    af_g = af * gate

    # ---- 1x1 project (bn3 scale folded into Wp) + bias + residual ----
    y = jnp.dot(af_g, wp_ref[...], preferred_element_type=jnp.float32) + bp_ref[...]
    o_ref[0] = y + xf                                           # (H*W, Cout)


# ------------------------------- wrapper -------------------------------------
def _bn_affine(g, b, m, v):
    s = g / jnp.sqrt(v + BN_EPS)
    return s, b - m * s          # (C,), (C,)


def mbconv_forward(x_nchw, params):
    x = jnp.transpose(x_nchw, (0, 2, 3, 1)).astype(jnp.float32)   # NCHW -> NHWC
    B, H, W, Cin = x.shape
    hidden = params["w_exp"].shape[1]
    se_dim = params["w_se1"].shape[1]
    Cout = params["w_proj"].shape[1]

    pn_s, pn_b = _bn_affine(*params["bn_pre"])
    bn1_s, bn1_b = _bn_affine(*params["bn1"])
    bn2_s, bn2_b = _bn_affine(*params["bn2"])
    bn3_s, bn3_b = _bn_affine(*params["bn3"])

    # Fold all BN affines into the conv weights/biases (host-side, tiny).
    w_exp_eff = (pn_s[:, None] * params["w_exp"]) * bn1_s[None, :]       # (Cin, hid)
    b_exp_eff = (pn_b[None, :] @ params["w_exp"]) * bn1_s[None, :] + bn1_b[None, :]
    w_dw_eff = params["w_dw"] * bn2_s[None, :]                           # (9, hid)
    b_dw_eff = bn2_b.reshape(1, hidden)
    w_proj_eff = params["w_proj"] * bn3_s[None, :]                       # (hid, Cout)
    b_proj_eff = bn3_b.reshape(1, Cout)

    HW = H * W
    x_flat = x.reshape(B, HW, Cin)           # lane dim = C, layout plumbing only

    out_flat = pl.pallas_call(
        functools.partial(mbconv_fused_kernel, H=H, W=W),
        out_shape=jax.ShapeDtypeStruct((B, HW, Cout), jnp.float32),
        grid=(B,),
        in_specs=[
            pl.BlockSpec((1, HW, Cin), lambda b: (b, 0, 0)),
            pl.BlockSpec((Cin, hidden), lambda b: (0, 0)),
            pl.BlockSpec((1, hidden), lambda b: (0, 0)),
            pl.BlockSpec((9, hidden), lambda b: (0, 0)),
            pl.BlockSpec((1, hidden), lambda b: (0, 0)),
            pl.BlockSpec((hidden, se_dim), lambda b: (0, 0)),
            pl.BlockSpec((se_dim, hidden), lambda b: (0, 0)),
            pl.BlockSpec((hidden, Cout), lambda b: (0, 0)),
            pl.BlockSpec((1, Cout), lambda b: (0, 0)),
        ],
        out_specs=pl.BlockSpec((1, HW, Cout), lambda b: (b, 0, 0)),
        scratch_shapes=[pltpu.VMEM((H + 2, W + 2 * PAD_W, hidden), jnp.float32)],
        compiler_params=pltpu.CompilerParams(dimension_semantics=("parallel",)),
    )(x_flat, w_exp_eff, b_exp_eff, w_dw_eff, b_dw_eff,
      params["w_se1"], params["w_se2"], w_proj_eff, b_proj_eff)

    out_nhwc = out_flat.reshape(B, H, W, Cout)
    return jnp.transpose(out_nhwc, (0, 3, 1, 2))                  # NHWC -> NCHW


# ------------------------- pure-JAX reference --------------------------------
def mbconv_ref(x_nchw, params):
    x = jnp.transpose(x_nchw, (0, 2, 3, 1)).astype(jnp.float32)
    B, H, W, Cin = x.shape

    def aff(p):
        g, b, m, v = p
        s = g / jnp.sqrt(v + BN_EPS)
        return s, b - m * s

    pn_s, pn_b = aff(params["bn_pre"])
    bn1_s, bn1_b = aff(params["bn1"])
    bn2_s, bn2_b = aff(params["bn2"])
    bn3_s, bn3_b = aff(params["bn3"])

    xn = x * pn_s + pn_b
    h = jnp.einsum("bhwc,cd->bhwd", xn, params["w_exp"])
    h = h * bn1_s + bn1_b
    h = jnp.where(h > 0, h, LEAKY_SLOPE * h)
    hp = jnp.pad(h, ((0, 0), (1, 1), (1, 1), (0, 0)))
    acc = jnp.zeros_like(h)
    for k in range(9):
        di, dj = k // 3, k % 3
        acc = acc + hp[:, di:di + H, dj:dj + W, :] * params["w_dw"][k]
    acc = acc * bn2_s + bn2_b
    acc = jnp.where(acc > 0, acc, LEAKY_SLOPE * acc)
    pooled = jnp.mean(acc, axis=(1, 2))                           # (B, hid)
    z = pooled @ params["w_se1"]
    z = jax.nn.gelu(z, approximate=False)
    z = z @ params["w_se2"]
    gate = jax.nn.sigmoid(z)
    hs = acc * gate[:, None, None, :]
    y = jnp.einsum("bhwc,co->bhwo", hs, params["w_proj"])
    y = y * bn3_s + bn3_b
    return jnp.transpose(y + x, (0, 3, 1, 2))


# -------------------------- deterministic init --------------------------------
def init_params(key, inp, oup, expansion=4):
    hidden = int(inp * expansion)
    se_dim = max(1, int(inp * 0.25))
    ks = jax.random.split(key, 9)

    def bn(k, c):
        k1, k2, k3, k4 = jax.random.split(k, 4)
        gamma = 1.0 + 0.1 * jax.random.normal(k1, (c,), jnp.float32)
        beta = 0.1 * jax.random.normal(k2, (c,), jnp.float32)
        mean = 0.1 * jax.random.normal(k3, (c,), jnp.float32)
        var = 0.5 + 0.5 * jnp.abs(jax.random.normal(k4, (c,), jnp.float32))
        return (gamma, beta, mean, var)

    return {
        "bn_pre": bn(ks[0], inp),
        "w_exp": 0.3 * jax.random.normal(ks[1], (inp, hidden), jnp.float32),
        "bn1": bn(ks[2], hidden),
        "w_dw": 0.3 * jax.random.normal(ks[3], (9, hidden), jnp.float32),
        "bn2": bn(ks[4], hidden),
        "w_se1": 0.3 * jax.random.normal(ks[5], (hidden, se_dim), jnp.float32),
        "w_se2": 0.3 * jax.random.normal(ks[6], (se_dim, hidden), jnp.float32),
        "w_proj": 0.3 * jax.random.normal(ks[7], (hidden, oup), jnp.float32),
        "bn3": bn(ks[8], oup),
    }


if __name__ == "__main__":
    key = jax.random.PRNGKey(0)
    kx, kp = jax.random.split(key)
    B, C, H, W = 2, 4, 16, 16                                     # inp == oup (residual)
    x = jax.random.normal(kx, (B, C, H, W), jnp.float32)
    params = init_params(kp, inp=C, oup=C, expansion=4)

    out = jax.jit(mbconv_forward)(x, params)
    out = jax.block_until_ready(out)
    assert out.shape == (B, C, H, W)

    ref = mbconv_ref(x, params)
    max_err = float(jnp.max(jnp.abs(out - ref)))
    assert max_err < 1e-3, f"mismatch vs reference: {max_err}"

    print("KERNEL_OK")
</pallas_src>

<mosaic_0001>
module attributes {stable_mosaic.version = 11 : i64} {
  func.func @mbconv_fused_kernel(%arg0: i32, %arg1: memref<1x256x4xf32, #tpu.memory_space<vmem>>, %arg2: memref<4x16xf32, #tpu.memory_space<vmem>>, %arg3: memref<1x16xf32, #tpu.memory_space<vmem>>, %arg4: memref<9x16xf32, #tpu.memory_space<vmem>>, %arg5: memref<1x16xf32, #tpu.memory_space<vmem>>, %arg6: memref<16x1xf32, #tpu.memory_space<vmem>>, %arg7: memref<1x16xf32, #tpu.memory_space<vmem>>, %arg8: memref<16x4xf32, #tpu.memory_space<vmem>>, %arg9: memref<1x4xf32, #tpu.memory_space<vmem>>, %arg10: memref<1x256x4xf32, #tpu.memory_space<vmem>>, %arg11: memref<18x32x16xf32, #tpu.memory_space<vmem>>) attributes {dimension_semantics = [#tpu.dimension_semantics<parallel>], iteration_bounds = array<i64: 2>, scalar_prefetch = 0 : i64, scratch_operands = 1 : i64, tpu.core_type = #tpu.core_type<tc>, window_params = [{transform_indices = @transform_0, window_bounds = array<i64: 1, 256, 4>}, {pipeline_mode = #tpu.pipeline_mode<synchronous>, transform_indices = @transform_1, window_bounds = array<i64: 4, 16>}, {pipeline_mode = #tpu.pipeline_mode<synchronous>, transform_indices = @transform_2, window_bounds = array<i64: 1, 16>}, {pipeline_mode = #tpu.pipeline_mode<synchronous>, transform_indices = @transform_3, window_bounds = array<i64: 9, 16>}, {pipeline_mode = #tpu.pipeline_mode<synchronous>, transform_indices = @transform_4, window_bounds = array<i64: 1, 16>}, {pipeline_mode = #tpu.pipeline_mode<synchronous>, transform_indices = @transform_5, window_bounds = array<i64: 16, 1>}, {pipeline_mode = #tpu.pipeline_mode<synchronous>, transform_indices = @transform_6, window_bounds = array<i64: 1, 16>}, {pipeline_mode = #tpu.pipeline_mode<synchronous>, transform_indices = @transform_7, window_bounds = array<i64: 16, 4>}, {pipeline_mode = #tpu.pipeline_mode<synchronous>, transform_indices = @transform_8, window_bounds = array<i64: 1, 4>}, {transform_indices = @transform_9, window_bounds = array<i64: 1, 256, 4>}]} {
    %c0 = arith.constant 0 : index
    %c0_0 = arith.constant 0 : index
    %c0_1 = arith.constant 0 : index
    %0 = vector.load %arg1[%c0, %c0_0, %c0_1] : memref<1x256x4xf32, #tpu.memory_space<vmem>>, vector<1x256x4xf32>
    %1 = vector.shape_cast %0 : vector<1x256x4xf32> to vector<256x4xf32>
    %c0_2 = arith.constant 0 : index
    %c0_3 = arith.constant 0 : index
    %2 = vector.load %arg2[%c0_2, %c0_3] : memref<4x16xf32, #tpu.memory_space<vmem>>, vector<4x16xf32>
    %cst = arith.constant dense<0.000000e+00> : vector<256x16xf32>
    %3 = tpu.matmul %1, %2, %cst {dimension_numbers = #tpu.dot_dimension_numbers<[1], [0], [0], [1], [0, 0, 1, 1], [], []>} : vector<256x4xf32>, vector<4x16xf32>, vector<256x16xf32> -> vector<256x16xf32>
    %c0_4 = arith.constant 0 : index
    %c0_5 = arith.constant 0 : index
    %4 = vector.load %arg3[%c0_4, %c0_5] : memref<1x16xf32, #tpu.memory_space<vmem>>, vector<1x16xf32>
    %5 = vector.broadcast %4 : vector<1x16xf32> to vector<256x16xf32>
    %6 = arith.addf %3, %5 : vector<256x16xf32>
    %cst_6 = arith.constant 0.000000e+00 : f32
    %7 = vector.broadcast %cst_6 : f32 to vector<256x16xf32>
    %8 = arith.cmpf ogt, %6, %7 : vector<256x16xf32>
    %cst_7 = arith.constant 0.00999999977 : f32
    %9 = vector.broadcast %cst_7 : f32 to vector<256x16xf32>
    %10 = arith.mulf %9, %6 : vector<256x16xf32>
    %11 = arith.select %8, %6, %10 : vector<256x16xi1>, vector<256x16xf32>
    %cst_8 = arith.constant 0.000000e+00 : f32
    %12 = vector.broadcast %cst_8 : f32 to vector<18x32x16xf32>
    %c0_9 = arith.constant 0 : index
    %c0_10 = arith.constant 0 : index
    %c0_11 = arith.constant 0 : index
    %13 = vector.load %arg11[%c0_9, %c0_10, %c0_11] : memref<18x32x16xf32, #tpu.memory_space<vmem>>, vector<18x32x16xf32>
    tpu.vector_store %arg11[%c0_9, %c0_10, %c0_11], %12 {strides = array<i32>} : memref<18x32x16xf32, #tpu.memory_space<vmem>>, vector<18x32x16xf32>,
    %14 = vector.shape_cast %11 : vector<256x16xf32> to vector<16x16x16xf32>
    %c1 = arith.constant 1 : index
    %c8 = arith.constant 8 : index
    %c0_12 = arith.constant 0 : index
    %15 = vector.load %arg11[%c1, %c8, %c0_12] : memref<18x32x16xf32, #tpu.memory_space<vmem>>, vector<16x16x16xf32>
    tpu.vector_store %arg11[%c1, %c8, %c0_12], %14 {strides = array<i32>} : memref<18x32x16xf32, #tpu.memory_space<vmem>>, vector<16x16x16xf32>,
    %c0_13 = arith.constant 0 : index
    %c0_14 = arith.constant 0 : index
    %c0_15 = arith.constant 0 : index
    %16 = vector.load %arg11[%c0_13, %c0_14, %c0_15] : memref<18x32x16xf32, #tpu.memory_space<vmem>>, vector<18x32x16xf32>
    %c0_16 = arith.constant 0 : index
    %c0_17 = arith.constant 0 : index
    %17 = vector.load %arg4[%c0_16, %c0_17] : memref<9x16xf32, #tpu.memory_space<vmem>>, vector<9x16xf32>
    %18 = vector.extract_strided_slice %16 {offsets = [0, 7, 0], sizes = [16, 16, 16], strides = [1, 1, 1]} : vector<18x32x16xf32> to vector<16x16x16xf32>
    %19 = vector.extract_strided_slice %17 {offsets = [0, 0], sizes = [1, 16], strides = [1, 1]} : vector<9x16xf32> to vector<1x16xf32>
    %20 = vector.shape_cast %19 : vector<1x16xf32> to vector<16xf32>
    %21 = vector.shape_cast %20 : vector<16xf32> to vector<1x1x16xf32>
    %22 = vector.broadcast %21 : vector<1x1x16xf32> to vector<16x16x16xf32>
    %23 = arith.mulf %18, %22 : vector<16x16x16xf32>
    %24 = vector.extract_strided_slice %16 {offsets = [0, 8, 0], sizes = [16, 16, 16], strides = [1, 1, 1]} : vector<18x32x16xf32> to vector<16x16x16xf32>
    %25 = vector.extract_strided_slice %17 {offsets = [1, 0], sizes = [1, 16], strides = [1, 1]} : vector<9x16xf32> to vector<1x16xf32>
    %26 = vector.shape_cast %25 : vector<1x16xf32> to vector<16xf32>
    %27 = vector.shape_cast %26 : vector<16xf32> to vector<1x1x16xf32>
    %28 = vector.broadcast %27 : vector<1x1x16xf32> to vector<16x16x16xf32>
    %29 = arith.mulf %24, %28 : vector<16x16x16xf32>
    %30 = vector.extract_strided_slice %16 {offsets = [0, 9, 0], sizes = [16, 16, 16], strides = [1, 1, 1]} : vector<18x32x16xf32> to vector<16x16x16xf32>
    %31 = vector.extract_strided_slice %17 {offsets = [2, 0], sizes = [1, 16], strides = [1, 1]} : vector<9x16xf32> to vector<1x16xf32>
    %32 = vector.shape_cast %31 : vector<1x16xf32> to vector<16xf32>
    %33 = vector.shape_cast %32 : vector<16xf32> to vector<1x1x16xf32>
    %34 = vector.broadcast %33 : vector<1x1x16xf32> to vector<16x16x16xf32>
    %35 = arith.mulf %30, %34 : vector<16x16x16xf32>
    %36 = vector.extract_strided_slice %16 {offsets = [1, 7, 0], sizes = [16, 16, 16], strides = [1, 1, 1]} : vector<18x32x16xf32> to vector<16x16x16xf32>
    %37 = vector.extract_strided_slice %17 {offsets = [3, 0], sizes = [1, 16], strides = [1, 1]} : vector<9x16xf32> to vector<1x16xf32>
    %38 = vector.shape_cast %37 : vector<1x16xf32> to vector<16xf32>
    %39 = vector.shape_cast %38 : vector<16xf32> to vector<1x1x16xf32>
    %40 = vector.broadcast %39 : vector<1x1x16xf32> to vector<16x16x16xf32>
    %41 = arith.mulf %36, %40 : vector<16x16x16xf32>
    %42 = vector.extract_strided_slice %16 {offsets = [1, 8, 0], sizes = [16, 16, 16], strides = [1, 1, 1]} : vector<18x32x16xf32> to vector<16x16x16xf32>
    %43 = vector.extract_strided_slice %17 {offsets = [4, 0], sizes = [1, 16], strides = [1, 1]} : vector<9x16xf32> to vector<1x16xf32>
    %44 = vector.shape_cast %43 : vector<1x16xf32> to vector<16xf32>
    %45 = vector.shape_cast %44 : vector<16xf32> to vector<1x1x16xf32>
    %46 = vector.broadcast %45 : vector<1x1x16xf32> to vector<16x16x16xf32>
    %47 = arith.mulf %42, %46 : vector<16x16x16xf32>
    %48 = vector.extract_strided_slice %16 {offsets = [1, 9, 0], sizes = [16, 16, 16], strides = [1, 1, 1]} : vector<18x32x16xf32> to vector<16x16x16xf32>
    %49 = vector.extract_strided_slice %17 {offsets = [5, 0], sizes = [1, 16], strides = [1, 1]} : vector<9x16xf32> to vector<1x16xf32>
    %50 = vector.shape_cast %49 : vector<1x16xf32> to vector<16xf32>
    %51 = vector.shape_cast %50 : vector<16xf32> to vector<1x1x16xf32>
    %52 = vector.broadcast %51 : vector<1x1x16xf32> to vector<16x16x16xf32>
    %53 = arith.mulf %48, %52 : vector<16x16x16xf32>
    %54 = vector.extract_strided_slice %16 {offsets = [2, 7, 0], sizes = [16, 16, 16], strides = [1, 1, 1]} : vector<18x32x16xf32> to vector<16x16x16xf32>
    %55 = vector.extract_strided_slice %17 {offsets = [6, 0], sizes = [1, 16], strides = [1, 1]} : vector<9x16xf32> to vector<1x16xf32>
    %56 = vector.shape_cast %55 : vector<1x16xf32> to vector<16xf32>
    %57 = vector.shape_cast %56 : vector<16xf32> to vector<1x1x16xf32>
    %58 = vector.broadcast %57 : vector<1x1x16xf32> to vector<16x16x16xf32>
    %59 = arith.mulf %54, %58 : vector<16x16x16xf32>
    %60 = vector.extract_strided_slice %16 {offsets = [2, 8, 0], sizes = [16, 16, 16], strides = [1, 1, 1]} : vector<18x32x16xf32> to vector<16x16x16xf32>
    %61 = vector.extract_strided_slice %17 {offsets = [7, 0], sizes = [1, 16], strides = [1, 1]} : vector<9x16xf32> to vector<1x16xf32>
    %62 = vector.shape_cast %61 : vector<1x16xf32> to vector<16xf32>
    %63 = vector.shape_cast %62 : vector<16xf32> to vector<1x1x16xf32>
    %64 = vector.broadcast %63 : vector<1x1x16xf32> to vector<16x16x16xf32>
    %65 = arith.mulf %60, %64 : vector<16x16x16xf32>
    %66 = vector.extract_strided_slice %16 {offsets = [2, 9, 0], sizes = [16, 16, 16], strides = [1, 1, 1]} : vector<18x32x16xf32> to vector<16x16x16xf32>
    %67 = vector.extract_strided_slice %17 {offsets = [8, 0], sizes = [1, 16], strides = [1, 1]} : vector<9x16xf32> to vector<1x16xf32>
    %68 = vector.shape_cast %67 : vector<1x16xf32> to vector<16xf32>
    %69 = vector.shape_cast %68 : vector<16xf32> to vector<1x1x16xf32>
    %70 = vector.broadcast %69 : vector<1x1x16xf32> to vector<16x16x16xf32>
    %71 = arith.mulf %66, %70 : vector<16x16x16xf32>
    %72 = arith.addf %23, %29 : vector<16x16x16xf32>
    %73 = arith.addf %35, %41 : vector<16x16x16xf32>
    %74 = arith.addf %47, %53 : vector<16x16x16xf32>
    %75 = arith.addf %59, %65 : vector<16x16x16xf32>
    %76 = arith.addf %72, %73 : vector<16x16x16xf32>
    %77 = arith.addf %74, %75 : vector<16x16x16xf32>
    %78 = arith.addf %76, %77 : vector<16x16x16xf32>
    %79 = arith.addf %78, %71 : vector<16x16x16xf32>
    %c0_18 = arith.constant 0 : index
    %c0_19 = arith.constant 0 : index
    %80 = vector.load %arg5[%c0_18, %c0_19] : memref<1x16xf32, #tpu.memory_space<vmem>>, vector<1x16xf32>
    %81 = vector.shape_cast %80 : vector<1x16xf32> to vector<1x1x16xf32>
    %82 = vector.broadcast %81 : vector<1x1x16xf32> to vector<16x16x16xf32>
    %83 = arith.addf %79, %82 : vector<16x16x16xf32>
    %cst_20 = arith.constant 0.000000e+00 : f32
    %84 = vector.broadcast %cst_20 : f32 to vector<16x16x16xf32>
    %85 = arith.cmpf ogt, %83, %84 : vector<16x16x16xf32>
    %cst_21 = arith.constant 0.00999999977 : f32
    %86 = vector.broadcast %cst_21 : f32 to vector<16x16x16xf32>
    %87 = arith.mulf %86, %83 : vector<16x16x16xf32>
    %88 = arith.select %85, %83, %87 : vector<16x16x16xi1>, vector<16x16x16xf32>
    %89 = vector.shape_cast %88 : vector<16x16x16xf32> to vector<256x16xf32>
    %cst_22 = arith.constant dense<0.000000e+00> : vector<16xf32>
    %90 = vector.multi_reduction <add>, %89, %cst_22 [0] : vector<256x16xf32> to vector<16xf32>
    %91 = vector.shape_cast %90 : vector<16xf32> to vector<1x16xf32>
    %cst_23 = arith.constant 3.906250e-03 : f32
    %92 = vector.broadcast %cst_23 : f32 to vector<1x16xf32>
    %93 = arith.mulf %91, %92 : vector<1x16xf32>
    %c0_24 = arith.constant 0 : index
    %c0_25 = arith.constant 0 : index
    %94 = vector.load %arg6[%c0_24, %c0_25] : memref<16x1xf32, #tpu.memory_space<vmem>>, vector<16x1xf32>
    %cst_26 = arith.constant dense<0.000000e+00> : vector<1x1xf32>
    %95 = tpu.matmul %93, %94, %cst_26 {dimension_numbers = #tpu.dot_dimension_numbers<[1], [0], [0], [1], [0, 0, 1, 1], [], []>} : vector<1x16xf32>, vector<16x1xf32>, vector<1x1xf32> -> vector<1x1xf32>
    %cst_27 = arith.constant 5.000000e-01 : f32
    %96 = vector.broadcast %cst_27 : f32 to vector<1x1xf32>
    %97 = arith.mulf %96, %95 : vector<1x1xf32>
    %cst_28 = arith.constant 0.707106769 : f32
    %98 = vector.broadcast %cst_28 : f32 to vector<1x1xf32>
    %99 = arith.mulf %95, %98 : vector<1x1xf32>
    %cst_29 = arith.constant 0.000000e+00 : f32
    %100 = vector.broadcast %cst_29 : f32 to vector<1x1xf32>
    %101 = arith.cmpf oge, %99, %100 : vector<1x1xf32>
    %cst_30 = arith.constant 1.000000e+00 : f32
    %cst_31 = arith.constant -1.000000e+00 : f32
    %102 = vector.broadcast %cst_30 : f32 to vector<1x1xf32>
    %103 = vector.broadcast %cst_31 : f32 to vector<1x1xf32>
    %104 = arith.select %101, %102, %103 : vector<1x1xi1>, vector<1x1xf32>
    %105 = math.absf %99 : vector<1x1xf32>
    %cst_32 = arith.constant 0.327591091 : f32
    %106 = vector.broadcast %cst_32 : f32 to vector<1x1xf32>
    %107 = arith.mulf %106, %105 : vector<1x1xf32>
    %cst_33 = arith.constant 1.000000e+00 : f32
    %108 = vector.broadcast %cst_33 : f32 to vector<1x1xf32>
    %109 = arith.addf %108, %107 : vector<1x1xf32>
    %cst_34 = arith.constant 1.000000e+00 : f32
    %110 = vector.broadcast %cst_34 : f32 to vector<1x1xf32>
    %111 = arith.divf %110, %109 : vector<1x1xf32>
    %cst_35 = arith.constant 1.06140542 : f32
    %112 = vector.broadcast %cst_35 : f32 to vector<1x1xf32>
    %113 = arith.mulf %112, %111 : vector<1x1xf32>
    %cst_36 = arith.constant -1.45315206 : f32
    %114 = vector.broadcast %cst_36 : f32 to vector<1x1xf32>
    %115 = arith.addf %113, %114 : vector<1x1xf32>
    %116 = arith.mulf %115, %111 : vector<1x1xf32>
    %cst_37 = arith.constant 1.42141378 : f32
    %117 = vector.broadcast %cst_37 : f32 to vector<1x1xf32>
    %118 = arith.addf %116, %117 : vector<1x1xf32>
    %119 = arith.mulf %118, %111 : vector<1x1xf32>
    %cst_38 = arith.constant -0.284496725 : f32
    %120 = vector.broadcast %cst_38 : f32 to vector<1x1xf32>
    %121 = arith.addf %119, %120 : vector<1x1xf32>
    %122 = arith.mulf %121, %111 : vector<1x1xf32>
    %cst_39 = arith.constant 0.254829586 : f32
    %123 = vector.broadcast %cst_39 : f32 to vector<1x1xf32>
    %124 = arith.addf %122, %123 : vector<1x1xf32>
    %125 = arith.mulf %124, %111 : vector<1x1xf32>
    %cst_40 = arith.constant 0.000000e+00 : f32
    %126 = vector.broadcast %cst_40 : f32 to vector<1x1xf32>
    %127 = arith.subf %126, %105 : vector<1x1xf32>
    %128 = arith.mulf %127, %105 : vector<1x1xf32>
    %129 = math.exp %128 : vector<1x1xf32>
    %130 = arith.mulf %125, %129 : vector<1x1xf32>
    %cst_41 = arith.constant 1.000000e+00 : f32
    %131 = vector.broadcast %cst_41 : f32 to vector<1x1xf32>
    %132 = arith.subf %131, %130 : vector<1x1xf32>
    %133 = arith.mulf %104, %132 : vector<1x1xf32>
    %cst_42 = arith.constant 1.000000e+00 : f32
    %134 = vector.broadcast %cst_42 : f32 to vector<1x1xf32>
    %135 = arith.addf %134, %133 : vector<1x1xf32>
    %136 = arith.mulf %97, %135 : vector<1x1xf32>
    %c0_43 = arith.constant 0 : index
    %c0_44 = arith.constant 0 : index
    %137 = vector.load %arg7[%c0_43, %c0_44] : memref<1x16xf32, #tpu.memory_space<vmem>>, vector<1x16xf32>
    %cst_45 = arith.constant dense<0.000000e+00> : vector<1x16xf32>
    %138 = tpu.matmul %136, %137, %cst_45 {dimension_numbers = #tpu.dot_dimension_numbers<[1], [0], [0], [1], [0, 0, 1, 1], [], []>} : vector<1x1xf32>, vector<1x16xf32>, vector<1x16xf32> -> vector<1x16xf32>
    %cst_46 = arith.constant 0.000000e+00 : f32
    %139 = vector.broadcast %cst_46 : f32 to vector<1x16xf32>
    %140 = arith.subf %139, %138 : vector<1x16xf32>
    %141 = math.exp %140 : vector<1x16xf32>
    %cst_47 = arith.constant 1.000000e+00 : f32
    %142 = vector.broadcast %cst_47 : f32 to vector<1x16xf32>
    %143 = arith.addf %142, %141 : vector<1x16xf32>
    %cst_48 = arith.constant 1.000000e+00 : f32
    %144 = vector.broadcast %cst_48 : f32 to vector<1x16xf32>
    %145 = arith.divf %144, %143 : vector<1x16xf32>
    %146 = vector.broadcast %145 : vector<1x16xf32> to vector<256x16xf32>
    %147 = arith.mulf %89, %146 : vector<256x16xf32>
    %c0_49 = arith.constant 0 : index
    %c0_50 = arith.constant 0 : index
    %148 = vector.load %arg8[%c0_49, %c0_50] : memref<16x4xf32, #tpu.memory_space<vmem>>, vector<16x4xf32>
    %cst_51 = arith.constant dense<0.000000e+00> : vector<256x4xf32>
    %149 = tpu.matmul %147, %148, %cst_51 {dimension_numbers = #tpu.dot_dimension_numbers<[1], [0], [0], [1], [0, 0, 1, 1], [], []>} : vector<256x16xf32>, vector<16x4xf32>, vector<256x4xf32> -> vector<256x4xf32>
    %c0_52 = arith.constant 0 : index
    %c0_53 = arith.constant 0 : index
    %150 = vector.load %arg9[%c0_52, %c0_53] : memref<1x4xf32, #tpu.memory_space<vmem>>, vector<1x4xf32>
    %151 = vector.broadcast %150 : vector<1x4xf32> to vector<256x4xf32>
    %152 = arith.addf %149, %151 : vector<256x4xf32>
    %153 = arith.addf %152, %1 : vector<256x4xf32>
    %c0_54 = arith.constant 0 : index
    %c0_55 = arith.constant 0 : index
    %c0_56 = arith.constant 0 : index
    %154 = vector.load %arg10[%c0_54, %c0_55, %c0_56] : memref<1x256x4xf32, #tpu.memory_space<vmem>>, vector<1x256x4xf32>
    %155 = vector.shape_cast %154 : vector<1x256x4xf32> to vector<256x4xf32>
    %156 = vector.shape_cast %153 : vector<256x4xf32> to vector<1x256x4xf32>
    tpu.vector_store %arg10[%c0_54, %c0_55, %c0_56], %156 {strides = array<i32>} : memref<1x256x4xf32, #tpu.memory_space<vmem>>, vector<1x256x4xf32>,
    return
  }
  func.func @transform_0(%arg0: i32) -> (i32, i32, i32) {
    %c0_i32 = arith.constant 0 : i32
    %c0_i32_0 = arith.constant 0 : i32
    %c0_i32_1 = arith.constant 0 : i32
    return %arg0, %c0_i32, %c0_i32_0 : i32, i32, i32
  }
  func.func @transform_1(%arg0: i32) -> (i32, i32) {
    %c0_i32 = arith.constant 0 : i32
    %c0_i32_0 = arith.constant 0 : i32
    %c0_i32_1 = arith.constant 0 : i32
    return %c0_i32, %c0_i32_0 : i32, i32
  }
  func.func @transform_2(%arg0: i32) -> (i32, i32) {
    %c0_i32 = arith.constant 0 : i32
    %c0_i32_0 = arith.constant 0 : i32
    %c0_i32_1 = arith.constant 0 : i32
    return %c0_i32, %c0_i32_0 : i32, i32
  }
  func.func @transform_3(%arg0: i32) -> (i32, i32) {
    %c0_i32 = arith.constant 0 : i32
    %c0_i32_0 = arith.constant 0 : i32
    %c0_i32_1 = arith.constant 0 : i32
    return %c0_i32, %c0_i32_0 : i32, i32
  }
  func.func @transform_4(%arg0: i32) -> (i32, i32) {
    %c0_i32 = arith.constant 0 : i32
    %c0_i32_0 = arith.constant 0 : i32
    %c0_i32_1 = arith.constant 0 : i32
    return %c0_i32, %c0_i32_0 : i32, i32
  }
  func.func @transform_5(%arg0: i32) -> (i32, i32) {
    %c0_i32 = arith.constant 0 : i32
    %c0_i32_0 = arith.constant 0 : i32
    %c0_i32_1 = arith.constant 0 : i32
    return %c0_i32, %c0_i32_0 : i32, i32
  }
  func.func @transform_6(%arg0: i32) -> (i32, i32) {
    %c0_i32 = arith.constant 0 : i32
    %c0_i32_0 = arith.constant 0 : i32
    %c0_i32_1 = arith.constant 0 : i32
    return %c0_i32, %c0_i32_0 : i32, i32
  }
  func.func @transform_7(%arg0: i32) -> (i32, i32) {
    %c0_i32 = arith.constant 0 : i32
    %c0_i32_0 = arith.constant 0 : i32
    %c0_i32_1 = arith.constant 0 : i32
    return %c0_i32, %c0_i32_0 : i32, i32
  }
  func.func @transform_8(%arg0: i32) -> (i32, i32) {
    %c0_i32 = arith.constant 0 : i32
    %c0_i32_0 = arith.constant 0 : i32
    %c0_i32_1 = arith.constant 0 : i32
    return %c0_i32, %c0_i32_0 : i32, i32
  }
  func.func @transform_9(%arg0: i32) -> (i32, i32, i32) {
    %c0_i32 = arith.constant 0 : i32
    %c0_i32_0 = arith.constant 0 : i32
    %c0_i32_1 = arith.constant 0 : i32
    return %arg0, %c0_i32, %c0_i32_0 : i32, i32, i32
  }
}

</mosaic_0001>

<llo_original>
// kernel: mbconv_forward.1
$region0: #{mbconv_forward.1}
  #allocation0 [shape = 'u32[]', space=smem, size = 0x4, offset = 0x4, fixed_abs, tag = 'smem constant byte address 0x4 - core index']
  #allocation1 [shape = 'u32[72,128]{1,0:T(1,128)}', space=vmem, size = 0x9000, scoped, tag = 'internal scratch']
  #allocation2 [shape = 'f32[18,32,16]{2,1,0:T(8,128)}', space=vmem, size = 0x48000, scoped, tag = 'scratch operand']
  %s0 = inlined_call_operand.vmem [shape: f32[2,256,4], index: 0, kind: input, shape index: {}]
  %s1 = inlined_call_operand.vmem [shape: f32[4,16], index: 1, kind: input, shape index: {}]
  %s2 = inlined_call_operand.vmem [shape: f32[1,16], index: 2, kind: input, shape index: {}]
  %s3 = inlined_call_operand.vmem [shape: f32[9,16], index: 3, kind: input, shape index: {}]
  %s4 = inlined_call_operand.vmem [shape: f32[1,16], index: 4, kind: input, shape index: {}]
  %s5 = inlined_call_operand.vmem [shape: f32[16,1], index: 5, kind: input, shape index: {}]
  %s6 = inlined_call_operand.vmem [shape: f32[1,16], index: 6, kind: input, shape index: {}]
  %s7 = inlined_call_operand.vmem [shape: f32[16,4], index: 7, kind: input, shape index: {}]
  %s8 = inlined_call_operand.vmem [shape: f32[1,4], index: 8, kind: input, shape index: {}]
  %s9 = inlined_call_operand.vmem [shape: f32[2,256,4], index: 9, kind: output, shape index: {}]
  %s10 = sld [smem:[#allocation0]]
  $region69: #{mbconv_forward.1} parent=0
    _
  %s12 = ssub.s32 1, %s10
  %s13 = scalar_select 0, %s12, %s10
  loop: start=0, step=1, limit=4
  $region2: #{mbconv_forward.1} parent=0 // loop_pre_header
    _
  $region3: #{mbconv_forward.1} parent=0 // loop_header
    %s15 = sphi 0, %s19
    %p16 = scmp.ge.s32.totalorder %s15, 4
    %s25 = sphi 0, %s27
    %s28 = sphi 0, %s25
    %s29 = sphi 0, %s28
    %s45 = sphi 0, %s29
    %s49 = sphi 0, %s49
    %s51 = sphi 0, %s49
    %s52 = sphi 0, %s51
    %s66 = sphi 0, %s52
    %s70 = sphi 0, %s70
    %s72 = sphi 0, %s70
    %s73 = sphi 0, %s72
    %s87 = sphi 0, %s73
    %s91 = sphi 0, %s91
    %s93 = sphi 0, %s91
    %s94 = sphi 0, %s93
    %s108 = sphi 0, %s94
    %s112 = sphi 0, %s112
    %s114 = sphi 0, %s112
    %s115 = sphi 0, %s114
    %s129 = sphi 0, %s115
    %s133 = sphi 0, %s133
    %s135 = sphi 0, %s133
    %s136 = sphi 0, %s135
    %s150 = sphi 0, %s136
    %s154 = sphi 0, %s154
    %s156 = sphi 0, %s154
    %s157 = sphi 0, %s156
    %s171 = sphi 0, %s157
    %s175 = sphi 0, %s175
    %s177 = sphi 0, %s175
    %s178 = sphi 0, %s177
    %s192 = sphi 0, %s178
    %s196 = sphi 0, %s196
    %s198 = sphi 0, %s196
    %s199 = sphi 0, %s198
    %s213 = sphi 0, %s199
    %s219 = sphi 0, %s221
    %s222 = sphi 0, %s219
    %s223 = sphi 0, %s222
    %s239 = sphi 0, %s223
  $region4: #{mbconv_forward.1} parent=0 // loop_header_branch
    %18 = sbr.rel (%p16) target = $region8
  $region5: #{mbconv_forward.1} parent=0 // loop_body
    %s20 = ssub.s32 %s15, 1
    %s21 = ssub.s32 %s15, 2
    %s22 = sadd.s32 %s15, 1
    %s23 = ssub.s32 %s15, %s22
    %p24 = scmp.eq.s32.totalorder %s23, 0
    %s26 = sadd.s32 %s25, 1
    %s27 = scalar_select %p24, %s25, %s26
    %p30 = pneg %p24
    %p31 = scmp.eq.s32.totalorder %s15, 1
    %p32 = por %p30, %p31
    %p33 = scmp.ne.s32.totalorder %s25, %s28
    %p34 = scmp.eq.s32.totalorder %s15, 0
    %p35 = por %p33, %p34
    %p36 = scmp.ne.s32.totalorder %s25, %s28
    %p37 = scmp.eq.s32.totalorder %s20, 1
    %p38 = por %p36, %p37
    %p39 = scmp.ne.s32.totalorder %s28, %s29
    %p40 = scmp.eq.s32.totalorder %s20, 0
    %p41 = por %p39, %p40
    %p42 = scmp.ne.s32.totalorder %s28, %s29
    %p43 = scmp.eq.s32.totalorder %s21, 1
    %p44 = por %p42, %p43
    %p46 = scmp.ne.s32.totalorder %s29, %s45
    %p47 = scmp.eq.s32.totalorder %s21, 0
    %p48 = por %p46, %p47
    %s50 = sadd.s32 %s49, 1
    %p53 = scmp.eq.s32.totalorder %s15, 1
    %p54 = scmp.ne.s32.totalorder %s49, %s51
    %p55 = scmp.eq.s32.totalorder %s15, 0
    %p56 = por %p54, %p55
    %p57 = scmp.ne.s32.totalorder %s49, %s51
    %p58 = scmp.eq.s32.totalorder %s20, 1
    %p59 = por %p57, %p58
    %p60 = scmp.ne.s32.totalorder %s51, %s52
    %p61 = scmp.eq.s32.totalorder %s20, 0
    %p62 = por %p60, %p61
    %p63 = scmp.ne.s32.totalorder %s51, %s52
    %p64 = scmp.eq.s32.totalorder %s21, 1
    %p65 = por %p63, %p64
    %p67 = scmp.ne.s32.totalorder %s52, %s66
    %p68 = scmp.eq.s32.totalorder %s21, 0
    %p69 = por %p67, %p68
    %s71 = sadd.s32 %s70, 1
    %p74 = scmp.eq.s32.totalorder %s15, 1
    %p75 = scmp.ne.s32.totalorder %s70, %s72
    %p76 = scmp.eq.s32.totalorder %s15, 0
    %p77 = por %p75, %p76
    %p78 = scmp.ne.s32.totalorder %s70, %s72
    %p79 = scmp.eq.s32.totalorder %s20, 1
    %p80 = por %p78, %p79
    %p81 = scmp.ne.s32.totalorder %s72, %s73
    %p82 = scmp.eq.s32.totalorder %s20, 0
    %p83 = por %p81, %p82
    %p84 = scmp.ne.s32.totalorder %s72, %s73
    %p85 = scmp.eq.s32.totalorder %s21, 1
    %p86 = por %p84, %p85
    %p88 = scmp.ne.s32.totalorder %s73, %s87
    %p89 = scmp.eq.s32.totalorder %s21, 0
    %p90 = por %p88, %p89
    %s92 = sadd.s32 %s91, 1
    %p95 = scmp.eq.s32.totalorder %s15, 1
    %p96 = scmp.ne.s32.totalorder %s91, %s93
    %p97 = scmp.eq.s32.totalorder %s15, 0
    %p98 = por %p96, %p97
    %p99 = scmp.ne.s32.totalorder %s91, %s93
    %p100 = scmp.eq.s32.totalorder %s20, 1
    %p101 = por %p99, %p100
    %p102 = scmp.ne.s32.totalorder %s93, %s94
    %p103 = scmp.eq.s32.totalorder %s20, 0
    %p104 = por %p102, %p103
    %p105 = scmp.ne.s32.totalorder %s93, %s94
    %p106 = scmp.eq.s32.totalorder %s21, 1
    %p107 = por %p105, %p106
    %p109 = scmp.ne.s32.totalorder %s94, %s108
    %p110 = scmp.eq.s32.totalorder %s21, 0
    %p111 = por %p109, %p110
    %s113 = sadd.s32 %s112, 1
    %p116 = scmp.eq.s32.totalorder %s15, 1
    %p117 = scmp.ne.s32.totalorder %s112, %s114
    %p118 = scmp.eq.s32.totalorder %s15, 0
    %p119 = por %p117, %p118
    %p120 = scmp.ne.s32.totalorder %s112, %s114
    %p121 = scmp.eq.s32.totalorder %s20, 1
    %p122 = por %p120, %p121
    %p123 = scmp.ne.s32.totalorder %s114, %s115
    %p124 = scmp.eq.s32.totalorder %s20, 0
    %p125 = por %p123, %p124
    %p126 = scmp.ne.s32.totalorder %s114, %s115
    %p127 = scmp.eq.s32.totalorder %s21, 1
    %p128 = por %p126, %p127
    %p130 = scmp.ne.s32.totalorder %s115, %s129
    %p131 = scmp.eq.s32.totalorder %s21, 0
    %p132 = por %p130, %p131
    %s134 = sadd.s32 %s133, 1
    %p137 = scmp.eq.s32.totalorder %s15, 1
    %p138 = scmp.ne.s32.totalorder %s133, %s135
    %p139 = scmp.eq.s32.totalorder %s15, 0
    %p140 = por %p138, %p139
    %p141 = scmp.ne.s32.totalorder %s133, %s135
    %p142 = scmp.eq.s32.totalorder %s20, 1
    %p143 = por %p141, %p142
    %p144 = scmp.ne.s32.totalorder %s135, %s136
    %p145 = scmp.eq.s32.totalorder %s20, 0
    %p146 = por %p144, %p145
    %p147 = scmp.ne.s32.totalorder %s135, %s136
    %p148 = scmp.eq.s32.totalorder %s21, 1
    %p149 = por %p147, %p148
    %p151 = scmp.ne.s32.totalorder %s136, %s150
    %p152 = scmp.eq.s32.totalorder %s21, 0
    %p153 = por %p151, %p152
    %s155 = sadd.s32 %s154, 1
    %p158 = scmp.eq.s32.totalorder %s15, 1
    %p159 = scmp.ne.s32.totalorder %s154, %s156
    %p160 = scmp.eq.s32.totalorder %s15, 0
    %p161 = por %p159, %p160
    %p162 = scmp.ne.s32.totalorder %s154, %s156
    %p163 = scmp.eq.s32.totalorder %s20, 1
    %p164 = por %p162, %p163
    %p165 = scmp.ne.s32.totalorder %s156, %s157
    %p166 = scmp.eq.s32.totalorder %s20, 0
    %p167 = por %p165, %p166
    %p168 = scmp.ne.s32.totalorder %s156, %s157
    %p169 = scmp.eq.s32.totalorder %s21, 1
    %p170 = por %p168, %p169
    %p172 = scmp.ne.s32.totalorder %s157, %s171
    %p173 = scmp.eq.s32.totalorder %s21, 0
    %p174 = por %p172, %p173
    %s176 = sadd.s32 %s175, 1
    %p179 = scmp.eq.s32.totalorder %s15, 1
    %p180 = scmp.ne.s32.totalorder %s175, %s177
    %p181 = scmp.eq.s32.totalorder %s15, 0
    %p182 = por %p180, %p181
    %p183 = scmp.ne.s32.totalorder %s175, %s177
    %p184 = scmp.eq.s32.totalorder %s20, 1
    %p185 = por %p183, %p184
    %p186 = scmp.ne.s32.totalorder %s177, %s178
    %p187 = scmp.eq.s32.totalorder %s20, 0
    %p188 = por %p186, %p187
    %p189 = scmp.ne.s32.totalorder %s177, %s178
    %p190 = scmp.eq.s32.totalorder %s21, 1
    %p191 = por %p189, %p190
    %p193 = scmp.ne.s32.totalorder %s178, %s192
    %p194 = scmp.eq.s32.totalorder %s21, 0
    %p195 = por %p193, %p194
    %s197 = sadd.s32 %s196, 1
    %p200 = scmp.eq.s32.totalorder %s15, 1
    %p201 = scmp.ne.s32.totalorder %s196, %s198
    %p202 = scmp.eq.s32.totalorder %s15, 0
    %p203 = por %p201, %p202
    %p204 = scmp.ne.s32.totalorder %s196, %s198
    %p205 = scmp.eq.s32.totalorder %s20, 1
    %p206 = por %p204, %p205
    %p207 = scmp.ne.s32.totalorder %s198, %s199
    %p208 = scmp.eq.s32.totalorder %s20, 0
    %p209 = por %p207, %p208
    %p210 = scmp.ne.s32.totalorder %s198, %s199
    %p211 = scmp.eq.s32.totalorder %s21, 1
    %p212 = por %p210, %p211
    %p214 = scmp.ne.s32.totalorder %s199, %s213
    %p215 = scmp.eq.s32.totalorder %s21, 0
    %p216 = por %p214, %p215
    %s217 = ssub.s32 %s15, %s22
    %p218 = scmp.eq.s32.totalorder %s217, 0
    %s220 = sadd.s32 %s219, 1
    %s221 = scalar_select %p218, %s219, %s220
    %p224 = pneg %p218
    %p225 = scmp.eq.s32.totalorder %s15, 1
    %p226 = por %p224, %p225
    %p227 = scmp.ne.s32.totalorder %s219, %s222
    %p228 = scmp.eq.s32.totalorder %s15, 0
    %p229 = por %p227, %p228
    %p230 = scmp.ne.s32.totalorder %s219, %s222
    %p231 = scmp.eq.s32.totalorder %s20, 1
    %p232 = por %p230, %p231
    %p233 = scmp.ne.s32.totalorder %s222, %s223
    %p234 = scmp.eq.s32.totalorder %s20, 0
    %p235 = por %p233, %p234
    %p236 = scmp.ne.s32.totalorder %s222, %s223
    %p237 = scmp.eq.s32.totalorder %s21, 1
    %p238 = por %p236, %p237
    %p240 = scmp.ne.s32.totalorder %s223, %s239
    %p241 = scmp.eq.s32.totalorder %s21, 0
    %p242 = por %p240, %p241
    %p243 = scmp.le.s32.totalorder 1, %s15
    %p244 = scmp.lt.s32.totalorder %s15, 3
    %p245 = pnand %p243, %p244
    %p246 = pneg %p245
    // Predicated region
    $region9: #{mbconv_forward.1} parent=5 // pred_check
      _
    $region10: #{mbconv_forward.1} parent=5 // pred_check_branch
      %248 = sbr.rel (%p245) target = $region12
    $region11: #{mbconv_forward.1} parent=5 // pred_region
      %s249 = ssub.s32 %s15, 1
      // Predicated region
      $region13: #{mbconv_forward.1} parent=11 // pred_check
        %p250 = pneg %p62
      $region14: #{mbconv_forward.1} parent=11 // pred_check_branch
        %252 = sbr.rel (%p250) target = $region16
      $region15: #{mbconv_forward.1} parent=11 // pred_region
        _
      $region16: #{mbconv_forward.1} parent=11 // pred_fallthru
        _
      // Predicated region
      $region17: #{mbconv_forward.1} parent=11 // pred_check
        %p253 = pneg %p83
      $region18: #{mbconv_forward.1} parent=11 // pred_check_branch
        %255 = sbr.rel (%p253) target = $region20
      $region19: #{mbconv_forward.1} parent=11 // pred_region
        _
      $region20: #{mbconv_forward.1} parent=11 // pred_fallthru
        _
      // Predicated region
      $region21: #{mbconv_forward.1} parent=11 // pred_check
        %p256 = pneg %p104
      $region22: #{mbconv_forward.1} parent=11 // pred_check_branch
        %258 = sbr.rel (%p256) target = $region24
      $region23: #{mbconv_forward.1} parent=11 // pred_region
        _
      $region24: #{mbconv_forward.1} parent=11 // pred_fallthru
        _
      // Predicated region
      $region25: #{mbconv_forward.1} parent=11 // pred_check
        %p259 = pneg %p125
      $region26: #{mbconv_forward.1} parent=11 // pred_check_branch
        %261 = sbr.rel (%p259) target = $region28
      $region27: #{mbconv_forward.1} parent=11 // pred_region
        _
      $region28: #{mbconv_forward.1} parent=11 // pred_fallthru
        _
      // Predicated region
      $region29: #{mbconv_forward.1} parent=11 // pred_check
        %p262 = pneg %p146
      $region30: #{mbconv_forward.1} parent=11 // pred_check_branch
        %264 = sbr.rel (%p262) target = $region32
      $region31: #{mbconv_forward.1} parent=11 // pred_region
        _
      $region32: #{mbconv_forward.1} parent=11 // pred_fallthru
        _
      // Predicated region
      $region33: #{mbconv_forward.1} parent=11 // pred_check
        %p265 = pneg %p167
      $region34: #{mbconv_forward.1} parent=11 // pred_check_branch
        %267 = sbr.rel (%p265) target = $region36
      $region35: #{mbconv_forward.1} parent=11 // pred_region
        _
      $region36: #{mbconv_forward.1} parent=11 // pred_fallthru
        _
      // Predicated region
      $region37: #{mbconv_forward.1} parent=11 // pred_check
        %p268 = pneg %p188
      $region38: #{mbconv_forward.1} parent=11 // pred_check_branch
        %270 = sbr.rel (%p268) target = $region40
      $region39: #{mbconv_forward.1} parent=11 // pred_region
        _
      $region40: #{mbconv_forward.1} parent=11 // pred_fallthru
        _
      // Predicated region
      $region41: #{mbconv_forward.1} parent=11 // pred_check
        %p271 = pneg %p209
      $region42: #{mbconv_forward.1} parent=11 // pred_check_branch
        %273 = sbr.rel (%p271) target = $region44
      $region43: #{mbconv_forward.1} parent=11 // pred_region
        _
      $region44: #{mbconv_forward.1} parent=11 // pred_fallthru
        _
    $region12: #{mbconv_forward.1} parent=5 // pred_fallthru
      _
    %p274 = scmp.lt.s32.totalorder %s15, 2
    // Predicated region
    $region45: #{mbconv_forward.1} parent=5 // pred_check
      %p275 = pneg %p274
    $region46: #{mbconv_forward.1} parent=5 // pred_check_branch
      %277 = sbr.rel (%p275) target = $region48
    $region47: #{mbconv_forward.1} parent=5 // pred_region
      // Predicated region
      $region49: #{mbconv_forward.1} parent=47 // pred_check
        %p278 = pneg %p35
      $region50: #{mbconv_forward.1} parent=47 // pred_check_branch
        %280 = sbr.rel (%p278) target = $region52
      $region51: #{mbconv_forward.1} parent=47 // pred_region
        %p281 = scmp.lt.s32.totalorder %s15, 1
        %s282 = scalar_select %p281, %s15, 1
        %s283 = smul.addr %s282, 32
        %s284 = smul.addr %s283, 8
        %s285 = scalar_lea.vmem %s0, %s284
      $region52: #{mbconv_forward.1} parent=47 // pred_fallthru
        _
    $region48: #{mbconv_forward.1} parent=5 // pred_fallthru
      _
    %p286 = scmp.le.s32.totalorder 1, %s15
    %p287 = scmp.lt.s32.totalorder %s15, 3
    %p288 = pnand %p286, %p287
    %p289 = pneg %p288
    // Predicated region
    $region53: #{mbconv_forward.1} parent=5 // pred_check
      _
    $region54: #{mbconv_forward.1} parent=5 // pred_check_branch
      %291 = sbr.rel (%p288) target = $region56
    $region55: #{mbconv_forward.1} parent=5 // pred_region
      %s292 = ssub.s32 %s15, 1
      %p293 = scmp.lt.s32.totalorder %s20, 1
      %s294 = scalar_select %p293, %s20, 1
      %s295 = smul.addr %s294, 32
      %s296 = smul.addr %s295, 8
      %s297 = scalar_lea.vmem %s0, %s296
      %p298 = pneg %p41
      %p299 = pneg %p38
      %p300 = pneg %p62
      %p301 = pneg %p59
      %p302 = pneg %p83
      %p303 = pneg %p80
      %p304 = pneg %p104
      %p305 = pneg %p101
      %p306 = pneg %p125
      %p307 = pneg %p122
      %p308 = pneg %p146
      %p309 = pneg %p143
      %p310 = pneg %p167
      %p311 = pneg %p164
      %p312 = pneg %p188
      %p313 = pneg %p185
      %p314 = pneg %p209
      %p315 = pneg %p206
      %p316 = pneg %p235
      %p317 = pneg %p232
      %p318 = scmp.lt.s32.totalorder %s20, 1
      %s319 = scalar_select %p318, %s20, 1
      %s320 = smul.addr %s319, 32
      %s321 = smul.addr %s320, 8
      %s322 = scalar_lea.vmem %s9, %s321
      %p323 = scmp.lt.s32.totalorder %s20, 1
      %s324 = scalar_select %p323, %s20, 1
      %s325 = smul.addr %s324, 32
      %s326 = smul.addr %s325, 8
      %s327 = scalar_lea.vmem %s0, %s326
      %p328 = scmp.lt.s32.totalorder %s20, 1
      %s329 = scalar_select %p328, %s20, 1
      %s330 = smul.addr %s329, 32
      %s331 = smul.addr %s330, 8
      %s332 = scalar_lea.vmem %s9, %s331
      %v333 = vld [vmem:[%s327] sm:$0xff]
      %v334 = vld [vmem:[%s327 + $0x8] sm:$0xff]
      %v335 = vld [vmem:[%s327 + $0x10] sm:$0xff]
      %v336 = vld [vmem:[%s327 + $0x18] sm:$0xff]
      %v337 = vld [vmem:[%s327 + $0x20] sm:$0xff]
      %v338 = vld [vmem:[%s327 + $0x28] sm:$0xff]
      %v339 = vld [vmem:[%s327 + $0x30] sm:$0xff]
      %v340 = vld [vmem:[%s327 + $0x38] sm:$0xff]
      %v341 = vld [vmem:[%s327 + $0x40] sm:$0xff]
      %v342 = vld [vmem:[%s327 + $0x48] sm:$0xff]
      %v343 = vld [vmem:[%s327 + $0x50] sm:$0xff]
      %v344 = vld [vmem:[%s327 + $0x58] sm:$0xff]
      %v345 = vld [vmem:[%s327 + $0x60] sm:$0xff]
      %v346 = vld [vmem:[%s327 + $0x68] sm:$0xff]
      %v347 = vld [vmem:[%s327 + $0x70] sm:$0xff]
      %v348 = vld [vmem:[%s327 + $0x78] sm:$0xff]
      %v349 = vld [vmem:[%s327 + $0x80] sm:$0xff]
      %v350 = vld [vmem:[%s327 + $0x88] sm:$0xff]
      %v351 = vld [vmem:[%s327 + $0x90] sm:$0xff]
      %v352 = vld [vmem:[%s327 + $0x98] sm:$0xff]
      %v353 = vld [vmem:[%s327 + $0xa0] sm:$0xff]
      %v354 = vld [vmem:[%s327 + $0xa8] sm:$0xff]
      %v355 = vld [vmem:[%s327 + $0xb0] sm:$0xff]
      %v356 = vld [vmem:[%s327 + $0xb8] sm:$0xff]
      %v357 = vld [vmem:[%s327 + $0xc0] sm:$0xff]
      %v358 = vld [vmem:[%s327 + $0xc8] sm:$0xff]
      %v359 = vld [vmem:[%s327 + $0xd0] sm:$0xff]
      %v360 = vld [vmem:[%s327 + $0xd8] sm:$0xff]
      %v361 = vld [vmem:[%s327 + $0xe0] sm:$0xff]
      %v362 = vld [vmem:[%s327 + $0xe8] sm:$0xff]
      %v363 = vld [vmem:[%s327 + $0xf0] sm:$0xff]
      %v364 = vld [vmem:[%s327 + $0xf8] sm:$0xff]
      %v365 = vld [vmem:[%s1] sm:$0xf]
      %v366 = vld [vmem:[%s2] sm:$0x1]
      %v368 = vperm.slane %v366, 0
      %vm370 = vcmask 31744
      %v372 = vsel %vm370, %v333, 0
      %v375 = vsel %vm370, %v334, 0
      %v378 = vsel %vm370, %v335, 0
      %v381 = vsel %vm370, %v336, 0
      %v384 = vsel %vm370, %v337, 0
      %v387 = vsel %vm370, %v338, 0
      %v390 = vsel %vm370, %v339, 0
      %v393 = vsel %vm370, %v340, 0
      %v396 = vsel %vm370, %v341, 0
      %v399 = vsel %vm370, %v342, 0
      %v402 = vsel %vm370, %v343, 0
      %v405 = vsel %vm370, %v344, 0
      %v408 = vsel %vm370, %v345, 0
      %v411 = vsel %vm370, %v346, 0
      %v414 = vsel %vm370, %v347, 0
      %v417 = vsel %vm370, %v348, 0
      %v420 = vsel %vm370, %v349, 0
      %v423 = vsel %vm370, %v350, 0
      %v426 = vsel %vm370, %v351, 0
      %v429 = vsel %vm370, %v352, 0
      %v432 = vsel %vm370, %v353, 0
      %v435 = vsel %vm370, %v354, 0
      %v438 = vsel %vm370, %v355, 0
      %v441 = vsel %vm370, %v356, 0
      %v444 = vsel %vm370, %v357, 0
      %v447 = vsel %vm370, %v358, 0
      %v450 = vsel %vm370, %v359, 0
      %v453 = vsel %vm370, %v360, 0
      %v456 = vsel %vm370, %v361, 0
      %v459 = vsel %vm370, %v362, 0
      %v462 = vsel %vm370, %v363, 0
      %v465 = vsel %vm370, %v364, 0
      %vm467 = vcmask 1043456
      %v469 = vsel %vm467, %v365, 0
      %471 = vmatpush.msra.mxu0 0.0
      %472 = vmatpush.msra.mxu0 0.0
      %473 = vmatpush.msra.mxu0 0.0
      %474 = vmatpush.msra.mxu0 0.0
      %475 = vmatpush.msra.mxu0 0.0
      %476 = vmatpush.msra.mxu0 0.0
      %477 = vmatpush.msra.mxu0 0.0
      %478 = vmatpush.msra.mxu0 0.0
      %479 = vmatpush.msra.mxu0 0.0
      %480 = vmatpush.msra.mxu0 0.0
      %481 = vmatpush.msra.mxu0 0.0
      %482 = vmatpush.msra.mxu0 0.0
      %483 = vmatpush.msra.mxu0 0.0
      %484 = vmatpush.msra.mxu0 0.0
      %485 = vmatpush.msra.mxu0 0.0
      %486 = vmatpush.msra.mxu0 %v469
      %487 = vmatmul.f32.gmra.mxu0 %v372
      %v488 = vpop.f32.mrf.mxu0
      %v489 = vadd.f32 %v368, %v488
      %490 = vmatmul.f32.gmra.mxu0 %v375
      %v491 = vpop.f32.mrf.mxu0
      %v492 = vadd.f32 %v368, %v491
      %493 = vmatmul.f32.gmra.mxu0 %v378
      %v494 = vpop.f32.mrf.mxu0
      %v495 = vadd.f32 %v368, %v494
      %496 = vmatmul.f32.gmra.mxu0 %v381
      %v497 = vpop.f32.mrf.mxu0
      %v498 = vadd.f32 %v368, %v497
      %499 = vmatmul.f32.gmra.mxu0 %v384
      %v500 = vpop.f32.mrf.mxu0
      %v501 = vadd.f32 %v368, %v500
      %502 = vmatmul.f32.gmra.mxu0 %v387
      %v503 = vpop.f32.mrf.mxu0
      %v504 = vadd.f32 %v368, %v503
      %505 = vmatmul.f32.gmra.mxu0 %v390
      %v506 = vpop.f32.mrf.mxu0
      %v507 = vadd.f32 %v368, %v506
      %508 = vmatmul.f32.gmra.mxu0 %v393
      %v509 = vpop.f32.mrf.mxu0
      %v510 = vadd.f32 %v368, %v509
      %511 = vmatmul.f32.gmra.mxu0 %v396
      %v512 = vpop.f32.mrf.mxu0
      %v513 = vadd.f32 %v368, %v512
      %514 = vmatmul.f32.gmra.mxu0 %v399
      %v515 = vpop.f32.mrf.mxu0
      %v516 = vadd.f32 %v368, %v515
      %517 = vmatmul.f32.gmra.mxu0 %v402
      %v518 = vpop.f32.mrf.mxu0
      %v519 = vadd.f32 %v368, %v518
      %520 = vmatmul.f32.gmra.mxu0 %v405
      %v521 = vpop.f32.mrf.mxu0
      %v522 = vadd.f32 %v368, %v521
      %523 = vmatmul.f32.gmra.mxu0 %v408
      %v524 = vpop.f32.mrf.mxu0
      %v525 = vadd.f32 %v368, %v524
      %526 = vmatmul.f32.gmra.mxu0 %v411
      %v527 = vpop.f32.mrf.mxu0
      %v528 = vadd.f32 %v368, %v527
      %529 = vmatmul.f32.gmra.mxu0 %v414
      %v530 = vpop.f32.mrf.mxu0
      %v531 = vadd.f32 %v368, %v530
      %532 = vmatmul.f32.gmra.mxu0 %v417
      %v533 = vpop.f32.mrf.mxu0
      %v534 = vadd.f32 %v368, %v533
      %535 = vmatmul.f32.gmra.mxu0 %v420
      %v536 = vpop.f32.mrf.mxu0
      %v537 = vadd.f32 %v368, %v536
      %538 = vmatmul.f32.gmra.mxu0 %v423
      %v539 = vpop.f32.mrf.mxu0
      %v540 = vadd.f32 %v368, %v539
      %541 = vmatmul.f32.gmra.mxu0 %v426
      %v542 = vpop.f32.mrf.mxu0
      %v543 = vadd.f32 %v368, %v542
      %544 = vmatmul.f32.gmra.mxu0 %v429
      %v545 = vpop.f32.mrf.mxu0
      %v546 = vadd.f32 %v368, %v545
      %547 = vmatmul.f32.gmra.mxu0 %v432
      %v548 = vpop.f32.mrf.mxu0
      %v549 = vadd.f32 %v368, %v548
      %550 = vmatmul.f32.gmra.mxu0 %v435
      %v551 = vpop.f32.mrf.mxu0
      %v552 = vadd.f32 %v368, %v551
      %553 = vmatmul.f32.gmra.mxu0 %v438
      %v554 = vpop.f32.mrf.mxu0
      %v555 = vadd.f32 %v368, %v554
      %556 = vmatmul.f32.gmra.mxu0 %v441
      %v557 = vpop.f32.mrf.mxu0
      %v558 = vadd.f32 %v368, %v557
      %559 = vmatmul.f32.gmra.mxu0 %v444
      %v560 = vpop.f32.mrf.mxu0
      %v561 = vadd.f32 %v368, %v560
      %562 = vmatmul.f32.gmra.mxu0 %v447
      %v563 = vpop.f32.mrf.mxu0
      %v564 = vadd.f32 %v368, %v563
      %565 = vmatmul.f32.gmra.mxu0 %v450
      %v566 = vpop.f32.mrf.mxu0
      %v567 = vadd.f32 %v368, %v566
      %568 = vmatmul.f32.gmra.mxu0 %v453
      %v569 = vpop.f32.mrf.mxu0
      %v570 = vadd.f32 %v368, %v569
      %571 = vmatmul.f32.gmra.mxu0 %v456
      %v572 = vpop.f32.mrf.mxu0
      %v573 = vadd.f32 %v368, %v572
      %574 = vmatmul.f32.gmra.mxu0 %v459
      %v575 = vpop.f32.mrf.mxu0
      %v576 = vadd.f32 %v368, %v575
      %577 = vmatmul.f32.gmra.mxu0 %v462
      %v578 = vpop.f32.mrf.mxu0
      %v579 = vadd.f32 %v368, %v578
      %580 = vmatmul.f32.gmra.mxu0 %v465
      %v581 = vpop.f32.mrf.mxu0
      %v582 = vadd.f32 %v368, %v581
      %583 = vdwg.mxu0
      %vm584 = vcmp.gt.f32.partialorder %v489, 0.0
      %vm585 = vcmp.gt.f32.partialorder %v492, 0.0
      %vm586 = vcmp.gt.f32.partialorder %v495, 0.0
      %vm587 = vcmp.gt.f32.partialorder %v498, 0.0
      %vm588 = vcmp.gt.f32.partialorder %v501, 0.0
      %vm589 = vcmp.gt.f32.partialorder %v504, 0.0
      %vm590 = vcmp.gt.f32.partialorder %v507, 0.0
      %vm591 = vcmp.gt.f32.partialorder %v510, 0.0
      %vm592 = vcmp.gt.f32.partialorder %v513, 0.0
      %vm593 = vcmp.gt.f32.partialorder %v516, 0.0
      %vm594 = vcmp.gt.f32.partialorder %v519, 0.0
      %vm595 = vcmp.gt.f32.partialorder %v522, 0.0
      %vm596 = vcmp.gt.f32.partialorder %v525, 0.0
      %vm597 = vcmp.gt.f32.partialorder %v528, 0.0
      %vm598 = vcmp.gt.f32.partialorder %v531, 0.0
      %vm599 = vcmp.gt.f32.partialorder %v534, 0.0
      %vm600 = vcmp.gt.f32.partialorder %v537, 0.0
      %vm601 = vcmp.gt.f32.partialorder %v540, 0.0
      %vm602 = vcmp.gt.f32.partialorder %v543, 0.0
      %vm603 = vcmp.gt.f32.partialorder %v546, 0.0
      %vm604 = vcmp.gt.f32.partialorder %v549, 0.0
      %vm605 = vcmp.gt.f32.partialorder %v552, 0.0
      %vm606 = vcmp.gt.f32.partialorder %v555, 0.0
      %vm607 = vcmp.gt.f32.partialorder %v558, 0.0
      %vm608 = vcmp.gt.f32.partialorder %v561, 0.0
      %vm609 = vcmp.gt.f32.partialorder %v564, 0.0
      %vm610 = vcmp.gt.f32.partialorder %v567, 0.0
      %vm611 = vcmp.gt.f32.partialorder %v570, 0.0
      %vm612 = vcmp.gt.f32.partialorder %v573, 0.0
      %vm613 = vcmp.gt.f32.partialorder %v576, 0.0
      %vm614 = vcmp.gt.f32.partialorder %v579, 0.0
      %vm615 = vcmp.gt.f32.partialorder %v582, 0.0
      %v616 = vmul.f32 %v489, 0.01
      %v617 = vmul.f32 %v492, 0.01
      %v618 = vmul.f32 %v495, 0.01
      %v619 = vmul.f32 %v498, 0.01
      %v620 = vmul.f32 %v501, 0.01
      %v621 = vmul.f32 %v504, 0.01
      %v622 = vmul.f32 %v507, 0.01
      %v623 = vmul.f32 %v510, 0.01
      %v624 = vmul.f32 %v513, 0.01
      %v625 = vmul.f32 %v516, 0.01
      %v626 = vmul.f32 %v519, 0.01
      %v627 = vmul.f32 %v522, 0.01
      %v628 = vmul.f32 %v525, 0.01
      %v629 = vmul.f32 %v528, 0.01
      %v630 = vmul.f32 %v531, 0.01
      %v631 = vmul.f32 %v534, 0.01
      %v632 = vmul.f32 %v537, 0.01
      %v633 = vmul.f32 %v540, 0.01
      %v634 = vmul.f32 %v543, 0.01
      %v635 = vmul.f32 %v546, 0.01
      %v636 = vmul.f32 %v549, 0.01
      %v637 = vmul.f32 %v552, 0.01
      %v638 = vmul.f32 %v555, 0.01
      %v639 = vmul.f32 %v558, 0.01
      %v640 = vmul.f32 %v561, 0.01
      %v641 = vmul.f32 %v564, 0.01
      %v642 = vmul.f32 %v567, 0.01
      %v643 = vmul.f32 %v570, 0.01
      %v644 = vmul.f32 %v573, 0.01
      %v645 = vmul.f32 %v576, 0.01
      %v646 = vmul.f32 %v579, 0.01
      %v647 = vmul.f32 %v582, 0.01
      %v648 = vsel %vm584, %v489, %v616
      %v649 = vsel %vm585, %v492, %v617
      %v650 = vsel %vm586, %v495, %v618
      %v651 = vsel %vm587, %v498, %v619
      %v652 = vsel %vm588, %v501, %v620
      %v653 = vsel %vm589, %v504, %v621
      %v654 = vsel %vm590, %v507, %v622
      %v655 = vsel %vm591, %v510, %v623
      %v656 = vsel %vm592, %v513, %v624
      %v657 = vsel %vm593, %v516, %v625
      %v658 = vsel %vm594, %v519, %v626
      %v659 = vsel %vm595, %v522, %v627
      %v660 = vsel %vm596, %v525, %v628
      %v661 = vsel %vm597, %v528, %v629
      %v662 = vsel %vm598, %v531, %v630
      %v663 = vsel %vm599, %v534, %v631
      %v664 = vsel %vm600, %v537, %v632
      %v665 = vsel %vm601, %v540, %v633
      %v666 = vsel %vm602, %v543, %v634
      %v667 = vsel %vm603, %v546, %v635
      %v668 = vsel %vm604, %v549, %v636
      %v669 = vsel %vm605, %v552, %v637
      %v670 = vsel %vm606, %v555, %v638
      %v671 = vsel %vm607, %v558, %v639
      %v672 = vsel %vm608, %v561, %v640
      %v673 = vsel %vm609, %v564, %v641
      %v674 = vsel %vm610, %v567, %v642
      %v675 = vsel %vm611, %v570, %v643
      %v676 = vsel %vm612, %v573, %v644
      %v677 = vsel %vm613, %v576, %v645
      %v678 = vsel %vm614, %v579, %v646
      %v679 = vsel %vm615, %v582, %v647
      %vm680 = vcmask 130048
      %681 = vst.msk [vmem:[#allocation2] sm:$0xff] %vm680, 0.0
      %682 = vst.msk [vmem:[#allocation2 + $0x8] sm:$0xff] %vm680, 0.0
      %683 = vst.msk [vmem:[#allocation2 + $0x10] sm:$0xff] %vm680, 0.0
      %684 = vst.msk [vmem:[#allocation2 + $0x18] sm:$0xff] %vm680, 0.0
      %685 = vst.msk [vmem:[#allocation2 + $0x20] sm:$0xff] %vm680, 0.0
      %686 = vst.msk [vmem:[#allocation2 + $0x28] sm:$0xff] %vm680, 0.0
      %687 = vst.msk [vmem:[#allocation2 + $0x30] sm:$0xff] %vm680, 0.0
      %688 = vst.msk [vmem:[#allocation2 + $0x38] sm:$0xff] %vm680, 0.0
      %689 = vst.msk [vmem:[#allocation2 + $0x40] sm:$0xff] %vm680, 0.0
      %690 = vst.msk [vmem:[#allocation2 + $0x48] sm:$0xff] %vm680, 0.0
      %691 = vst.msk [vmem:[#allocation2 + $0x50] sm:$0xff] %vm680, 0.0
      %692 = vst.msk [vmem:[#allocation2 + $0x58] sm:$0xff] %vm680, 0.0
      %693 = vst.msk [vmem:[#allocation2 + $0x60] sm:$0xff] %vm680, 0.0
      %694 = vst.msk [vmem:[#allocation2 + $0x68] sm:$0xff] %vm680, 0.0
      %695 = vst.msk [vmem:[#allocation2 + $0x70] sm:$0xff] %vm680, 0.0
      %696 = vst.msk [vmem:[#allocation2 + $0x78] sm:$0xff] %vm680, 0.0
      %697 = vst.msk [vmem:[#allocation2 + $0x80] sm:$0xff] %vm680, 0.0
      %698 = vst.msk [vmem:[#allocation2 + $0x88] sm:$0xff] %vm680, 0.0
      %699 = vst.msk [vmem:[#allocation2 + $0x90] sm:$0xff] %vm680, 0.0
      %700 = vst.msk [vmem:[#allocation2 + $0x98] sm:$0xff] %vm680, 0.0
      %701 = vst.msk [vmem:[#allocation2 + $0xa0] sm:$0xff] %vm680, 0.0
      %702 = vst.msk [vmem:[#allocation2 + $0xa8] sm:$0xff] %vm680, 0.0
      %703 = vst.msk [vmem:[#allocation2 + $0xb0] sm:$0xff] %vm680, 0.0
      %704 = vst.msk [vmem:[#allocation2 + $0xb8] sm:$0xff] %vm680, 0.0
      %705 = vst.msk [vmem:[#allocation2 + $0xc0] sm:$0xff] %vm680, 0.0
      %706 = vst.msk [vmem:[#allocation2 + $0xc8] sm:$0xff] %vm680, 0.0
      %707 = vst.msk [vmem:[#allocation2 + $0xd0] sm:$0xff] %vm680, 0.0
      %708 = vst.msk [vmem:[#allocation2 + $0xd8] sm:$0xff] %vm680, 0.0
      %709 = vst.msk [vmem:[#allocation2 + $0xe0] sm:$0xff] %vm680, 0.0
      %710 = vst.msk [vmem:[#allocation2 + $0xe8] sm:$0xff] %vm680, 0.0
      %711 = vst.msk [vmem:[#allocation2 + $0xf0] sm:$0xff] %vm680, 0.0
      %712 = vst.msk [vmem:[#allocation2 + $0xf8] sm:$0xff] %vm680, 0.0
      %713 = vst.msk [vmem:[#allocation2 + $0x100] sm:$0xff] %vm680, 0.0
      %714 = vst.msk [vmem:[#allocation2 + $0x108] sm:$0xff] %vm680, 0.0
      %715 = vst.msk [vmem:[#allocation2 + $0x110] sm:$0xff] %vm680, 0.0
      %716 = vst.msk [vmem:[#allocation2 + $0x118] sm:$0xff] %vm680, 0.0
      %717 = vst.msk [vmem:[#allocation2 + $0x120] sm:$0xff] %vm680, 0.0
      %718 = vst.msk [vmem:[#allocation2 + $0x128] sm:$0xff] %vm680, 0.0
      %719 = vst.msk [vmem:[#allocation2 + $0x130] sm:$0xff] %vm680, 0.0
      %720 = vst.msk [vmem:[#allocation2 + $0x138] sm:$0xff] %vm680, 0.0
      %721 = vst.msk [vmem:[#allocation2 + $0x140] sm:$0xff] %vm680, 0.0
      %722 = vst.msk [vmem:[#allocation2 + $0x148] sm:$0xff] %vm680, 0.0
      %723 = vst.msk [vmem:[#allocation2 + $0x150] sm:$0xff] %vm680, 0.0
      %724 = vst.msk [vmem:[#allocation2 + $0x158] sm:$0xff] %vm680, 0.0
      %725 = vst.msk [vmem:[#allocation2 + $0x160] sm:$0xff] %vm680, 0.0
      %726 = vst.msk [vmem:[#allocation2 + $0x168] sm:$0xff] %vm680, 0.0
      %727 = vst.msk [vmem:[#allocation2 + $0x170] sm:$0xff] %vm680, 0.0
      %728 = vst.msk [vmem:[#allocation2 + $0x178] sm:$0xff] %vm680, 0.0
      %729 = vst.msk [vmem:[#allocation2 + $0x180] sm:$0xff] %vm680, 0.0
      %730 = vst.msk [vmem:[#allocation2 + $0x188] sm:$0xff] %vm680, 0.0
      %731 = vst.msk [vmem:[#allocation2 + $0x190] sm:$0xff] %vm680, 0.0
      %732 = vst.msk [vmem:[#allocation2 + $0x198] sm:$0xff] %vm680, 0.0
      %733 = vst.msk [vmem:[#allocation2 + $0x1a0] sm:$0xff] %vm680, 0.0
      %734 = vst.msk [vmem:[#allocation2 + $0x1a8] sm:$0xff] %vm680, 0.0
      %735 = vst.msk [vmem:[#allocation2 + $0x1b0] sm:$0xff] %vm680, 0.0
      %736 = vst.msk [vmem:[#allocation2 + $0x1b8] sm:$0xff] %vm680, 0.0
      %737 = vst.msk [vmem:[#allocation2 + $0x1c0] sm:$0xff] %vm680, 0.0
      %738 = vst.msk [vmem:[#allocation2 + $0x1c8] sm:$0xff] %vm680, 0.0
      %739 = vst.msk [vmem:[#allocation2 + $0x1d0] sm:$0xff] %vm680, 0.0
      %740 = vst.msk [vmem:[#allocation2 + $0x1d8] sm:$0xff] %vm680, 0.0
      %741 = vst.msk [vmem:[#allocation2 + $0x1e0] sm:$0xff] %vm680, 0.0
      %742 = vst.msk [vmem:[#allocation2 + $0x1e8] sm:$0xff] %vm680, 0.0
      %743 = vst.msk [vmem:[#allocation2 + $0x1f0] sm:$0xff] %vm680, 0.0
      %744 = vst.msk [vmem:[#allocation2 + $0x1f8] sm:$0xff] %vm680, 0.0
      %745 = vst.msk [vmem:[#allocation2 + $0x200] sm:$0xff] %vm680, 0.0
      %746 = vst.msk [vmem:[#allocation2 + $0x208] sm:$0xff] %vm680, 0.0
      %747 = vst.msk [vmem:[#allocation2 + $0x210] sm:$0xff] %vm680, 0.0
      %748 = vst.msk [vmem:[#allocation2 + $0x218] sm:$0xff] %vm680, 0.0
      %749 = vst.msk [vmem:[#allocation2 + $0x220] sm:$0xff] %vm680, 0.0
      %750 = vst.msk [vmem:[#allocation2 + $0x228] sm:$0xff] %vm680, 0.0
      %751 = vst.msk [vmem:[#allocation2 + $0x230] sm:$0xff] %vm680, 0.0
      %752 = vst.msk [vmem:[#allocation2 + $0x238] sm:$0xff] %vm680, 0.0
      %s753 = scalar_lea.vmem [#allocation2], 32
      %754 = vst.msk [vmem:[%s753 + $0x8] sm:$0xff] %vm680, %v648
      %755 = vst.msk [vmem:[%s753 + $0x10] sm:$0xff] %vm680, %v649
      %756 = vst.msk [vmem:[%s753 + $0x28] sm:$0xff] %vm680, %v650
      %757 = vst.msk [vmem:[%s753 + $0x30] sm:$0xff] %vm680, %v651
      %758 = vst.msk [vmem:[%s753 + $0x48] sm:$0xff] %vm680, %v652
      %759 = vst.msk [vmem:[%s753 + $0x50] sm:$0xff] %vm680, %v653
      %760 = vst.msk [vmem:[%s753 + $0x68] sm:$0xff] %vm680, %v654
      %761 = vst.msk [vmem:[%s753 + $0x70] sm:$0xff] %vm680, %v655
      %762 = vst.msk [vmem:[%s753 + $0x88] sm:$0xff] %vm680, %v656
      %763 = vst.msk [vmem:[%s753 + $0x90] sm:$0xff] %vm680, %v657
      %764 = vst.msk [vmem:[%s753 + $0xa8] sm:$0xff] %vm680, %v658
      %765 = vst.msk [vmem:[%s753 + $0xb0] sm:$0xff] %vm680, %v659
      %766 = vst.msk [vmem:[%s753 + $0xc8] sm:$0xff] %vm680, %v660
      %767 = vst.msk [vmem:[%s753 + $0xd0] sm:$0xff] %vm680, %v661
      %768 = vst.msk [vmem:[%s753 + $0xe8] sm:$0xff] %vm680, %v662
      %769 = vst.msk [vmem:[%s753 + $0xf0] sm:$0xff] %vm680, %v663
      %770 = vst.msk [vmem:[%s753 + $0x108] sm:$0xff] %vm680, %v664
      %771 = vst.msk [vmem:[%s753 + $0x110] sm:$0xff] %vm680, %v665
      %772 = vst.msk [vmem:[%s753 + $0x128] sm:$0xff] %vm680, %v666
      %773 = vst.msk [vmem:[%s753 + $0x130] sm:$0xff] %vm680, %v667
      %774 = vst.msk [vmem:[%s753 + $0x148] sm:$0xff] %vm680, %v668
      %775 = vst.msk [vmem:[%s753 + $0x150] sm:$0xff] %vm680, %v669
      %776 = vst.msk [vmem:[%s753 + $0x168] sm:$0xff] %vm680, %v670
      %777 = vst.msk [vmem:[%s753 + $0x170] sm:$0xff] %vm680, %v671
      %778 = vst.msk [vmem:[%s753 + $0x188] sm:$0xff] %vm680, %v672
      %779 = vst.msk [vmem:[%s753 + $0x190] sm:$0xff] %vm680, %v673
      %780 = vst.msk [vmem:[%s753 + $0x1a8] sm:$0xff] %vm680, %v674
      %781 = vst.msk [vmem:[%s753 + $0x1b0] sm:$0xff] %vm680, %v675
      %782 = vst.msk [vmem:[%s753 + $0x1c8] sm:$0xff] %vm680, %v676
      %783 = vst.msk [vmem:[%s753 + $0x1d0] sm:$0xff] %vm680, %v677
      %784 = vst.msk [vmem:[%s753 + $0x1e8] sm:$0xff] %vm680, %v678
      %785 = vst.msk [vmem:[%s753 + $0x1f0] sm:$0xff] %vm680, %v679
      %v786 = vld [vmem:[#allocation2] sm:$0xff]
      %v787 = vld [vmem:[#allocation2 + $0x8] sm:$0xff]
      %v788 = vld [vmem:[#allocation2 + $0x10] sm:$0xff]
      %v789 = vld [vmem:[#allocation2 + $0x18] sm:$0xff]
      %v790 = vld [vmem:[#allocation2 + $0x20] sm:$0xff]
      %v791 = vld [vmem:[#allocation2 + $0x28] sm:$0xff]
      %v792 = vld [vmem:[#allocation2 + $0x30] sm:$0xff]
      %v793 = vld [vmem:[#allocation2 + $0x38] sm:$0xff]
      %v794 = vld [vmem:[#allocation2 + $0x40] sm:$0xff]
      %v795 = vld [vmem:[#allocation2 + $0x48] sm:$0xff]
      %v796 = vld [vmem:[#allocation2 + $0x50] sm:$0xff]
      %v797 = vld [vmem:[#allocation2 + $0x58] sm:$0xff]
      %v798 = vld [vmem:[#allocation2 + $0x60] sm:$0xff]
      %v799 = vld [vmem:[#allocation2 + $0x68] sm:$0xff]
      %v800 = vld [vmem:[#allocation2 + $0x70] sm:$0xff]
      %v801 = vld [vmem:[#allocation2 + $0x78] sm:$0xff]
      %v802 = vld [vmem:[#allocation2 + $0x80] sm:$0xff]
      %v803 = vld [vmem:[#allocation2 + $0x88] sm:$0xff]
      %v804 = vld [vmem:[#allocation2 + $0x90] sm:$0xff]
      %v805 = vld [vmem:[#allocation2 + $0x98] sm:$0xff]
      %v806 = vld [vmem:[#allocation2 + $0xa0] sm:$0xff]
      %v807 = vld [vmem:[#allocation2 + $0xa8] sm:$0xff]
      %v808 = vld [vmem:[#allocation2 + $0xb0] sm:$0xff]
      %v809 = vld [vmem:[#allocation2 + $0xb8] sm:$0xff]
      %v810 = vld [vmem:[#allocation2 + $0xc0] sm:$0xff]
      %v811 = vld [vmem:[#allocation2 + $0xc8] sm:$0xff]
      %v812 = vld [vmem:[#allocation2 + $0xd0] sm:$0xff]
      %v813 = vld [vmem:[#allocation2 + $0xd8] sm:$0xff]
      %v814 = vld [vmem:[#allocation2 + $0xe0] sm:$0xff]
      %v815 = vld [vmem:[#allocation2 + $0xe8] sm:$0xff]
      %v816 = vld [vmem:[#allocation2 + $0xf0] sm:$0xff]
      %v817 = vld [vmem:[#allocation2 + $0xf8] sm:$0xff]
      %v818 = vld [vmem:[#allocation2 + $0x100] sm:$0xff]
      %v819 = vld [vmem:[#allocation2 + $0x108] sm:$0xff]
      %v820 = vld [vmem:[#allocation2 + $0x110] sm:$0xff]
      %v821 = vld [vmem:[#allocation2 + $0x118] sm:$0xff]
      %v822 = vld [vmem:[#allocation2 + $0x120] sm:$0xff]
      %v823 = vld [vmem:[#allocation2 + $0x128] sm:$0xff]
      %v824 = vld [vmem:[#allocation2 + $0x130] sm:$0xff]
      %v825 = vld [vmem:[#allocation2 + $0x138] sm:$0xff]
      %v826 = vld [vmem:[#allocation2 + $0x140] sm:$0xff]
      %v827 = vld [vmem:[#allocation2 + $0x148] sm:$0xff]
      %v828 = vld [vmem:[#allocation2 + $0x150] sm:$0xff]
      %v829 = vld [vmem:[#allocation2 + $0x158] sm:$0xff]
      %v830 = vld [vmem:[#allocation2 + $0x160] sm:$0xff]
      %v831 = vld [vmem:[#allocation2 + $0x168] sm:$0xff]
      %v832 = vld [vmem:[#allocation2 + $0x170] sm:$0xff]
      %v833 = vld [vmem:[#allocation2 + $0x178] sm:$0xff]
      %v834 = vld [vmem:[#allocation2 + $0x180] sm:$0xff]
      %v835 = vld [vmem:[#allocation2 + $0x188] sm:$0xff]
      %v836 = vld [vmem:[#allocation2 + $0x190] sm:$0xff]
      %v837 = vld [vmem:[#allocation2 + $0x198] sm:$0xff]
      %v838 = vld [vmem:[#allocation2 + $0x1a0] sm:$0xff]
      %v839 = vld [vmem:[#allocation2 + $0x1a8] sm:$0xff]
      %v840 = vld [vmem:[#allocation2 + $0x1b0] sm:$0xff]
      %v841 = vld [vmem:[#allocation2 + $0x1b8] sm:$0xff]
      %v842 = vld [vmem:[#allocation2 + $0x1c0] sm:$0xff]
      %v843 = vld [vmem:[#allocation2 + $0x1c8] sm:$0xff]
      %v844 = vld [vmem:[#allocation2 + $0x1d0] sm:$0xff]
      %v845 = vld [vmem:[#allocation2 + $0x1d8] sm:$0xff]
      %v846 = vld [vmem:[#allocation2 + $0x1e0] sm:$0xff]
      %v847 = vld [vmem:[#allocation2 + $0x1e8] sm:$0xff]
      %v848 = vld [vmem:[#allocation2 + $0x1f0] sm:$0xff]
      %v849 = vld [vmem:[#allocation2 + $0x1f8] sm:$0xff]
      %v850 = vld [vmem:[#allocation2 + $0x200] sm:$0xff]
      %v851 = vld [vmem:[#allocation2 + $0x208] sm:$0xff]
      %v852 = vld [vmem:[#allocation2 + $0x210] sm:$0xff]
      %v853 = vld [vmem:[#allocation2 + $0x218] sm:$0xff]
      %v854 = vld [vmem:[#allocation2 + $0x220] sm:$0xff]
      %v855 = vld [vmem:[#allocation2 + $0x228] sm:$0xff]
      %v856 = vld [vmem:[#allocation2 + $0x230] sm:$0xff]
      %v857 = vld [vmem:[#allocation2 + $0x238] sm:$0xff]
      %v858 = vld [vmem:[%s3] sm:$0xff]
      %v859 = vld [vmem:[%s3 + $0x8] sm:$0x1]
      %v860 = vperm.slane %v858, 0
      %v861 = vmul.f32 %v786, %v860
      %v862 = vmul.f32 %v787, %v860
      %v863 = vmul.f32 %v788, %v860
      %v864 = vmul.f32 %v790, %v860
      %v865 = vmul.f32 %v791, %v860
      %v866 = vmul.f32 %v792, %v860
      %v867 = vmul.f32 %v794, %v860
      %v868 = vmul.f32 %v795, %v860
      %v869 = vmul.f32 %v796, %v860
      %v870 = vmul.f32 %v798, %v860
      %v871 = vmul.f32 %v799, %v860
      %v872 = vmul.f32 %v800, %v860
      %v873 = vmul.f32 %v802, %v860
      %v874 = vmul.f32 %v803, %v860
      %v875 = vmul.f32 %v804, %v860
      %v876 = vmul.f32 %v806, %v860
      %v877 = vmul.f32 %v807, %v860
      %v878 = vmul.f32 %v808, %v860
      %v879 = vmul.f32 %v810, %v860
      %v880 = vmul.f32 %v811, %v860
      %v881 = vmul.f32 %v812, %v860
      %v882 = vmul.f32 %v814, %v860
      %v883 = vmul.f32 %v815, %v860
      %v884 = vmul.f32 %v816, %v860
      %v885 = vmul.f32 %v818, %v860
      %v886 = vmul.f32 %v819, %v860
      %v887 = vmul.f32 %v820, %v860
      %v888 = vmul.f32 %v822, %v860
      %v889 = vmul.f32 %v823, %v860
      %v890 = vmul.f32 %v824, %v860
      %v891 = vmul.f32 %v826, %v860
      %v892 = vmul.f32 %v827, %v860
      %v893 = vmul.f32 %v828, %v860
      %v894 = vmul.f32 %v830, %v860
      %v895 = vmul.f32 %v831, %v860
      %v896 = vmul.f32 %v832, %v860
      %v897 = vmul.f32 %v834, %v860
      %v898 = vmul.f32 %v835, %v860
      %v899 = vmul.f32 %v836, %v860
      %v900 = vmul.f32 %v838, %v860
      %v901 = vmul.f32 %v839, %v860
      %v902 = vmul.f32 %v840, %v860
      %v903 = vmul.f32 %v842, %v860
      %v904 = vmul.f32 %v843, %v860
      %v905 = vmul.f32 %v844, %v860
      %v906 = vmul.f32 %v846, %v860
      %v907 = vmul.f32 %v847, %v860
      %v908 = vmul.f32 %v848, %v860
      %v909 = vperm.slane %v858, 1
      %v910 = vmul.f32 %v787, %v909
      %v911 = vmul.f32 %v788, %v909
      %v912 = vmul.f32 %v791, %v909
      %v913 = vmul.f32 %v792, %v909
      %v914 = vmul.f32 %v795, %v909
      %v915 = vmul.f32 %v796, %v909
      %v916 = vmul.f32 %v799, %v909
      %v917 = vmul.f32 %v800, %v909
      %v918 = vmul.f32 %v803, %v909
      %v919 = vmul.f32 %v804, %v909
      %v920 = vmul.f32 %v807, %v909
      %v921 = vmul.f32 %v808, %v909
      %v922 = vmul.f32 %v811, %v909
      %v923 = vmul.f32 %v812, %v909
      %v924 = vmul.f32 %v815, %v909
      %v925 = vmul.f32 %v816, %v909
      %v926 = vmul.f32 %v819, %v909
      %v927 = vmul.f32 %v820, %v909
      %v928 = vmul.f32 %v823, %v909
      %v929 = vmul.f32 %v824, %v909
      %v930 = vmul.f32 %v827, %v909
      %v931 = vmul.f32 %v828, %v909
      %v932 = vmul.f32 %v831, %v909
      %v933 = vmul.f32 %v832, %v909
      %v934 = vmul.f32 %v835, %v909
      %v935 = vmul.f32 %v836, %v909
      %v936 = vmul.f32 %v839, %v909
      %v937 = vmul.f32 %v840, %v909
      %v938 = vmul.f32 %v843, %v909
      %v939 = vmul.f32 %v844, %v909
      %v940 = vmul.f32 %v847, %v909
      %v941 = vmul.f32 %v848, %v909
      %v942 = vperm.slane %v858, 2
      %v943 = vmul.f32 %v787, %v942
      %v944 = vmul.f32 %v788, %v942
      %v945 = vmul.f32 %v789, %v942
      %v946 = vmul.f32 %v791, %v942
      %v947 = vmul.f32 %v792, %v942
      %v948 = vmul.f32 %v793, %v942
      %v949 = vmul.f32 %v795, %v942
      %v950 = vmul.f32 %v796, %v942
      %v951 = vmul.f32 %v797, %v942
      %v952 = vmul.f32 %v799, %v942
      %v953 = vmul.f32 %v800, %v942
      %v954 = vmul.f32 %v801, %v942
      %v955 = vmul.f32 %v803, %v942
      %v956 = vmul.f32 %v804, %v942
      %v957 = vmul.f32 %v805, %v942
      %v958 = vmul.f32 %v807, %v942
      %v959 = vmul.f32 %v808, %v942
      %v960 = vmul.f32 %v809, %v942
      %v961 = vmul.f32 %v811, %v942
      %v962 = vmul.f32 %v812, %v942
      %v963 = vmul.f32 %v813, %v942
      %v964 = vmul.f32 %v815, %v942
      %v965 = vmul.f32 %v816, %v942
      %v966 = vmul.f32 %v817, %v942
      %v967 = vmul.f32 %v819, %v942
      %v968 = vmul.f32 %v820, %v942
      %v969 = vmul.f32 %v821, %v942
      %v970 = vmul.f32 %v823, %v942
      %v971 = vmul.f32 %v824, %v942
      %v972 = vmul.f32 %v825, %v942
      %v973 = vmul.f32 %v827, %v942
      %v974 = vmul.f32 %v828, %v942
      %v975 = vmul.f32 %v829, %v942
      %v976 = vmul.f32 %v831, %v942
      %v977 = vmul.f32 %v832, %v942
      %v978 = vmul.f32 %v833, %v942
      %v979 = vmul.f32 %v835, %v942
      %v980 = vmul.f32 %v836, %v942
      %v981 = vmul.f32 %v837, %v942
      %v982 = vmul.f32 %v839, %v942
      %v983 = vmul.f32 %v840, %v942
      %v984 = vmul.f32 %v841, %v942
      %v985 = vmul.f32 %v843, %v942
      %v986 = vmul.f32 %v844, %v942
      %v987 = vmul.f32 %v845, %v942
      %v988 = vmul.f32 %v847, %v942
      %v989 = vmul.f32 %v848, %v942
      %v990 = vmul.f32 %v849, %v942
      %v991 = vperm.slane %v858, 3
      %v992 = vmul.f32 %v790, %v991
      %v993 = vmul.f32 %v791, %v991
      %v994 = vmul.f32 %v792, %v991
      %v995 = vmul.f32 %v794, %v991
      %v996 = vmul.f32 %v795, %v991
      %v997 = vmul.f32 %v796, %v991
      %v998 = vmul.f32 %v798, %v991
      %v999 = vmul.f32 %v799, %v991
      %v1000 = vmul.f32 %v800, %v991
      %v1001 = vmul.f32 %v802, %v991
      %v1002 = vmul.f32 %v803, %v991
      %v1003 = vmul.f32 %v804, %v991
      %v1004 = vmul.f32 %v806, %v991
      %v1005 = vmul.f32 %v807, %v991
      %v1006 = vmul.f32 %v808, %v991
      %v1007 = vmul.f32 %v810, %v991
      %v1008 = vmul.f32 %v811, %v991
      %v1009 = vmul.f32 %v812, %v991
      %v1010 = vmul.f32 %v814, %v991
      %v1011 = vmul.f32 %v815, %v991
      %v1012 = vmul.f32 %v816, %v991
      %v1013 = vmul.f32 %v818, %v991
      %v1014 = vmul.f32 %v819, %v991
      %v1015 = vmul.f32 %v820, %v991
      %v1016 = vmul.f32 %v822, %v991
      %v1017 = vmul.f32 %v823, %v991
      %v1018 = vmul.f32 %v824, %v991
      %v1019 = vmul.f32 %v826, %v991
      %v1020 = vmul.f32 %v827, %v991
      %v1021 = vmul.f32 %v828, %v991
      %v1022 = vmul.f32 %v830, %v991
      %v1023 = vmul.f32 %v831, %v991
      %v1024 = vmul.f32 %v832, %v991
      %v1025 = vmul.f32 %v834, %v991
      %v1026 = vmul.f32 %v835, %v991
      %v1027 = vmul.f32 %v836, %v991
      %v1028 = vmul.f32 %v838, %v991
      %v1029 = vmul.f32 %v839, %v991
      %v1030 = vmul.f32 %v840, %v991
      %v1031 = vmul.f32 %v842, %v991
      %v1032 = vmul.f32 %v843, %v991
      %v1033 = vmul.f32 %v844, %v991
      %v1034 = vmul.f32 %v846, %v991
      %v1035 = vmul.f32 %v847, %v991
      %v1036 = vmul.f32 %v848, %v991
      %v1037 = vmul.f32 %v850, %v991
      %v1038 = vmul.f32 %v851, %v991
      %v1039 = vmul.f32 %v852, %v991
      %v1040 = vperm.slane %v858, 4
      %v1041 = vmul.f32 %v791, %v1040
      %v1042 = vmul.f32 %v792, %v1040
      %v1043 = vmul.f32 %v795, %v1040
      %v1044 = vmul.f32 %v796, %v1040
      %v1045 = vmul.f32 %v799, %v1040
      %v1046 = vmul.f32 %v800, %v1040
      %v1047 = vmul.f32 %v803, %v1040
      %v1048 = vmul.f32 %v804, %v1040
      %v1049 = vmul.f32 %v807, %v1040
      %v1050 = vmul.f32 %v808, %v1040
      %v1051 = vmul.f32 %v811, %v1040
      %v1052 = vmul.f32 %v812, %v1040
      %v1053 = vmul.f32 %v815, %v1040
      %v1054 = vmul.f32 %v816, %v1040
      %v1055 = vmul.f32 %v819, %v1040
      %v1056 = vmul.f32 %v820, %v1040
      %v1057 = vmul.f32 %v823, %v1040
      %v1058 = vmul.f32 %v824, %v1040
      %v1059 = vmul.f32 %v827, %v1040
      %v1060 = vmul.f32 %v828, %v1040
      %v1061 = vmul.f32 %v831, %v1040
      %v1062 = vmul.f32 %v832, %v1040
      %v1063 = vmul.f32 %v835, %v1040
      %v1064 = vmul.f32 %v836, %v1040
      %v1065 = vmul.f32 %v839, %v1040
      %v1066 = vmul.f32 %v840, %v1040
      %v1067 = vmul.f32 %v843, %v1040
      %v1068 = vmul.f32 %v844, %v1040
      %v1069 = vmul.f32 %v847, %v1040
      %v1070 = vmul.f32 %v848, %v1040
      %v1071 = vmul.f32 %v851, %v1040
      %v1072 = vmul.f32 %v852, %v1040
      %v1073 = vperm.slane %v858, 5
      %v1074 = vmul.f32 %v791, %v1073
      %v1075 = vmul.f32 %v792, %v1073
      %v1076 = vmul.f32 %v793, %v1073
      %v1077 = vmul.f32 %v795, %v1073
      %v1078 = vmul.f32 %v796, %v1073
      %v1079 = vmul.f32 %v797, %v1073
      %v1080 = vmul.f32 %v799, %v1073
      %v1081 = vmul.f32 %v800, %v1073
      %v1082 = vmul.f32 %v801, %v1073
      %v1083 = vmul.f32 %v803, %v1073
      %v1084 = vmul.f32 %v804, %v1073
      %v1085 = vmul.f32 %v805, %v1073
      %v1086 = vmul.f32 %v807, %v1073
      %v1087 = vmul.f32 %v808, %v1073
      %v1088 = vmul.f32 %v809, %v1073
      %v1089 = vmul.f32 %v811, %v1073
      %v1090 = vmul.f32 %v812, %v1073
      %v1091 = vmul.f32 %v813, %v1073
      %v1092 = vmul.f32 %v815, %v1073
      %v1093 = vmul.f32 %v816, %v1073
      %v1094 = vmul.f32 %v817, %v1073
      %v1095 = vmul.f32 %v819, %v1073
      %v1096 = vmul.f32 %v820, %v1073
      %v1097 = vmul.f32 %v821, %v1073
      %v1098 = vmul.f32 %v823, %v1073
      %v1099 = vmul.f32 %v824, %v1073
      %v1100 = vmul.f32 %v825, %v1073
      %v1101 = vmul.f32 %v827, %v1073
      %v1102 = vmul.f32 %v828, %v1073
      %v1103 = vmul.f32 %v829, %v1073
      %v1104 = vmul.f32 %v831, %v1073
      %v1105 = vmul.f32 %v832, %v1073
      %v1106 = vmul.f32 %v833, %v1073
      %v1107 = vmul.f32 %v835, %v1073
      %v1108 = vmul.f32 %v836, %v1073
      %v1109 = vmul.f32 %v837, %v1073
      %v1110 = vmul.f32 %v839, %v1073
      %v1111 = vmul.f32 %v840, %v1073
      %v1112 = vmul.f32 %v841, %v1073
      %v1113 = vmul.f32 %v843, %v1073
      %v1114 = vmul.f32 %v844, %v1073
      %v1115 = vmul.f32 %v845, %v1073
      %v1116 = vmul.f32 %v847, %v1073
      %v1117 = vmul.f32 %v848, %v1073
      %v1118 = vmul.f32 %v849, %v1073
      %v1119 = vmul.f32 %v851, %v1073
      %v1120 = vmul.f32 %v852, %v1073
      %v1121 = vmul.f32 %v853, %v1073
      %v1122 = vperm.slane %v858, 6
      %v1123 = vmul.f32 %v794, %v1122
      %v1124 = vmul.f32 %v795, %v1122
      %v1125 = vmul.f32 %v796, %v1122
      %v1126 = vmul.f32 %v798, %v1122
      %v1127 = vmul.f32 %v799, %v1122
      %v1128 = vmul.f32 %v800, %v1122
      %v1129 = vmul.f32 %v802, %v1122
      %v1130 = vmul.f32 %v803, %v1122
      %v1131 = vmul.f32 %v804, %v1122
      %v1132 = vmul.f32 %v806, %v1122
      %v1133 = vmul.f32 %v807, %v1122
      %v1134 = vmul.f32 %v808, %v1122
      %v1135 = vmul.f32 %v810, %v1122
      %v1136 = vmul.f32 %v811, %v1122
      %v1137 = vmul.f32 %v812, %v1122
      %v1138 = vmul.f32 %v814, %v1122
      %v1139 = vmul.f32 %v815, %v1122
      %v1140 = vmul.f32 %v816, %v1122
      %v1141 = vmul.f32 %v818, %v1122
      %v1142 = vmul.f32 %v819, %v1122
      %v1143 = vmul.f32 %v820, %v1122
      %v1144 = vmul.f32 %v822, %v1122
      %v1145 = vmul.f32 %v823, %v1122
      %v1146 = vmul.f32 %v824, %v1122
      %v1147 = vmul.f32 %v826, %v1122
      %v1148 = vmul.f32 %v827, %v1122
      %v1149 = vmul.f32 %v828, %v1122
      %v1150 = vmul.f32 %v830, %v1122
      %v1151 = vmul.f32 %v831, %v1122
      %v1152 = vmul.f32 %v832, %v1122
      %v1153 = vmul.f32 %v834, %v1122
      %v1154 = vmul.f32 %v835, %v1122
      %v1155 = vmul.f32 %v836, %v1122
      %v1156 = vmul.f32 %v838, %v1122
      %v1157 = vmul.f32 %v839, %v1122
      %v1158 = vmul.f32 %v840, %v1122
      %v1159 = vmul.f32 %v842, %v1122
      %v1160 = vmul.f32 %v843, %v1122
      %v1161 = vmul.f32 %v844, %v1122
      %v1162 = vmul.f32 %v846, %v1122
      %v1163 = vmul.f32 %v847, %v1122
      %v1164 = vmul.f32 %v848, %v1122
      %v1165 = vmul.f32 %v850, %v1122
      %v1166 = vmul.f32 %v851, %v1122
      %v1167 = vmul.f32 %v852, %v1122
      %v1168 = vmul.f32 %v854, %v1122
      %v1169 = vmul.f32 %v855, %v1122
      %v1170 = vmul.f32 %v856, %v1122
      %v1171 = vperm.slane %v858, 7
      %v1172 = vmul.f32 %v795, %v1171
      %v1173 = vmul.f32 %v796, %v1171
      %v1174 = vmul.f32 %v799, %v1171
      %v1175 = vmul.f32 %v800, %v1171
      %v1176 = vmul.f32 %v803, %v1171
      %v1177 = vmul.f32 %v804, %v1171
      %v1178 = vmul.f32 %v807, %v1171
      %v1179 = vmul.f32 %v808, %v1171
      %v1180 = vmul.f32 %v811, %v1171
      %v1181 = vmul.f32 %v812, %v1171
      %v1182 = vmul.f32 %v815, %v1171
      %v1183 = vmul.f32 %v816, %v1171
      %v1184 = vmul.f32 %v819, %v1171
      %v1185 = vmul.f32 %v820, %v1171
      %v1186 = vmul.f32 %v823, %v1171
      %v1187 = vmul.f32 %v824, %v1171
      %v1188 = vmul.f32 %v827, %v1171
      %v1189 = vmul.f32 %v828, %v1171
      %v1190 = vmul.f32 %v831, %v1171
      %v1191 = vmul.f32 %v832, %v1171
      %v1192 = vmul.f32 %v835, %v1171
      %v1193 = vmul.f32 %v836, %v1171
      %v1194 = vmul.f32 %v839, %v1171
      %v1195 = vmul.f32 %v840, %v1171
      %v1196 = vmul.f32 %v843, %v1171
      %v1197 = vmul.f32 %v844, %v1171
      %v1198 = vmul.f32 %v847, %v1171
      %v1199 = vmul.f32 %v848, %v1171
      %v1200 = vmul.f32 %v851, %v1171
      %v1201 = vmul.f32 %v852, %v1171
      %v1202 = vmul.f32 %v855, %v1171
      %v1203 = vmul.f32 %v856, %v1171
      %v1204 = vperm.slane %v859, 0
      %v1205 = vmul.f32 %v795, %v1204
      %v1206 = vmul.f32 %v796, %v1204
      %v1207 = vmul.f32 %v797, %v1204
      %v1208 = vmul.f32 %v799, %v1204
      %v1209 = vmul.f32 %v800, %v1204
      %v1210 = vmul.f32 %v801, %v1204
      %v1211 = vmul.f32 %v803, %v1204
      %v1212 = vmul.f32 %v804, %v1204
      %v1213 = vmul.f32 %v805, %v1204
      %v1214 = vmul.f32 %v807, %v1204
      %v1215 = vmul.f32 %v808, %v1204
      %v1216 = vmul.f32 %v809, %v1204
      %v1217 = vmul.f32 %v811, %v1204
      %v1218 = vmul.f32 %v812, %v1204
      %v1219 = vmul.f32 %v813, %v1204
      %v1220 = vmul.f32 %v815, %v1204
      %v1221 = vmul.f32 %v816, %v1204
      %v1222 = vmul.f32 %v817, %v1204
      %v1223 = vmul.f32 %v819, %v1204
      %v1224 = vmul.f32 %v820, %v1204
      %v1225 = vmul.f32 %v821, %v1204
      %v1226 = vmul.f32 %v823, %v1204
      %v1227 = vmul.f32 %v824, %v1204
      %v1228 = vmul.f32 %v825, %v1204
      %v1229 = vmul.f32 %v827, %v1204
      %v1230 = vmul.f32 %v828, %v1204
      %v1231 = vmul.f32 %v829, %v1204
      %v1232 = vmul.f32 %v831, %v1204
      %v1233 = vmul.f32 %v832, %v1204
      %v1234 = vmul.f32 %v833, %v1204
      %v1235 = vmul.f32 %v835, %v1204
      %v1236 = vmul.f32 %v836, %v1204
      %v1237 = vmul.f32 %v837, %v1204
      %v1238 = vmul.f32 %v839, %v1204
      %v1239 = vmul.f32 %v840, %v1204
      %v1240 = vmul.f32 %v841, %v1204
      %v1241 = vmul.f32 %v843, %v1204
      %v1242 = vmul.f32 %v844, %v1204
      %v1243 = vmul.f32 %v845, %v1204
      %v1244 = vmul.f32 %v847, %v1204
      %v1245 = vmul.f32 %v848, %v1204
      %v1246 = vmul.f32 %v849, %v1204
      %v1247 = vmul.f32 %v851, %v1204
      %v1248 = vmul.f32 %v852, %v1204
      %v1249 = vmul.f32 %v853, %v1204
      %v1250 = vmul.f32 %v855, %v1204
      %v1251 = vmul.f32 %v856, %v1204
      %v1252 = vmul.f32 %v857, %v1204
      %vm1285 = vcmask 1046528
      %v1286 = vrot.slane %v910, 1
      %v1287 = vrot.slane %v911, 1
      %v1288 = vsel %vm1285, %v1286, %v1287
      %v1289 = vrot.slane %v912, 1
      %v1290 = vrot.slane %v913, 1
      %v1291 = vsel %vm1285, %v1289, %v1290
      %v1292 = vrot.slane %v914, 1
      %v1293 = vrot.slane %v915, 1
      %v1294 = vsel %vm1285, %v1292, %v1293
      %v1295 = vrot.slane %v916, 1
      %v1296 = vrot.slane %v917, 1
      %v1297 = vsel %vm1285, %v1295, %v1296
      %v1298 = vrot.slane %v918, 1
      %v1299 = vrot.slane %v919, 1
      %v1300 = vsel %vm1285, %v1298, %v1299
      %v1301 = vrot.slane %v920, 1
      %v1302 = vrot.slane %v921, 1
      %v1303 = vsel %vm1285, %v1301, %v1302
      %v1304 = vrot.slane %v922, 1
      %v1305 = vrot.slane %v923, 1
      %v1306 = vsel %vm1285, %v1304, %v1305
      %v1307 = vrot.slane %v924, 1
      %v1308 = vrot.slane %v925, 1
      %v1309 = vsel %vm1285, %v1307, %v1308
      %v1310 = vrot.slane %v926, 1
      %v1311 = vrot.slane %v927, 1
      %v1312 = vsel %vm1285, %v1310, %v1311
      %v1313 = vrot.slane %v928, 1
      %v1314 = vrot.slane %v929, 1
      %v1315 = vsel %vm1285, %v1313, %v1314
      %v1316 = vrot.slane %v930, 1
      %v1317 = vrot.slane %v931, 1
      %v1318 = vsel %vm1285, %v1316, %v1317
      %v1319 = vrot.slane %v932, 1
      %v1320 = vrot.slane %v933, 1
      %v1321 = vsel %vm1285, %v1319, %v1320
      %v1322 = vrot.slane %v934, 1
      %v1323 = vrot.slane %v935, 1
      %v1324 = vsel %vm1285, %v1322, %v1323
      %v1325 = vrot.slane %v936, 1
      %v1326 = vrot.slane %v937, 1
      %v1327 = vsel %vm1285, %v1325, %v1326
      %v1328 = vrot.slane %v938, 1
      %v1329 = vrot.slane %v939, 1
      %v1330 = vsel %vm1285, %v1328, %v1329
      %v1331 = vrot.slane %v940, 1
      %v1332 = vrot.slane %v941, 1
      %v1333 = vsel %vm1285, %v1331, %v1332
      %v1382 = vadd.f32 %v861, %v1286
      %v1383 = vadd.f32 %v862, %v1288
      %v1384 = vadd.f32 %v863, %v1287
      %v1385 = vadd.f32 %v864, %v1289
      %v1386 = vadd.f32 %v865, %v1291
      %v1387 = vadd.f32 %v866, %v1290
      %v1388 = vadd.f32 %v867, %v1292
      %v1389 = vadd.f32 %v868, %v1294
      %v1390 = vadd.f32 %v869, %v1293
      %v1391 = vadd.f32 %v870, %v1295
      %v1392 = vadd.f32 %v871, %v1297
      %v1393 = vadd.f32 %v872, %v1296
      %v1394 = vadd.f32 %v873, %v1298
      %v1395 = vadd.f32 %v874, %v1300
      %v1396 = vadd.f32 %v875, %v1299
      %v1397 = vadd.f32 %v876, %v1301
      %v1398 = vadd.f32 %v877, %v1303
      %v1399 = vadd.f32 %v878, %v1302
      %v1400 = vadd.f32 %v879, %v1304
      %v1401 = vadd.f32 %v880, %v1306
      %v1402 = vadd.f32 %v881, %v1305
      %v1403 = vadd.f32 %v882, %v1307
      %v1404 = vadd.f32 %v883, %v1309
      %v1405 = vadd.f32 %v884, %v1308
      %v1406 = vadd.f32 %v885, %v1310
      %v1407 = vadd.f32 %v886, %v1312
      %v1408 = vadd.f32 %v887, %v1311
      %v1409 = vadd.f32 %v888, %v1313
      %v1410 = vadd.f32 %v889, %v1315
      %v1411 = vadd.f32 %v890, %v1314
      %v1412 = vadd.f32 %v891, %v1316
      %v1413 = vadd.f32 %v892, %v1318
      %v1414 = vadd.f32 %v893, %v1317
      %v1415 = vadd.f32 %v894, %v1319
      %v1416 = vadd.f32 %v895, %v1321
      %v1417 = vadd.f32 %v896, %v1320
      %v1418 = vadd.f32 %v897, %v1322
      %v1419 = vadd.f32 %v898, %v1324
      %v1420 = vadd.f32 %v899, %v1323
      %v1421 = vadd.f32 %v900, %v1325
      %v1422 = vadd.f32 %v901, %v1327
      %v1423 = vadd.f32 %v902, %v1326
      %v1424 = vadd.f32 %v903, %v1328
      %v1425 = vadd.f32 %v904, %v1330
      %v1426 = vadd.f32 %v905, %v1329
      %v1427 = vadd.f32 %v906, %v1331
      %v1428 = vadd.f32 %v907, %v1333
      %v1429 = vadd.f32 %v908, %v1332
      %vm1478 = vcmask 1041408
      %v1479 = vrot.slane %v992, 6
      %v1480 = vrot.slane %v993, 6
      %v1481 = vsel %vm1478, %v1479, %v1480
      %v1482 = vrot.slane %v994, 6
      %v1483 = vsel %vm1478, %v1480, %v1482
      %v1484 = vrot.slane %v995, 6
      %v1485 = vrot.slane %v996, 6
      %v1486 = vsel %vm1478, %v1484, %v1485
      %v1487 = vrot.slane %v997, 6
      %v1488 = vsel %vm1478, %v1485, %v1487
      %v1489 = vrot.slane %v998, 6
      %v1490 = vrot.slane %v999, 6
      %v1491 = vsel %vm1478, %v1489, %v1490
      %v1492 = vrot.slane %v1000, 6
      %v1493 = vsel %vm1478, %v1490, %v1492
      %v1494 = vrot.slane %v1001, 6
      %v1495 = vrot.slane %v1002, 6
      %v1496 = vsel %vm1478, %v1494, %v1495
      %v1497 = vrot.slane %v1003, 6
      %v1498 = vsel %vm1478, %v1495, %v1497
      %v1499 = vrot.slane %v1004, 6
      %v1500 = vrot.slane %v1005, 6
      %v1501 = vsel %vm1478, %v1499, %v1500
      %v1502 = vrot.slane %v1006, 6
      %v1503 = vsel %vm1478, %v1500, %v1502
      %v1504 = vrot.slane %v1007, 6
      %v1505 = vrot.slane %v1008, 6
      %v1506 = vsel %vm1478, %v1504, %v1505
      %v1507 = vrot.slane %v1009, 6
      %v1508 = vsel %vm1478, %v1505, %v1507
      %v1509 = vrot.slane %v1010, 6
      %v1510 = vrot.slane %v1011, 6
      %v1511 = vsel %vm1478, %v1509, %v1510
      %v1512 = vrot.slane %v1012, 6
      %v1513 = vsel %vm1478, %v1510, %v1512
      %v1514 = vrot.slane %v1013, 6
      %v1515 = vrot.slane %v1014, 6
      %v1516 = vsel %vm1478, %v1514, %v1515
      %v1517 = vrot.slane %v1015, 6
      %v1518 = vsel %vm1478, %v1515, %v1517
      %v1519 = vrot.slane %v1016, 6
      %v1520 = vrot.slane %v1017, 6
      %v1521 = vsel %vm1478, %v1519, %v1520
      %v1522 = vrot.slane %v1018, 6
      %v1523 = vsel %vm1478, %v1520, %v1522
      %v1524 = vrot.slane %v1019, 6
      %v1525 = vrot.slane %v1020, 6
      %v1526 = vsel %vm1478, %v1524, %v1525
      %v1527 = vrot.slane %v1021, 6
      %v1528 = vsel %vm1478, %v1525, %v1527
      %v1529 = vrot.slane %v1022, 6
      %v1530 = vrot.slane %v1023, 6
      %v1531 = vsel %vm1478, %v1529, %v1530
      %v1532 = vrot.slane %v1024, 6
      %v1533 = vsel %vm1478, %v1530, %v1532
      %v1534 = vrot.slane %v1025, 6
      %v1535 = vrot.slane %v1026, 6
      %v1536 = vsel %vm1478, %v1534, %v1535
      %v1537 = vrot.slane %v1027, 6
      %v1538 = vsel %vm1478, %v1535, %v1537
      %v1539 = vrot.slane %v1028, 6
      %v1540 = vrot.slane %v1029, 6
      %v1541 = vsel %vm1478, %v1539, %v1540
      %v1542 = vrot.slane %v1030, 6
      %v1543 = vsel %vm1478, %v1540, %v1542
      %v1544 = vrot.slane %v1031, 6
      %v1545 = vrot.slane %v1032, 6
      %v1546 = vsel %vm1478, %v1544, %v1545
      %v1547 = vrot.slane %v1033, 6
      %v1548 = vsel %vm1478, %v1545, %v1547
      %v1549 = vrot.slane %v1034, 6
      %v1550 = vrot.slane %v1035, 6
      %v1551 = vsel %vm1478, %v1549, %v1550
      %v1552 = vrot.slane %v1036, 6
      %v1553 = vsel %vm1478, %v1550, %v1552
      %v1554 = vrot.slane %v1037, 6
      %v1555 = vrot.slane %v1038, 6
      %v1556 = vsel %vm1478, %v1554, %v1555
      %v1557 = vrot.slane %v1039, 6
      %v1558 = vsel %vm1478, %v1555, %v1557
      %v1607 = vadd.f32 %v943, %v1481
      %v1608 = vadd.f32 %v944, %v1483
      %v1609 = vadd.f32 %v945, %v1482
      %v1610 = vadd.f32 %v946, %v1486
      %v1611 = vadd.f32 %v947, %v1488
      %v1612 = vadd.f32 %v948, %v1487
      %v1613 = vadd.f32 %v949, %v1491
      %v1614 = vadd.f32 %v950, %v1493
      %v1615 = vadd.f32 %v951, %v1492
      %v1616 = vadd.f32 %v952, %v1496
      %v1617 = vadd.f32 %v953, %v1498
      %v1618 = vadd.f32 %v954, %v1497
      %v1619 = vadd.f32 %v955, %v1501
      %v1620 = vadd.f32 %v956, %v1503
      %v1621 = vadd.f32 %v957, %v1502
      %v1622 = vadd.f32 %v958, %v1506
      %v1623 = vadd.f32 %v959, %v1508
      %v1624 = vadd.f32 %v960, %v1507
      %v1625 = vadd.f32 %v961, %v1511
      %v1626 = vadd.f32 %v962, %v1513
      %v1627 = vadd.f32 %v963, %v1512
      %v1628 = vadd.f32 %v964, %v1516
      %v1629 = vadd.f32 %v965, %v1518
      %v1630 = vadd.f32 %v966, %v1517
      %v1631 = vadd.f32 %v967, %v1521
      %v1632 = vadd.f32 %v968, %v1523
      %v1633 = vadd.f32 %v969, %v1522
      %v1634 = vadd.f32 %v970, %v1526
      %v1635 = vadd.f32 %v971, %v1528
      %v1636 = vadd.f32 %v972, %v1527
      %v1637 = vadd.f32 %v973, %v1531
      %v1638 = vadd.f32 %v974, %v1533
      %v1639 = vadd.f32 %v975, %v1532
      %v1640 = vadd.f32 %v976, %v1536
      %v1641 = vadd.f32 %v977, %v1538
      %v1642 = vadd.f32 %v978, %v1537
      %v1643 = vadd.f32 %v979, %v1541
      %v1644 = vadd.f32 %v980, %v1543
      %v1645 = vadd.f32 %v981, %v1542
      %v1646 = vadd.f32 %v982, %v1546
      %v1647 = vadd.f32 %v983, %v1548
      %v1648 = vadd.f32 %v984, %v1547
      %v1649 = vadd.f32 %v985, %v1551
      %v1650 = vadd.f32 %v986, %v1553
      %v1651 = vadd.f32 %v987, %v1552
      %v1652 = vadd.f32 %v988, %v1556
      %v1653 = vadd.f32 %v989, %v1558
      %v1654 = vadd.f32 %v990, %v1557
      %v1703 = vrot.slane %v1074, 1
      %v1704 = vrot.slane %v1075, 1
      %v1705 = vsel %vm1285, %v1703, %v1704
      %v1706 = vrot.slane %v1076, 1
      %v1707 = vsel %vm1285, %v1704, %v1706
      %v1708 = vrot.slane %v1077, 1
      %v1709 = vrot.slane %v1078, 1
      %v1710 = vsel %vm1285, %v1708, %v1709
      %v1711 = vrot.slane %v1079, 1
      %v1712 = vsel %vm1285, %v1709, %v1711
      %v1713 = vrot.slane %v1080, 1
      %v1714 = vrot.slane %v1081, 1
      %v1715 = vsel %vm1285, %v1713, %v1714
      %v1716 = vrot.slane %v1082, 1
      %v1717 = vsel %vm1285, %v1714, %v1716
      %v1718 = vrot.slane %v1083, 1
      %v1719 = vrot.slane %v1084, 1
      %v1720 = vsel %vm1285, %v1718, %v1719
      %v1721 = vrot.slane %v1085, 1
      %v1722 = vsel %vm1285, %v1719, %v1721
      %v1723 = vrot.slane %v1086, 1
      %v1724 = vrot.slane %v1087, 1
      %v1725 = vsel %vm1285, %v1723, %v1724
      %v1726 = vrot.slane %v1088, 1
      %v1727 = vsel %vm1285, %v1724, %v1726
      %v1728 = vrot.slane %v1089, 1
      %v1729 = vrot.slane %v1090, 1
      %v1730 = vsel %vm1285, %v1728, %v1729
      %v1731 = vrot.slane %v1091, 1
      %v1732 = vsel %vm1285, %v1729, %v1731
      %v1733 = vrot.slane %v1092, 1
      %v1734 = vrot.slane %v1093, 1
      %v1735 = vsel %vm1285, %v1733, %v1734
      %v1736 = vrot.slane %v1094, 1
      %v1737 = vsel %vm1285, %v1734, %v1736
      %v1738 = vrot.slane %v1095, 1
      %v1739 = vrot.slane %v1096, 1
      %v1740 = vsel %vm1285, %v1738, %v1739
      %v1741 = vrot.slane %v1097, 1
      %v1742 = vsel %vm1285, %v1739, %v1741
      %v1743 = vrot.slane %v1098, 1
      %v1744 = vrot.slane %v1099, 1
      %v1745 = vsel %vm1285, %v1743, %v1744
      %v1746 = vrot.slane %v1100, 1
      %v1747 = vsel %vm1285, %v1744, %v1746
      %v1748 = vrot.slane %v1101, 1
      %v1749 = vrot.slane %v1102, 1
      %v1750 = vsel %vm1285, %v1748, %v1749
      %v1751 = vrot.slane %v1103, 1
      %v1752 = vsel %vm1285, %v1749, %v1751
      %v1753 = vrot.slane %v1104, 1
      %v1754 = vrot.slane %v1105, 1
      %v1755 = vsel %vm1285, %v1753, %v1754
      %v1756 = vrot.slane %v1106, 1
      %v1757 = vsel %vm1285, %v1754, %v1756
      %v1758 = vrot.slane %v1107, 1
      %v1759 = vrot.slane %v1108, 1
      %v1760 = vsel %vm1285, %v1758, %v1759
      %v1761 = vrot.slane %v1109, 1
      %v1762 = vsel %vm1285, %v1759, %v1761
      %v1763 = vrot.slane %v1110, 1
      %v1764 = vrot.slane %v1111, 1
      %v1765 = vsel %vm1285, %v1763, %v1764
      %v1766 = vrot.slane %v1112, 1
      %v1767 = vsel %vm1285, %v1764, %v1766
      %v1768 = vrot.slane %v1113, 1
      %v1769 = vrot.slane %v1114, 1
      %v1770 = vsel %vm1285, %v1768, %v1769
      %v1771 = vrot.slane %v1115, 1
      %v1772 = vsel %vm1285, %v1769, %v1771
      %v1773 = vrot.slane %v1116, 1
      %v1774 = vrot.slane %v1117, 1
      %v1775 = vsel %vm1285, %v1773, %v1774
      %v1776 = vrot.slane %v1118, 1
      %v1777 = vsel %vm1285, %v1774, %v1776
      %v1778 = vrot.slane %v1119, 1
      %v1779 = vrot.slane %v1120, 1
      %v1780 = vsel %vm1285, %v1778, %v1779
      %v1781 = vrot.slane %v1121, 1
      %v1782 = vsel %vm1285, %v1779, %v1781
      %v1815 = vadd.f32 %v1041, %v1705
      %v1816 = vadd.f32 %v1042, %v1707
      %v1817 = vadd.f32 %v1043, %v1710
      %v1818 = vadd.f32 %v1044, %v1712
      %v1819 = vadd.f32 %v1045, %v1715
      %v1820 = vadd.f32 %v1046, %v1717
      %v1821 = vadd.f32 %v1047, %v1720
      %v1822 = vadd.f32 %v1048, %v1722
      %v1823 = vadd.f32 %v1049, %v1725
      %v1824 = vadd.f32 %v1050, %v1727
      %v1825 = vadd.f32 %v1051, %v1730
      %v1826 = vadd.f32 %v1052, %v1732
      %v1827 = vadd.f32 %v1053, %v1735
      %v1828 = vadd.f32 %v1054, %v1737
      %v1829 = vadd.f32 %v1055, %v1740
      %v1830 = vadd.f32 %v1056, %v1742
      %v1831 = vadd.f32 %v1057, %v1745
      %v1832 = vadd.f32 %v1058, %v1747
      %v1833 = vadd.f32 %v1059, %v1750
      %v1834 = vadd.f32 %v1060, %v1752
      %v1835 = vadd.f32 %v1061, %v1755
      %v1836 = vadd.f32 %v1062, %v1757
      %v1837 = vadd.f32 %v1063, %v1760
      %v1838 = vadd.f32 %v1064, %v1762
      %v1839 = vadd.f32 %v1065, %v1765
      %v1840 = vadd.f32 %v1066, %v1767
      %v1841 = vadd.f32 %v1067, %v1770
      %v1842 = vadd.f32 %v1068, %v1772
      %v1843 = vadd.f32 %v1069, %v1775
      %v1844 = vadd.f32 %v1070, %v1777
      %v1845 = vadd.f32 %v1071, %v1780
      %v1846 = vadd.f32 %v1072, %v1782
      %v1879 = vrot.slane %v1172, 1
      %v1880 = vrot.slane %v1173, 1
      %v1881 = vsel %vm1285, %v1879, %v1880
      %v1882 = vrot.slane %v1174, 1
      %v1883 = vrot.slane %v1175, 1
      %v1884 = vsel %vm1285, %v1882, %v1883
      %v1885 = vrot.slane %v1176, 1
      %v1886 = vrot.slane %v1177, 1
      %v1887 = vsel %vm1285, %v1885, %v1886
      %v1888 = vrot.slane %v1178, 1
      %v1889 = vrot.slane %v1179, 1
      %v1890 = vsel %vm1285, %v1888, %v1889
      %v1891 = vrot.slane %v1180, 1
      %v1892 = vrot.slane %v1181, 1
      %v1893 = vsel %vm1285, %v1891, %v1892
      %v1894 = vrot.slane %v1182, 1
      %v1895 = vrot.slane %v1183, 1
      %v1896 = vsel %vm1285, %v1894, %v1895
      %v1897 = vrot.slane %v1184, 1
      %v1898 = vrot.slane %v1185, 1
      %v1899 = vsel %vm1285, %v1897, %v1898
      %v1900 = vrot.slane %v1186, 1
      %v1901 = vrot.slane %v1187, 1
      %v1902 = vsel %vm1285, %v1900, %v1901
      %v1903 = vrot.slane %v1188, 1
      %v1904 = vrot.slane %v1189, 1
      %v1905 = vsel %vm1285, %v1903, %v1904
      %v1906 = vrot.slane %v1190, 1
      %v1907 = vrot.slane %v1191, 1
      %v1908 = vsel %vm1285, %v1906, %v1907
      %v1909 = vrot.slane %v1192, 1
      %v1910 = vrot.slane %v1193, 1
      %v1911 = vsel %vm1285, %v1909, %v1910
      %v1912 = vrot.slane %v1194, 1
      %v1913 = vrot.slane %v1195, 1
      %v1914 = vsel %vm1285, %v1912, %v1913
      %v1915 = vrot.slane %v1196, 1
      %v1916 = vrot.slane %v1197, 1
      %v1917 = vsel %vm1285, %v1915, %v1916
      %v1918 = vrot.slane %v1198, 1
      %v1919 = vrot.slane %v1199, 1
      %v1920 = vsel %vm1285, %v1918, %v1919
      %v1921 = vrot.slane %v1200, 1
      %v1922 = vrot.slane %v1201, 1
      %v1923 = vsel %vm1285, %v1921, %v1922
      %v1924 = vrot.slane %v1202, 1
      %v1925 = vrot.slane %v1203, 1
      %v1926 = vsel %vm1285, %v1924, %v1925
      %v1975 = vadd.f32 %v1123, %v1879
      %v1976 = vadd.f32 %v1124, %v1881
      %v1977 = vadd.f32 %v1125, %v1880
      %v1978 = vadd.f32 %v1126, %v1882
      %v1979 = vadd.f32 %v1127, %v1884
      %v1980 = vadd.f32 %v1128, %v1883
      %v1981 = vadd.f32 %v1129, %v1885
      %v1982 = vadd.f32 %v1130, %v1887
      %v1983 = vadd.f32 %v1131, %v1886
      %v1984 = vadd.f32 %v1132, %v1888
      %v1985 = vadd.f32 %v1133, %v1890
      %v1986 = vadd.f32 %v1134, %v1889
      %v1987 = vadd.f32 %v1135, %v1891
      %v1988 = vadd.f32 %v1136, %v1893
      %v1989 = vadd.f32 %v1137, %v1892
      %v1990 = vadd.f32 %v1138, %v1894
      %v1991 = vadd.f32 %v1139, %v1896
      %v1992 = vadd.f32 %v1140, %v1895
      %v1993 = vadd.f32 %v1141, %v1897
      %v1994 = vadd.f32 %v1142, %v1899
      %v1995 = vadd.f32 %v1143, %v1898
      %v1996 = vadd.f32 %v1144, %v1900
      %v1997 = vadd.f32 %v1145, %v1902
      %v1998 = vadd.f32 %v1146, %v1901
      %v1999 = vadd.f32 %v1147, %v1903
      %v2000 = vadd.f32 %v1148, %v1905
      %v2001 = vadd.f32 %v1149, %v1904
      %v2002 = vadd.f32 %v1150, %v1906
      %v2003 = vadd.f32 %v1151, %v1908
      %v2004 = vadd.f32 %v1152, %v1907
      %v2005 = vadd.f32 %v1153, %v1909
      %v2006 = vadd.f32 %v1154, %v1911
      %v2007 = vadd.f32 %v1155, %v1910
      %v2008 = vadd.f32 %v1156, %v1912
      %v2009 = vadd.f32 %v1157, %v1914
      %v2010 = vadd.f32 %v1158, %v1913
      %v2011 = vadd.f32 %v1159, %v1915
      %v2012 = vadd.f32 %v1160, %v1917
      %v2013 = vadd.f32 %v1161, %v1916
      %v2014 = vadd.f32 %v1162, %v1918
      %v2015 = vadd.f32 %v1163, %v1920
      %v2016 = vadd.f32 %v1164, %v1919
      %v2017 = vadd.f32 %v1165, %v1921
      %v2018 = vadd.f32 %v1166, %v1923
      %v2019 = vadd.f32 %v1167, %v1922
      %v2020 = vadd.f32 %v1168, %v1924
      %v2021 = vadd.f32 %v1169, %v1926
      %v2022 = vadd.f32 %v1170, %v1925
      %vm2071 = vcmask 1045504
      %v2072 = vrot.slane %v1607, 2
      %v2073 = vrot.slane %v1608, 2
      %v2074 = vsel %vm2071, %v2072, %v2073
      %v2075 = vrot.slane %v1609, 2
      %v2076 = vsel %vm2071, %v2073, %v2075
      %v2077 = vrot.slane %v1610, 2
      %v2078 = vrot.slane %v1611, 2
      %v2079 = vsel %vm2071, %v2077, %v2078
      %v2080 = vrot.slane %v1612, 2
      %v2081 = vsel %vm2071, %v2078, %v2080
      %v2082 = vrot.slane %v1613, 2
      %v2083 = vrot.slane %v1614, 2
      %v2084 = vsel %vm2071, %v2082, %v2083
      %v2085 = vrot.slane %v1615, 2
      %v2086 = vsel %vm2071, %v2083, %v2085
      %v2087 = vrot.slane %v1616, 2
      %v2088 = vrot.slane %v1617, 2
      %v2089 = vsel %vm2071, %v2087, %v2088
      %v2090 = vrot.slane %v1618, 2
      %v2091 = vsel %vm2071, %v2088, %v2090
      %v2092 = vrot.slane %v1619, 2
      %v2093 = vrot.slane %v1620, 2
      %v2094 = vsel %vm2071, %v2092, %v2093
      %v2095 = vrot.slane %v1621, 2
      %v2096 = vsel %vm2071, %v2093, %v2095
      %v2097 = vrot.slane %v1622, 2
      %v2098 = vrot.slane %v1623, 2
      %v2099 = vsel %vm2071, %v2097, %v2098
      %v2100 = vrot.slane %v1624, 2
      %v2101 = vsel %vm2071, %v2098, %v2100
      %v2102 = vrot.slane %v1625, 2
      %v2103 = vrot.slane %v1626, 2
      %v2104 = vsel %vm2071, %v2102, %v2103
      %v2105 = vrot.slane %v1627, 2
      %v2106 = vsel %vm2071, %v2103, %v2105
      %v2107 = vrot.slane %v1628, 2
      %v2108 = vrot.slane %v1629, 2
      %v2109 = vsel %vm2071, %v2107, %v2108
      %v2110 = vrot.slane %v1630, 2
      %v2111 = vsel %vm2071, %v2108, %v2110
      %v2112 = vrot.slane %v1631, 2
      %v2113 = vrot.slane %v1632, 2
      %v2114 = vsel %vm2071, %v2112, %v2113
      %v2115 = vrot.slane %v1633, 2
      %v2116 = vsel %vm2071, %v2113, %v2115
      %v2117 = vrot.slane %v1634, 2
      %v2118 = vrot.slane %v1635, 2
      %v2119 = vsel %vm2071, %v2117, %v2118
      %v2120 = vrot.slane %v1636, 2
      %v2121 = vsel %vm2071, %v2118, %v2120
      %v2122 = vrot.slane %v1637, 2
      %v2123 = vrot.slane %v1638, 2
      %v2124 = vsel %vm2071, %v2122, %v2123
      %v2125 = vrot.slane %v1639, 2
      %v2126 = vsel %vm2071, %v2123, %v2125
      %v2127 = vrot.slane %v1640, 2
      %v2128 = vrot.slane %v1641, 2
      %v2129 = vsel %vm2071, %v2127, %v2128
      %v2130 = vrot.slane %v1642, 2
      %v2131 = vsel %vm2071, %v2128, %v2130
      %v2132 = vrot.slane %v1643, 2
      %v2133 = vrot.slane %v1644, 2
      %v2134 = vsel %vm2071, %v2132, %v2133
      %v2135 = vrot.slane %v1645, 2
      %v2136 = vsel %vm2071, %v2133, %v2135
      %v2137 = vrot.slane %v1646, 2
      %v2138 = vrot.slane %v1647, 2
      %v2139 = vsel %vm2071, %v2137, %v2138
      %v2140 = vrot.slane %v1648, 2
      %v2141 = vsel %vm2071, %v2138, %v2140
      %v2142 = vrot.slane %v1649, 2
      %v2143 = vrot.slane %v1650, 2
      %v2144 = vsel %vm2071, %v2142, %v2143
      %v2145 = vrot.slane %v1651, 2
      %v2146 = vsel %vm2071, %v2143, %v2145
      %v2147 = vrot.slane %v1652, 2
      %v2148 = vrot.slane %v1653, 2
      %v2149 = vsel %vm2071, %v2147, %v2148
      %v2150 = vrot.slane %v1654, 2
      %v2151 = vsel %vm2071, %v2148, %v2150
      %v2200 = vadd.f32 %v1382, %v2072
      %v2201 = vadd.f32 %v1383, %v2074
      %v2202 = vadd.f32 %v1384, %v2076
      %v2203 = vadd.f32 %v1385, %v2077
      %v2204 = vadd.f32 %v1386, %v2079
      %v2205 = vadd.f32 %v1387, %v2081
      %v2206 = vadd.f32 %v1388, %v2082
      %v2207 = vadd.f32 %v1389, %v2084
      %v2208 = vadd.f32 %v1390, %v2086
      %v2209 = vadd.f32 %v1391, %v2087
      %v2210 = vadd.f32 %v1392, %v2089
      %v2211 = vadd.f32 %v1393, %v2091
      %v2212 = vadd.f32 %v1394, %v2092
      %v2213 = vadd.f32 %v1395, %v2094
      %v2214 = vadd.f32 %v1396, %v2096
      %v2215 = vadd.f32 %v1397, %v2097
      %v2216 = vadd.f32 %v1398, %v2099
      %v2217 = vadd.f32 %v1399, %v2101
      %v2218 = vadd.f32 %v1400, %v2102
      %v2219 = vadd.f32 %v1401, %v2104
      %v2220 = vadd.f32 %v1402, %v2106
      %v2221 = vadd.f32 %v1403, %v2107
      %v2222 = vadd.f32 %v1404, %v2109
      %v2223 = vadd.f32 %v1405, %v2111
      %v2224 = vadd.f32 %v1406, %v2112
      %v2225 = vadd.f32 %v1407, %v2114
      %v2226 = vadd.f32 %v1408, %v2116
      %v2227 = vadd.f32 %v1409, %v2117
      %v2228 = vadd.f32 %v1410, %v2119
      %v2229 = vadd.f32 %v1411, %v2121
      %v2230 = vadd.f32 %v1412, %v2122
      %v2231 = vadd.f32 %v1413, %v2124
      %v2232 = vadd.f32 %v1414, %v2126
      %v2233 = vadd.f32 %v1415, %v2127
      %v2234 = vadd.f32 %v1416, %v2129
      %v2235 = vadd.f32 %v1417, %v2131
      %v2236 = vadd.f32 %v1418, %v2132
      %v2237 = vadd.f32 %v1419, %v2134
      %v2238 = vadd.f32 %v1420, %v2136
      %v2239 = vadd.f32 %v1421, %v2137
      %v2240 = vadd.f32 %v1422, %v2139
      %v2241 = vadd.f32 %v1423, %v2141
      %v2242 = vadd.f32 %v1424, %v2142
      %v2243 = vadd.f32 %v1425, %v2144
      %v2244 = vadd.f32 %v1426, %v2146
      %v2245 = vadd.f32 %v1427, %v2147
      %v2246 = vadd.f32 %v1428, %v2149
      %v2247 = vadd.f32 %v1429, %v2151
      %vm2296 = vcmask 1040384
      %v2297 = vrot.slane %v1975, 7
      %v2298 = vrot.slane %v1976, 7
      %v2299 = vsel %vm2296, %v2297, %v2298
      %v2300 = vrot.slane %v1977, 7
      %v2301 = vsel %vm2296, %v2298, %v2300
      %v2302 = vrot.slane %v1978, 7
      %v2303 = vrot.slane %v1979, 7
      %v2304 = vsel %vm2296, %v2302, %v2303
      %v2305 = vrot.slane %v1980, 7
      %v2306 = vsel %vm2296, %v2303, %v2305
      %v2307 = vrot.slane %v1981, 7
      %v2308 = vrot.slane %v1982, 7
      %v2309 = vsel %vm2296, %v2307, %v2308
      %v2310 = vrot.slane %v1983, 7
      %v2311 = vsel %vm2296, %v2308, %v2310
      %v2312 = vrot.slane %v1984, 7
      %v2313 = vrot.slane %v1985, 7
      %v2314 = vsel %vm2296, %v2312, %v2313
      %v2315 = vrot.slane %v1986, 7
      %v2316 = vsel %vm2296, %v2313, %v2315
      %v2317 = vrot.slane %v1987, 7
      %v2318 = vrot.slane %v1988, 7
      %v2319 = vsel %vm2296, %v2317, %v2318
      %v2320 = vrot.slane %v1989, 7
      %v2321 = vsel %vm2296, %v2318, %v2320
      %v2322 = vrot.slane %v1990, 7
      %v2323 = vrot.slane %v1991, 7
      %v2324 = vsel %vm2296, %v2322, %v2323
      %v2325 = vrot.slane %v1992, 7
      %v2326 = vsel %vm2296, %v2323, %v2325
      %v2327 = vrot.slane %v1993, 7
      %v2328 = vrot.slane %v1994, 7
      %v2329 = vsel %vm2296, %v2327, %v2328
      %v2330 = vrot.slane %v1995, 7
      %v2331 = vsel %vm2296, %v2328, %v2330
      %v2332 = vrot.slane %v1996, 7
      %v2333 = vrot.slane %v1997, 7
      %v2334 = vsel %vm2296, %v2332, %v2333
      %v2335 = vrot.slane %v1998, 7
      %v2336 = vsel %vm2296, %v2333, %v2335
      %v2337 = vrot.slane %v1999, 7
      %v2338 = vrot.slane %v2000, 7
      %v2339 = vsel %vm2296, %v2337, %v2338
      %v2340 = vrot.slane %v2001, 7
      %v2341 = vsel %vm2296, %v2338, %v2340
      %v2342 = vrot.slane %v2002, 7
      %v2343 = vrot.slane %v2003, 7
      %v2344 = vsel %vm2296, %v2342, %v2343
      %v2345 = vrot.slane %v2004, 7
      %v2346 = vsel %vm2296, %v2343, %v2345
      %v2347 = vrot.slane %v2005, 7
      %v2348 = vrot.slane %v2006, 7
      %v2349 = vsel %vm2296, %v2347, %v2348
      %v2350 = vrot.slane %v2007, 7
      %v2351 = vsel %vm2296, %v2348, %v2350
      %v2352 = vrot.slane %v2008, 7
      %v2353 = vrot.slane %v2009, 7
      %v2354 = vsel %vm2296, %v2352, %v2353
      %v2355 = vrot.slane %v2010, 7
      %v2356 = vsel %vm2296, %v2353, %v2355
      %v2357 = vrot.slane %v2011, 7
      %v2358 = vrot.slane %v2012, 7
      %v2359 = vsel %vm2296, %v2357, %v2358
      %v2360 = vrot.slane %v2013, 7
      %v2361 = vsel %vm2296, %v2358, %v2360
      %v2362 = vrot.slane %v2014, 7
      %v2363 = vrot.slane %v2015, 7
      %v2364 = vsel %vm2296, %v2362, %v2363
      %v2365 = vrot.slane %v2016, 7
      %v2366 = vsel %vm2296, %v2363, %v2365
      %v2367 = vrot.slane %v2017, 7
      %v2368 = vrot.slane %v2018, 7
      %v2369 = vsel %vm2296, %v2367, %v2368
      %v2370 = vrot.slane %v2019, 7
      %v2371 = vsel %vm2296, %v2368, %v2370
      %v2372 = vrot.slane %v2020, 7
      %v2373 = vrot.slane %v2021, 7
      %v2374 = vsel %vm2296, %v2372, %v2373
      %v2375 = vrot.slane %v2022, 7
      %v2376 = vsel %vm2296, %v2373, %v2375
      %v2409 = vadd.f32 %v1815, %v2299
      %v2410 = vadd.f32 %v1816, %v2301
      %v2411 = vadd.f32 %v1817, %v2304
      %v2412 = vadd.f32 %v1818, %v2306
      %v2413 = vadd.f32 %v1819, %v2309
      %v2414 = vadd.f32 %v1820, %v2311
      %v2415 = vadd.f32 %v1821, %v2314
      %v2416 = vadd.f32 %v1822, %v2316
      %v2417 = vadd.f32 %v1823, %v2319
      %v2418 = vadd.f32 %v1824, %v2321
      %v2419 = vadd.f32 %v1825, %v2324
      %v2420 = vadd.f32 %v1826, %v2326
      %v2421 = vadd.f32 %v1827, %v2329
      %v2422 = vadd.f32 %v1828, %v2331
      %v2423 = vadd.f32 %v1829, %v2334
      %v2424 = vadd.f32 %v1830, %v2336
      %v2425 = vadd.f32 %v1831, %v2339
      %v2426 = vadd.f32 %v1832, %v2341
      %v2427 = vadd.f32 %v1833, %v2344
      %v2428 = vadd.f32 %v1834, %v2346
      %v2429 = vadd.f32 %v1835, %v2349
      %v2430 = vadd.f32 %v1836, %v2351
      %v2431 = vadd.f32 %v1837, %v2354
      %v2432 = vadd.f32 %v1838, %v2356
      %v2433 = vadd.f32 %v1839, %v2359
      %v2434 = vadd.f32 %v1840, %v2361
      %v2435 = vadd.f32 %v1841, %v2364
      %v2436 = vadd.f32 %v1842, %v2366
      %v2437 = vadd.f32 %v1843, %v2369
      %v2438 = vadd.f32 %v1844, %v2371
      %v2439 = vadd.f32 %v1845, %v2374
      %v2440 = vadd.f32 %v1846, %v2376
      %v2473 = vrot.slane %v2409, 1
      %v2474 = vrot.slane %v2410, 1
      %v2475 = vsel %vm1285, %v2473, %v2474
      %v2476 = vrot.slane %v2411, 1
      %v2477 = vrot.slane %v2412, 1
      %v2478 = vsel %vm1285, %v2476, %v2477
      %v2479 = vrot.slane %v2413, 1
      %v2480 = vrot.slane %v2414, 1
      %v2481 = vsel %vm1285, %v2479, %v2480
      %v2482 = vrot.slane %v2415, 1
      %v2483 = vrot.slane %v2416, 1
      %v2484 = vsel %vm1285, %v2482, %v2483
      %v2485 = vrot.slane %v2417, 1
      %v2486 = vrot.slane %v2418, 1
      %v2487 = vsel %vm1285, %v2485, %v2486
      %v2488 = vrot.slane %v2419, 1
      %v2489 = vrot.slane %v2420, 1
      %v2490 = vsel %vm1285, %v2488, %v2489
      %v2491 = vrot.slane %v2421, 1
      %v2492 = vrot.slane %v2422, 1
      %v2493 = vsel %vm1285, %v2491, %v2492
      %v2494 = vrot.slane %v2423, 1
      %v2495 = vrot.slane %v2424, 1
      %v2496 = vsel %vm1285, %v2494, %v2495
      %v2497 = vrot.slane %v2425, 1
      %v2498 = vrot.slane %v2426, 1
      %v2499 = vsel %vm1285, %v2497, %v2498
      %v2500 = vrot.slane %v2427, 1
      %v2501 = vrot.slane %v2428, 1
      %v2502 = vsel %vm1285, %v2500, %v2501
      %v2503 = vrot.slane %v2429, 1
      %v2504 = vrot.slane %v2430, 1
      %v2505 = vsel %vm1285, %v2503, %v2504
      %v2506 = vrot.slane %v2431, 1
      %v2507 = vrot.slane %v2432, 1
      %v2508 = vsel %vm1285, %v2506, %v2507
      %v2509 = vrot.slane %v2433, 1
      %v2510 = vrot.slane %v2434, 1
      %v2511 = vsel %vm1285, %v2509, %v2510
      %v2512 = vrot.slane %v2435, 1
      %v2513 = vrot.slane %v2436, 1
      %v2514 = vsel %vm1285, %v2512, %v2513
      %v2515 = vrot.slane %v2437, 1
      %v2516 = vrot.slane %v2438, 1
      %v2517 = vsel %vm1285, %v2515, %v2516
      %v2518 = vrot.slane %v2439, 1
      %v2519 = vrot.slane %v2440, 1
      %v2520 = vsel %vm1285, %v2518, %v2519
      %v2569 = vadd.f32 %v2200, %v2473
      %v2570 = vadd.f32 %v2201, %v2475
      %v2571 = vadd.f32 %v2202, %v2474
      %v2572 = vadd.f32 %v2203, %v2476
      %v2573 = vadd.f32 %v2204, %v2478
      %v2574 = vadd.f32 %v2205, %v2477
      %v2575 = vadd.f32 %v2206, %v2479
      %v2576 = vadd.f32 %v2207, %v2481
      %v2577 = vadd.f32 %v2208, %v2480
      %v2578 = vadd.f32 %v2209, %v2482
      %v2579 = vadd.f32 %v2210, %v2484
      %v2580 = vadd.f32 %v2211, %v2483
      %v2581 = vadd.f32 %v2212, %v2485
      %v2582 = vadd.f32 %v2213, %v2487
      %v2583 = vadd.f32 %v2214, %v2486
      %v2584 = vadd.f32 %v2215, %v2488
      %v2585 = vadd.f32 %v2216, %v2490
      %v2586 = vadd.f32 %v2217, %v2489
      %v2587 = vadd.f32 %v2218, %v2491
      %v2588 = vadd.f32 %v2219, %v2493
      %v2589 = vadd.f32 %v2220, %v2492
      %v2590 = vadd.f32 %v2221, %v2494
      %v2591 = vadd.f32 %v2222, %v2496
      %v2592 = vadd.f32 %v2223, %v2495
      %v2593 = vadd.f32 %v2224, %v2497
      %v2594 = vadd.f32 %v2225, %v2499
      %v2595 = vadd.f32 %v2226, %v2498
      %v2596 = vadd.f32 %v2227, %v2500
      %v2597 = vadd.f32 %v2228, %v2502
      %v2598 = vadd.f32 %v2229, %v2501
      %v2599 = vadd.f32 %v2230, %v2503
      %v2600 = vadd.f32 %v2231, %v2505
      %v2601 = vadd.f32 %v2232, %v2504
      %v2602 = vadd.f32 %v2233, %v2506
      %v2603 = vadd.f32 %v2234, %v2508
      %v2604 = vadd.f32 %v2235, %v2507
      %v2605 = vadd.f32 %v2236, %v2509
      %v2606 = vadd.f32 %v2237, %v2511
      %v2607 = vadd.f32 %v2238, %v2510
      %v2608 = vadd.f32 %v2239, %v2512
      %v2609 = vadd.f32 %v2240, %v2514
      %v2610 = vadd.f32 %v2241, %v2513
      %v2611 = vadd.f32 %v2242, %v2515
      %v2612 = vadd.f32 %v2243, %v2517
      %v2613 = vadd.f32 %v2244, %v2516
      %v2614 = vadd.f32 %v2245, %v2518
      %v2615 = vadd.f32 %v2246, %v2520
      %v2616 = vadd.f32 %v2247, %v2519
      %v2665 = vrot.slane %v1205, 2
      %v2666 = vrot.slane %v1206, 2
      %v2667 = vsel %vm2071, %v2665, %v2666
      %v2668 = vrot.slane %v1207, 2
      %v2669 = vsel %vm2071, %v2666, %v2668
      %v2670 = vrot.slane %v1208, 2
      %v2671 = vrot.slane %v1209, 2
      %v2672 = vsel %vm2071, %v2670, %v2671
      %v2673 = vrot.slane %v1210, 2
      %v2674 = vsel %vm2071, %v2671, %v2673
      %v2675 = vrot.slane %v1211, 2
      %v2676 = vrot.slane %v1212, 2
      %v2677 = vsel %vm2071, %v2675, %v2676
      %v2678 = vrot.slane %v1213, 2
      %v2679 = vsel %vm2071, %v2676, %v2678
      %v2680 = vrot.slane %v1214, 2
      %v2681 = vrot.slane %v1215, 2
      %v2682 = vsel %vm2071, %v2680, %v2681
      %v2683 = vrot.slane %v1216, 2
      %v2684 = vsel %vm2071, %v2681, %v2683
      %v2685 = vrot.slane %v1217, 2
      %v2686 = vrot.slane %v1218, 2
      %v2687 = vsel %vm2071, %v2685, %v2686
      %v2688 = vrot.slane %v1219, 2
      %v2689 = vsel %vm2071, %v2686, %v2688
      %v2690 = vrot.slane %v1220, 2
      %v2691 = vrot.slane %v1221, 2
      %v2692 = vsel %vm2071, %v2690, %v2691
      %v2693 = vrot.slane %v1222, 2
      %v2694 = vsel %vm2071, %v2691, %v2693
      %v2695 = vrot.slane %v1223, 2
      %v2696 = vrot.slane %v1224, 2
      %v2697 = vsel %vm2071, %v2695, %v2696
      %v2698 = vrot.slane %v1225, 2
      %v2699 = vsel %vm2071, %v2696, %v2698
      %v2700 = vrot.slane %v1226, 2
      %v2701 = vrot.slane %v1227, 2
      %v2702 = vsel %vm2071, %v2700, %v2701
      %v2703 = vrot.slane %v1228, 2
      %v2704 = vsel %vm2071, %v2701, %v2703
      %v2705 = vrot.slane %v1229, 2
      %v2706 = vrot.slane %v1230, 2
      %v2707 = vsel %vm2071, %v2705, %v2706
      %v2708 = vrot.slane %v1231, 2
      %v2709 = vsel %vm2071, %v2706, %v2708
      %v2710 = vrot.slane %v1232, 2
      %v2711 = vrot.slane %v1233, 2
      %v2712 = vsel %vm2071, %v2710, %v2711
      %v2713 = vrot.slane %v1234, 2
      %v2714 = vsel %vm2071, %v2711, %v2713
      %v2715 = vrot.slane %v1235, 2
      %v2716 = vrot.slane %v1236, 2
      %v2717 = vsel %vm2071, %v2715, %v2716
      %v2718 = vrot.slane %v1237, 2
      %v2719 = vsel %vm2071, %v2716, %v2718
      %v2720 = vrot.slane %v1238, 2
      %v2721 = vrot.slane %v1239, 2
      %v2722 = vsel %vm2071, %v2720, %v2721
      %v2723 = vrot.slane %v1240, 2
      %v2724 = vsel %vm2071, %v2721, %v2723
      %v2725 = vrot.slane %v1241, 2
      %v2726 = vrot.slane %v1242, 2
      %v2727 = vsel %vm2071, %v2725, %v2726
      %v2728 = vrot.slane %v1243, 2
      %v2729 = vsel %vm2071, %v2726, %v2728
      %v2730 = vrot.slane %v1244, 2
      %v2731 = vrot.slane %v1245, 2
      %v2732 = vsel %vm2071, %v2730, %v2731
      %v2733 = vrot.slane %v1246, 2
      %v2734 = vsel %vm2071, %v2731, %v2733
      %v2735 = vrot.slane %v1247, 2
      %v2736 = vrot.slane %v1248, 2
      %v2737 = vsel %vm2071, %v2735, %v2736
      %v2738 = vrot.slane %v1249, 2
      %v2739 = vsel %vm2071, %v2736, %v2738
      %v2740 = vrot.slane %v1250, 2
      %v2741 = vrot.slane %v1251, 2
      %v2742 = vsel %vm2071, %v2740, %v2741
      %v2743 = vrot.slane %v1252, 2
      %v2744 = vsel %vm2071, %v2741, %v2743
      %v2793 = vadd.f32 %v2569, %v2665
      %v2794 = vadd.f32 %v2570, %v2667
      %v2795 = vadd.f32 %v2571, %v2669
      %v2796 = vadd.f32 %v2572, %v2670
      %v2797 = vadd.f32 %v2573, %v2672
      %v2798 = vadd.f32 %v2574, %v2674
      %v2799 = vadd.f32 %v2575, %v2675
      %v2800 = vadd.f32 %v2576, %v2677
      %v2801 = vadd.f32 %v2577, %v2679
      %v2802 = vadd.f32 %v2578, %v2680
      %v2803 = vadd.f32 %v2579, %v2682
      %v2804 = vadd.f32 %v2580, %v2684
      %v2805 = vadd.f32 %v2581, %v2685
      %v2806 = vadd.f32 %v2582, %v2687
      %v2807 = vadd.f32 %v2583, %v2689
      %v2808 = vadd.f32 %v2584, %v2690
      %v2809 = vadd.f32 %v2585, %v2692
      %v2810 = vadd.f32 %v2586, %v2694
      %v2811 = vadd.f32 %v2587, %v2695
      %v2812 = vadd.f32 %v2588, %v2697
      %v2813 = vadd.f32 %v2589, %v2699
      %v2814 = vadd.f32 %v2590, %v2700
      %v2815 = vadd.f32 %v2591, %v2702
      %v2816 = vadd.f32 %v2592, %v2704
      %v2817 = vadd.f32 %v2593, %v2705
      %v2818 = vadd.f32 %v2594, %v2707
      %v2819 = vadd.f32 %v2595, %v2709
      %v2820 = vadd.f32 %v2596, %v2710
      %v2821 = vadd.f32 %v2597, %v2712
      %v2822 = vadd.f32 %v2598, %v2714
      %v2823 = vadd.f32 %v2599, %v2715
      %v2824 = vadd.f32 %v2600, %v2717
      %v2825 = vadd.f32 %v2601, %v2719
      %v2826 = vadd.f32 %v2602, %v2720
      %v2827 = vadd.f32 %v2603, %v2722
      %v2828 = vadd.f32 %v2604, %v2724
      %v2829 = vadd.f32 %v2605, %v2725
      %v2830 = vadd.f32 %v2606, %v2727
      %v2831 = vadd.f32 %v2607, %v2729
      %v2832 = vadd.f32 %v2608, %v2730
      %v2833 = vadd.f32 %v2609, %v2732
      %v2834 = vadd.f32 %v2610, %v2734
      %v2835 = vadd.f32 %v2611, %v2735
      %v2836 = vadd.f32 %v2612, %v2737
      %v2837 = vadd.f32 %v2613, %v2739
      %v2838 = vadd.f32 %v2614, %v2740
      %v2839 = vadd.f32 %v2615, %v2742
      %v2840 = vadd.f32 %v2616, %v2744
      %v2841 = vld [vmem:[%s4] sm:$0x1]
      %v2843 = vperm.slane %v2841, 0
      %v2845 = vadd.f32 %v2793, %v2843
      %v2846 = vadd.f32 %v2794, %v2843
      %v2847 = vadd.f32 %v2795, %v2843
      %v2848 = vadd.f32 %v2796, %v2843
      %v2849 = vadd.f32 %v2797, %v2843
      %v2850 = vadd.f32 %v2798, %v2843
      %v2851 = vadd.f32 %v2799, %v2843
      %v2852 = vadd.f32 %v2800, %v2843
      %v2853 = vadd.f32 %v2801, %v2843
      %v2854 = vadd.f32 %v2802, %v2843
      %v2855 = vadd.f32 %v2803, %v2843
      %v2856 = vadd.f32 %v2804, %v2843
      %v2857 = vadd.f32 %v2805, %v2843
      %v2858 = vadd.f32 %v2806, %v2843
      %v2859 = vadd.f32 %v2807, %v2843
      %v2860 = vadd.f32 %v2808, %v2843
      %v2861 = vadd.f32 %v2809, %v2843
      %v2862 = vadd.f32 %v2810, %v2843
      %v2863 = vadd.f32 %v2811, %v2843
      %v2864 = vadd.f32 %v2812, %v2843
      %v2865 = vadd.f32 %v2813, %v2843
      %v2866 = vadd.f32 %v2814, %v2843
      %v2867 = vadd.f32 %v2815, %v2843
      %v2868 = vadd.f32 %v2816, %v2843
      %v2869 = vadd.f32 %v2817, %v2843
      %v2870 = vadd.f32 %v2818, %v2843
      %v2871 = vadd.f32 %v2819, %v2843
      %v2872 = vadd.f32 %v2820, %v2843
      %v2873 = vadd.f32 %v2821, %v2843
      %v2874 = vadd.f32 %v2822, %v2843
      %v2875 = vadd.f32 %v2823, %v2843
      %v2876 = vadd.f32 %v2824, %v2843
      %v2877 = vadd.f32 %v2825, %v2843
      %v2878 = vadd.f32 %v2826, %v2843
      %v2879 = vadd.f32 %v2827, %v2843
      %v2880 = vadd.f32 %v2828, %v2843
      %v2881 = vadd.f32 %v2829, %v2843
      %v2882 = vadd.f32 %v2830, %v2843
      %v2883 = vadd.f32 %v2831, %v2843
      %v2884 = vadd.f32 %v2832, %v2843
      %v2885 = vadd.f32 %v2833, %v2843
      %v2886 = vadd.f32 %v2834, %v2843
      %v2887 = vadd.f32 %v2835, %v2843
      %v2888 = vadd.f32 %v2836, %v2843
      %v2889 = vadd.f32 %v2837, %v2843
      %v2890 = vadd.f32 %v2838, %v2843
      %v2891 = vadd.f32 %v2839, %v2843
      %v2892 = vadd.f32 %v2840, %v2843
      %vm2893 = vcmp.gt.f32.partialorder %v2845, 0.0
      %vm2894 = vcmp.gt.f32.partialorder %v2846, 0.0
      %vm2895 = vcmp.gt.f32.partialorder %v2847, 0.0
      %vm2896 = vcmp.gt.f32.partialorder %v2848, 0.0
      %vm2897 = vcmp.gt.f32.partialorder %v2849, 0.0
      %vm2898 = vcmp.gt.f32.partialorder %v2850, 0.0
      %vm2899 = vcmp.gt.f32.partialorder %v2851, 0.0
      %vm2900 = vcmp.gt.f32.partialorder %v2852, 0.0
      %vm2901 = vcmp.gt.f32.partialorder %v2853, 0.0
      %vm2902 = vcmp.gt.f32.partialorder %v2854, 0.0
      %vm2903 = vcmp.gt.f32.partialorder %v2855, 0.0
      %vm2904 = vcmp.gt.f32.partialorder %v2856, 0.0
      %vm2905 = vcmp.gt.f32.partialorder %v2857, 0.0
      %vm2906 = vcmp.gt.f32.partialorder %v2858, 0.0
      %vm2907 = vcmp.gt.f32.partialorder %v2859, 0.0
      %vm2908 = vcmp.gt.f32.partialorder %v2860, 0.0
      %vm2909 = vcmp.gt.f32.partialorder %v2861, 0.0
      %vm2910 = vcmp.gt.f32.partialorder %v2862, 0.0
      %vm2911 = vcmp.gt.f32.partialorder %v2863, 0.0
      %vm2912 = vcmp.gt.f32.partialorder %v2864, 0.0
      %vm2913 = vcmp.gt.f32.partialorder %v2865, 0.0
      %vm2914 = vcmp.gt.f32.partialorder %v2866, 0.0
      %vm2915 = vcmp.gt.f32.partialorder %v2867, 0.0
      %vm2916 = vcmp.gt.f32.partialorder %v2868, 0.0
      %vm2917 = vcmp.gt.f32.partialorder %v2869, 0.0
      %vm2918 = vcmp.gt.f32.partialorder %v2870, 0.0
      %vm2919 = vcmp.gt.f32.partialorder %v2871, 0.0
      %vm2920 = vcmp.gt.f32.partialorder %v2872, 0.0
      %vm2921 = vcmp.gt.f32.partialorder %v2873, 0.0
      %vm2922 = vcmp.gt.f32.partialorder %v2874, 0.0
      %vm2923 = vcmp.gt.f32.partialorder %v2875, 0.0
      %vm2924 = vcmp.gt.f32.partialorder %v2876, 0.0
      %vm2925 = vcmp.gt.f32.partialorder %v2877, 0.0
      %vm2926 = vcmp.gt.f32.partialorder %v2878, 0.0
      %vm2927 = vcmp.gt.f32.partialorder %v2879, 0.0
      %vm2928 = vcmp.gt.f32.partialorder %v2880, 0.0
      %vm2929 = vcmp.gt.f32.partialorder %v2881, 0.0
      %vm2930 = vcmp.gt.f32.partialorder %v2882, 0.0
      %vm2931 = vcmp.gt.f32.partialorder %v2883, 0.0
      %vm2932 = vcmp.gt.f32.partialorder %v2884, 0.0
      %vm2933 = vcmp.gt.f32.partialorder %v2885, 0.0
      %vm2934 = vcmp.gt.f32.partialorder %v2886, 0.0
      %vm2935 = vcmp.gt.f32.partialorder %v2887, 0.0
      %vm2936 = vcmp.gt.f32.partialorder %v2888, 0.0
      %vm2937 = vcmp.gt.f32.partialorder %v2889, 0.0
      %vm2938 = vcmp.gt.f32.partialorder %v2890, 0.0
      %vm2939 = vcmp.gt.f32.partialorder %v2891, 0.0
      %vm2940 = vcmp.gt.f32.partialorder %v2892, 0.0
      %v2941 = vmul.f32 %v2845, 0.01
      %v2942 = vmul.f32 %v2846, 0.01
      %v2943 = vmul.f32 %v2847, 0.01
      %v2944 = vmul.f32 %v2848, 0.01
      %v2945 = vmul.f32 %v2849, 0.01
      %v2946 = vmul.f32 %v2850, 0.01
      %v2947 = vmul.f32 %v2851, 0.01
      %v2948 = vmul.f32 %v2852, 0.01
      %v2949 = vmul.f32 %v2853, 0.01
      %v2950 = vmul.f32 %v2854, 0.01
      %v2951 = vmul.f32 %v2855, 0.01
      %v2952 = vmul.f32 %v2856, 0.01
      %v2953 = vmul.f32 %v2857, 0.01
      %v2954 = vmul.f32 %v2858, 0.01
      %v2955 = vmul.f32 %v2859, 0.01
      %v2956 = vmul.f32 %v2860, 0.01
      %v2957 = vmul.f32 %v2861, 0.01
      %v2958 = vmul.f32 %v2862, 0.01
      %v2959 = vmul.f32 %v2863, 0.01
      %v2960 = vmul.f32 %v2864, 0.01
      %v2961 = vmul.f32 %v2865, 0.01
      %v2962 = vmul.f32 %v2866, 0.01
      %v2963 = vmul.f32 %v2867, 0.01
      %v2964 = vmul.f32 %v2868, 0.01
      %v2965 = vmul.f32 %v2869, 0.01
      %v2966 = vmul.f32 %v2870, 0.01
      %v2967 = vmul.f32 %v2871, 0.01
      %v2968 = vmul.f32 %v2872, 0.01
      %v2969 = vmul.f32 %v2873, 0.01
      %v2970 = vmul.f32 %v2874, 0.01
      %v2971 = vmul.f32 %v2875, 0.01
      %v2972 = vmul.f32 %v2876, 0.01
      %v2973 = vmul.f32 %v2877, 0.01
      %v2974 = vmul.f32 %v2878, 0.01
      %v2975 = vmul.f32 %v2879, 0.01
      %v2976 = vmul.f32 %v2880, 0.01
      %v2977 = vmul.f32 %v2881, 0.01
      %v2978 = vmul.f32 %v2882, 0.01
      %v2979 = vmul.f32 %v2883, 0.01
      %v2980 = vmul.f32 %v2884, 0.01
      %v2981 = vmul.f32 %v2885, 0.01
      %v2982 = vmul.f32 %v2886, 0.01
      %v2983 = vmul.f32 %v2887, 0.01
      %v2984 = vmul.f32 %v2888, 0.01
      %v2985 = vmul.f32 %v2889, 0.01
      %v2986 = vmul.f32 %v2890, 0.01
      %v2987 = vmul.f32 %v2891, 0.01
      %v2988 = vmul.f32 %v2892, 0.01
      %v2989 = vsel %vm2893, %v2845, %v2941
      %v2990 = vsel %vm2894, %v2846, %v2942
      %v2991 = vsel %vm2895, %v2847, %v2943
      %v2992 = vsel %vm2896, %v2848, %v2944
      %v2993 = vsel %vm2897, %v2849, %v2945
      %v2994 = vsel %vm2898, %v2850, %v2946
      %v2995 = vsel %vm2899, %v2851, %v2947
      %v2996 = vsel %vm2900, %v2852, %v2948
      %v2997 = vsel %vm2901, %v2853, %v2949
      %v2998 = vsel %vm2902, %v2854, %v2950
      %v2999 = vsel %vm2903, %v2855, %v2951
      %v3000 = vsel %vm2904, %v2856, %v2952
      %v3001 = vsel %vm2905, %v2857, %v2953
      %v3002 = vsel %vm2906, %v2858, %v2954
      %v3003 = vsel %vm2907, %v2859, %v2955
      %v3004 = vsel %vm2908, %v2860, %v2956
      %v3005 = vsel %vm2909, %v2861, %v2957
      %v3006 = vsel %vm2910, %v2862, %v2958
      %v3007 = vsel %vm2911, %v2863, %v2959
      %v3008 = vsel %vm2912, %v2864, %v2960
      %v3009 = vsel %vm2913, %v2865, %v2961
      %v3010 = vsel %vm2914, %v2866, %v2962
      %v3011 = vsel %vm2915, %v2867, %v2963
      %v3012 = vsel %vm2916, %v2868, %v2964
      %v3013 = vsel %vm2917, %v2869, %v2965
      %v3014 = vsel %vm2918, %v2870, %v2966
      %v3015 = vsel %vm2919, %v2871, %v2967
      %v3016 = vsel %vm2920, %v2872, %v2968
      %v3017 = vsel %vm2921, %v2873, %v2969
      %v3018 = vsel %vm2922, %v2874, %v2970
      %v3019 = vsel %vm2923, %v2875, %v2971
      %v3020 = vsel %vm2924, %v2876, %v2972
      %v3021 = vsel %vm2925, %v2877, %v2973
      %v3022 = vsel %vm2926, %v2878, %v2974
      %v3023 = vsel %vm2927, %v2879, %v2975
      %v3024 = vsel %vm2928, %v2880, %v2976
      %v3025 = vsel %vm2929, %v2881, %v2977
      %v3026 = vsel %vm2930, %v2882, %v2978
      %v3027 = vsel %vm2931, %v2883, %v2979
      %v3028 = vsel %vm2932, %v2884, %v2980
      %v3029 = vsel %vm2933, %v2885, %v2981
      %v3030 = vsel %vm2934, %v2886, %v2982
      %v3031 = vsel %vm2935, %v2887, %v2983
      %v3032 = vsel %vm2936, %v2888, %v2984
      %v3033 = vsel %vm2937, %v2889, %v2985
      %v3034 = vsel %vm2938, %v2890, %v2986
      %v3035 = vsel %vm2939, %v2891, %v2987
      %v3036 = vsel %vm2940, %v2892, %v2988
      %v3085 = vrot.slane %v2989, 7
      %v3086 = vrot.slane %v2990, 7
      %v3087 = vsel %vm2296, %v3085, %v3086
      %v3088 = vrot.slane %v2991, 7
      %v3089 = vsel %vm2296, %v3086, %v3088
      %v3090 = vrot.slane %v2992, 7
      %v3091 = vrot.slane %v2993, 7
      %v3092 = vsel %vm2296, %v3090, %v3091
      %v3093 = vrot.slane %v2994, 7
      %v3094 = vsel %vm2296, %v3091, %v3093
      %v3095 = vrot.slane %v2995, 7
      %v3096 = vrot.slane %v2996, 7
      %v3097 = vsel %vm2296, %v3095, %v3096
      %v3098 = vrot.slane %v2997, 7
      %v3099 = vsel %vm2296, %v3096, %v3098
      %v3100 = vrot.slane %v2998, 7
      %v3101 = vrot.slane %v2999, 7
      %v3102 = vsel %vm2296, %v3100, %v3101
      %v3103 = vrot.slane %v3000, 7
      %v3104 = vsel %vm2296, %v3101, %v3103
      %v3105 = vrot.slane %v3001, 7
      %v3106 = vrot.slane %v3002, 7
      %v3107 = vsel %vm2296, %v3105, %v3106
      %v3108 = vrot.slane %v3003, 7
      %v3109 = vsel %vm2296, %v3106, %v3108
      %v3110 = vrot.slane %v3004, 7
      %v3111 = vrot.slane %v3005, 7
      %v3112 = vsel %vm2296, %v3110, %v3111
      %v3113 = vrot.slane %v3006, 7
      %v3114 = vsel %vm2296, %v3111, %v3113
      %v3115 = vrot.slane %v3007, 7
      %v3116 = vrot.slane %v3008, 7
      %v3117 = vsel %vm2296, %v3115, %v3116
      %v3118 = vrot.slane %v3009, 7
      %v3119 = vsel %vm2296, %v3116, %v3118
      %v3120 = vrot.slane %v3010, 7
      %v3121 = vrot.slane %v3011, 7
      %v3122 = vsel %vm2296, %v3120, %v3121
      %v3123 = vrot.slane %v3012, 7
      %v3124 = vsel %vm2296, %v3121, %v3123
      %v3125 = vrot.slane %v3013, 7
      %v3126 = vrot.slane %v3014, 7
      %v3127 = vsel %vm2296, %v3125, %v3126
      %v3128 = vrot.slane %v3015, 7
      %v3129 = vsel %vm2296, %v3126, %v3128
      %v3130 = vrot.slane %v3016, 7
      %v3131 = vrot.slane %v3017, 7
      %v3132 = vsel %vm2296, %v3130, %v3131
      %v3133 = vrot.slane %v3018, 7
      %v3134 = vsel %vm2296, %v3131, %v3133
      %v3135 = vrot.slane %v3019, 7
      %v3136 = vrot.slane %v3020, 7
      %v3137 = vsel %vm2296, %v3135, %v3136
      %v3138 = vrot.slane %v3021, 7
      %v3139 = vsel %vm2296, %v3136, %v3138
      %v3140 = vrot.slane %v3022, 7
      %v3141 = vrot.slane %v3023, 7
      %v3142 = vsel %vm2296, %v3140, %v3141
      %v3143 = vrot.slane %v3024, 7
      %v3144 = vsel %vm2296, %v3141, %v3143
      %v3145 = vrot.slane %v3025, 7
      %v3146 = vrot.slane %v3026, 7
      %v3147 = vsel %vm2296, %v3145, %v3146
      %v3148 = vrot.slane %v3027, 7
      %v3149 = vsel %vm2296, %v3146, %v3148
      %v3150 = vrot.slane %v3028, 7
      %v3151 = vrot.slane %v3029, 7
      %v3152 = vsel %vm2296, %v3150, %v3151
      %v3153 = vrot.slane %v3030, 7
      %v3154 = vsel %vm2296, %v3151, %v3153
      %v3155 = vrot.slane %v3031, 7
      %v3156 = vrot.slane %v3032, 7
      %v3157 = vsel %vm2296, %v3155, %v3156
      %v3158 = vrot.slane %v3033, 7
      %v3159 = vsel %vm2296, %v3156, %v3158
      %v3160 = vrot.slane %v3034, 7
      %v3161 = vrot.slane %v3035, 7
      %v3162 = vsel %vm2296, %v3160, %v3161
      %v3163 = vrot.slane %v3036, 7
      %v3164 = vsel %vm2296, %v3161, %v3163
      %v3197 = vsel %vm680, %v3087, 0.0
      %v3198 = vsel %vm680, %v3089, 0.0
      %v3199 = vadd.f32 %v3197, %v3198
      %v3200 = vsel %vm680, %v3092, 0.0
      %v3201 = vadd.f32 %v3199, %v3200
      %v3202 = vsel %vm680, %v3094, 0.0
      %v3203 = vadd.f32 %v3201, %v3202
      %v3204 = vsel %vm680, %v3097, 0.0
      %v3205 = vadd.f32 %v3203, %v3204
      %v3206 = vsel %vm680, %v3099, 0.0
      %v3207 = vadd.f32 %v3205, %v3206
      %v3208 = vsel %vm680, %v3102, 0.0
      %v3209 = vadd.f32 %v3207, %v3208
      %v3210 = vsel %vm680, %v3104, 0.0
      %v3211 = vadd.f32 %v3209, %v3210
      %v3212 = vsel %vm680, %v3107, 0.0
      %v3213 = vadd.f32 %v3211, %v3212
      %v3214 = vsel %vm680, %v3109, 0.0
      %v3215 = vadd.f32 %v3213, %v3214
      %v3216 = vsel %vm680, %v3112, 0.0
      %v3217 = vadd.f32 %v3215, %v3216
      %v3218 = vsel %vm680, %v3114, 0.0
      %v3219 = vadd.f32 %v3217, %v3218
      %v3220 = vsel %vm680, %v3117, 0.0
      %v3221 = vadd.f32 %v3219, %v3220
      %v3222 = vsel %vm680, %v3119, 0.0
      %v3223 = vadd.f32 %v3221, %v3222
      %v3224 = vsel %vm680, %v3122, 0.0
      %v3225 = vadd.f32 %v3223, %v3224
      %v3226 = vsel %vm680, %v3124, 0.0
      %v3227 = vadd.f32 %v3225, %v3226
      %v3228 = vsel %vm680, %v3127, 0.0
      %v3229 = vadd.f32 %v3227, %v3228
      %v3230 = vsel %vm680, %v3129, 0.0
      %v3231 = vadd.f32 %v3229, %v3230
      %v3232 = vsel %vm680, %v3132, 0.0
      %v3233 = vadd.f32 %v3231, %v3232
      %v3234 = vsel %vm680, %v3134, 0.0
      %v3235 = vadd.f32 %v3233, %v3234
      %v3236 = vsel %vm680, %v3137, 0.0
      %v3237 = vadd.f32 %v3235, %v3236
      %v3238 = vsel %vm680, %v3139, 0.0
      %v3239 = vadd.f32 %v3237, %v3238
      %v3240 = vsel %vm680, %v3142, 0.0
      %v3241 = vadd.f32 %v3239, %v3240
      %v3242 = vsel %vm680, %v3144, 0.0
      %v3243 = vadd.f32 %v3241, %v3242
      %v3244 = vsel %vm680, %v3147, 0.0
      %v3245 = vadd.f32 %v3243, %v3244
      %v3246 = vsel %vm680, %v3149, 0.0
      %v3247 = vadd.f32 %v3245, %v3246
      %v3248 = vsel %vm680, %v3152, 0.0
      %v3249 = vadd.f32 %v3247, %v3248
      %v3250 = vsel %vm680, %v3154, 0.0
      %v3251 = vadd.f32 %v3249, %v3250
      %v3252 = vsel %vm680, %v3157, 0.0
      %v3253 = vadd.f32 %v3251, %v3252
      %v3254 = vsel %vm680, %v3159, 0.0
      %v3255 = vadd.f32 %v3253, %v3254
      %v3256 = vsel %vm680, %v3162, 0.0
      %v3257 = vadd.f32 %v3255, %v3256
      %v3258 = vsel %vm680, %v3164, 0.0
      %v3259 = vadd.f32 %v3257, %v3258
      %v3260 = vrot.slane %v3259, 4
      %v3261 = vadd.f32 %v3259, %v3260
      %v3262 = vrot.slane %v3261, 2
      %v3263 = vadd.f32 %v3261, %v3262
      %v3264 = vrot.slane %v3263, 1
      %v3265 = vadd.f32 %v3263, %v3264
      %v3266 = vmul.f32 %v3265, 0.00390625
      %v3267 = vld [vmem:[%s5] sm:$0xff]
      %v3268 = vld [vmem:[%s5 + $0x8] sm:$0xff]
      %v3270 = vsel %vm680, %v3266, 0
      %3272 = vmatpush.msra.mxu0 0.0
      %3273 = vmatpush.msra.mxu0 0.0
      %3274 = vmatpush.msra.mxu0 0.0
      %3275 = vmatpush.msra.mxu0 0.0
      %3276 = vmatpush.msra.mxu0 0.0
      %3277 = vmatpush.msra.mxu0 0.0
      %3278 = vmatpush.msra.mxu0 0.0
      %3279 = vmatpush.msra.mxu0 0.0
      %3280 = vmatpush.msra.mxu0 0.0
      %3281 = vmatpush.msra.mxu0 0.0
      %3282 = vmatpush.msra.mxu0 0.0
      %3283 = vmatpush.msra.mxu0 0.0
      %3284 = vmatpush.msra.mxu0 0.0
      %3285 = vmatpush.msra.mxu0 0.0
      %3286 = vmatpush.msra.mxu0 %v3268
      %3287 = vmatpush.msra.mxu0 %v3267
      %3288 = vmatmul.f32.gmra.mxu0 %v3270
      %v3289 = vpop.f32.mrf.mxu0
      %v3290 = vadd.f32 0.0, %v3289
      %3291 = vdwg.mxu0
      %v3292 = vmul.f32 %v3290, 0.5
      %v3293 = vmul.f32 %v3290, 0.70710677
      %vm3294 = vcmp.ge.f32.partialorder %v3293, 0.0
      %v3295 = vsel %vm3294, 1.0, -1.0
      %v3296 = vand.u32 2147483647, %v3293
      %v3297 = vmul.f32 %v3296, 0.3275911
      %v3298 = vadd.f32 %v3297, 1.0
      %v3299 = vrcp.pop %v3298
      %v3300 = vmul.f32 %v3298, %v3299
      %v3301 = vsub.f32 1.0, %v3300
      %v3302 = vmul.f32 %v3299, %v3301
      %v3303 = vadd.f32 %v3299, %v3302
      %vm3304 = vweird.f32 %v3298
      %vm3305 = vweird.f32 %v3299
      %vm3306 = vmor %vm3304, %vm3305
      %v3307 = vsel %vm3306, %v3299, %v3303
      %v3308 = vand.u32 2147483647, %v3298
      %vm3309 = vcmp.eq.f32.partialorder %v3308, 8.507059e+37
      %v3310 = vand.u32 %v3298, 2147483648
      %v3311 = vor.u32 1.1754944e-38, %v3310
      %v3312 = vsel %vm3309, %v3311, %v3307
      %v3313 = vmul.f32 1.0, %v3312
      %v3314 = vmul.f32 %v3313, 1.0614054
      %v3315 = vadd.f32 %v3314, -1.4531521
      %v3316 = vmul.f32 %v3315, %v3313
      %v3317 = vadd.f32 %v3316, 1.4214138
      %v3318 = vmul.f32 %v3317, %v3313
      %v3319 = vadd.f32 %v3318, -0.28449672
      %v3320 = vmul.f32 %v3319, %v3313
      %v3321 = vadd.f32 %v3320, 0.2548296
      %v3322 = vmul.f32 %v3321, %v3313
      %v3323 = vsub.f32 0.0, %v3296
      %v3324 = vmul.f32 %v3323, %v3296
      %v3325 = vmul.f32 %v3324, 1.442695
      %v3326 = vpow.pop %v3325
      %v3327 = vmul.f32 %v3322, %v3326
      %v3328 = vsub.f32 1.0, %v3327
      %v3329 = vmul.f32 %v3295, %v3328
      %v3330 = vadd.f32 %v3329, 1.0
      %v3331 = vmul.f32 %v3292, %v3330
      %v3332 = vld [vmem:[%s6] sm:$0x1]
      %vm3333 = vcmask 7168
      %v3335 = vsel %vm3333, %v3331, 0
      %v3338 = vsel %vm2296, %v3332, 0
      %3340 = vmatpush.msra.mxu0 0.0
      %3341 = vmatpush.msra.mxu0 0.0
      %3342 = vmatpush.msra.mxu0 0.0
      %3343 = vmatpush.msra.mxu0 0.0
      %3344 = vmatpush.msra.mxu0 0.0
      %3345 = vmatpush.msra.mxu0 0.0
      %3346 = vmatpush.msra.mxu0 0.0
      %3347 = vmatpush.msra.mxu0 0.0
      %3348 = vmatpush.msra.mxu0 0.0
      %3349 = vmatpush.msra.mxu0 0.0
      %3350 = vmatpush.msra.mxu0 0.0
      %3351 = vmatpush.msra.mxu0 0.0
      %3352 = vmatpush.msra.mxu0 0.0
      %3353 = vmatpush.msra.mxu0 0.0
      %3354 = vmatpush.msra.mxu0 0.0
      %3355 = vmatpush.msra.mxu0 %v3338
      %3356 = vmatmul.f32.gmra.mxu0 %v3335
      %v3357 = vpop.f32.mrf.mxu0
      %v3358 = vadd.f32 0.0, %v3357
      %3359 = vdwg.mxu0
      %v3360 = vsub.f32 0.0, %v3358
      %v3361 = vmul.f32 %v3360, 1.442695
      %v3362 = vpow.pop %v3361
      %v3363 = vadd.f32 %v3362, 1.0
      %v3364 = vrcp.pop %v3363
      %v3365 = vmul.f32 %v3363, %v3364
      %v3366 = vsub.f32 1.0, %v3365
      %v3367 = vmul.f32 %v3364, %v3366
      %v3368 = vadd.f32 %v3364, %v3367
      %vm3369 = vweird.f32 %v3363
      %vm3370 = vweird.f32 %v3364
      %vm3371 = vmor %vm3369, %vm3370
      %v3372 = vsel %vm3371, %v3364, %v3368
      %v3373 = vand.u32 2147483647, %v3363
      %vm3374 = vcmp.eq.f32.partialorder %v3373, 8.507059e+37
      %v3375 = vand.u32 %v3363, 2147483648
      %v3376 = vor.u32 1.1754944e-38, %v3375
      %v3377 = vsel %vm3374, %v3376, %v3372
      %v3378 = vmul.f32 1.0, %v3377
      %v3379 = vperm.slane %v3378, 0
      %v3380 = vmul.f32 %v3087, %v3379
      %v3381 = vmul.f32 %v3089, %v3379
      %v3382 = vmul.f32 %v3092, %v3379
      %v3383 = vmul.f32 %v3094, %v3379
      %v3384 = vmul.f32 %v3097, %v3379
      %v3385 = vmul.f32 %v3099, %v3379
      %v3386 = vmul.f32 %v3102, %v3379
      %v3387 = vmul.f32 %v3104, %v3379
      %v3388 = vmul.f32 %v3107, %v3379
      %v3389 = vmul.f32 %v3109, %v3379
      %v3390 = vmul.f32 %v3112, %v3379
      %v3391 = vmul.f32 %v3114, %v3379
      %v3392 = vmul.f32 %v3117, %v3379
      %v3393 = vmul.f32 %v3119, %v3379
      %v3394 = vmul.f32 %v3122, %v3379
      %v3395 = vmul.f32 %v3124, %v3379
      %v3396 = vmul.f32 %v3127, %v3379
      %v3397 = vmul.f32 %v3129, %v3379
      %v3398 = vmul.f32 %v3132, %v3379
      %v3399 = vmul.f32 %v3134, %v3379
      %v3400 = vmul.f32 %v3137, %v3379
      %v3401 = vmul.f32 %v3139, %v3379
      %v3402 = vmul.f32 %v3142, %v3379
      %v3403 = vmul.f32 %v3144, %v3379
      %v3404 = vmul.f32 %v3147, %v3379
      %v3405 = vmul.f32 %v3149, %v3379
      %v3406 = vmul.f32 %v3152, %v3379
      %v3407 = vmul.f32 %v3154, %v3379
      %v3408 = vmul.f32 %v3157, %v3379
      %v3409 = vmul.f32 %v3159, %v3379
      %v3410 = vmul.f32 %v3162, %v3379
      %v3411 = vmul.f32 %v3164, %v3379
      %v3412 = vld [vmem:[%s7] sm:$0xff]
      %v3413 = vld [vmem:[%s7 + $0x8] sm:$0xff]
      %v3414 = vld [vmem:[%s8] sm:$0x1]
      %v3416 = vperm.slane %v3414, 0
      %v3419 = vsel %vm680, %v3380, 0
      %v3422 = vsel %vm680, %v3381, 0
      %v3425 = vsel %vm680, %v3382, 0
      %v3428 = vsel %vm680, %v3383, 0
      %v3431 = vsel %vm680, %v3384, 0
      %v3434 = vsel %vm680, %v3385, 0
      %v3437 = vsel %vm680, %v3386, 0
      %v3440 = vsel %vm680, %v3387, 0
      %v3443 = vsel %vm680, %v3388, 0
      %v3446 = vsel %vm680, %v3389, 0
      %v3449 = vsel %vm680, %v3390, 0
      %v3452 = vsel %vm680, %v3391, 0
      %v3455 = vsel %vm680, %v3392, 0
      %v3458 = vsel %vm680, %v3393, 0
      %v3461 = vsel %vm680, %v3394, 0
      %v3464 = vsel %vm680, %v3395, 0
      %v3467 = vsel %vm680, %v3396, 0
      %v3470 = vsel %vm680, %v3397, 0
      %v3473 = vsel %vm680, %v3398, 0
      %v3476 = vsel %vm680, %v3399, 0
      %v3479 = vsel %vm680, %v3400, 0
      %v3482 = vsel %vm680, %v3401, 0
      %v3485 = vsel %vm680, %v3402, 0
      %v3488 = vsel %vm680, %v3403, 0
      %v3491 = vsel %vm680, %v3404, 0
      %v3494 = vsel %vm680, %v3405, 0
      %v3497 = vsel %vm680, %v3406, 0
      %v3500 = vsel %vm680, %v3407, 0
      %v3503 = vsel %vm680, %v3408, 0
      %v3506 = vsel %vm680, %v3409, 0
      %v3509 = vsel %vm680, %v3410, 0
      %v3512 = vsel %vm680, %v3411, 0
      %3514 = vmatpush.msra.mxu0 0.0
      %3515 = vmatpush.msra.mxu0 0.0
      %3516 = vmatpush.msra.mxu0 0.0
      %3517 = vmatpush.msra.mxu0 0.0
      %3518 = vmatpush.msra.mxu0 0.0
      %3519 = vmatpush.msra.mxu0 0.0
      %3520 = vmatpush.msra.mxu0 0.0
      %3521 = vmatpush.msra.mxu0 0.0
      %3522 = vmatpush.msra.mxu0 0.0
      %3523 = vmatpush.msra.mxu0 0.0
      %3524 = vmatpush.msra.mxu0 0.0
      %3525 = vmatpush.msra.mxu0 0.0
      %3526 = vmatpush.msra.mxu0 0.0
      %3527 = vmatpush.msra.mxu0 0.0
      %3528 = vmatpush.msra.mxu0 %v3413
      %3529 = vmatpush.msra.mxu0 %v3412
      %3530 = vmatmul.f32.gmra.mxu0 %v3419
      %v3531 = vpop.f32.mrf.mxu0
      %v3532 = vadd.f32 %v3416, %v3531
      %3533 = vmatmul.f32.gmra.mxu0 %v3422
      %v3534 = vpop.f32.mrf.mxu0
      %v3535 = vadd.f32 %v3416, %v3534
      %3536 = vmatmul.f32.gmra.mxu0 %v3425
      %v3537 = vpop.f32.mrf.mxu0
      %v3538 = vadd.f32 %v3416, %v3537
      %3539 = vmatmul.f32.gmra.mxu0 %v3428
      %v3540 = vpop.f32.mrf.mxu0
      %v3541 = vadd.f32 %v3416, %v3540
      %3542 = vmatmul.f32.gmra.mxu0 %v3431
      %v3543 = vpop.f32.mrf.mxu0
      %v3544 = vadd.f32 %v3416, %v3543
      %3545 = vmatmul.f32.gmra.mxu0 %v3434
      %v3546 = vpop.f32.mrf.mxu0
      %v3547 = vadd.f32 %v3416, %v3546
      %3548 = vmatmul.f32.gmra.mxu0 %v3437
      %v3549 = vpop.f32.mrf.mxu0
      %v3550 = vadd.f32 %v3416, %v3549
      %3551 = vmatmul.f32.gmra.mxu0 %v3440
      %v3552 = vpop.f32.mrf.mxu0
      %v3553 = vadd.f32 %v3416, %v3552
      %3554 = vmatmul.f32.gmra.mxu0 %v3443
      %v3555 = vpop.f32.mrf.mxu0
      %v3556 = vadd.f32 %v3416, %v3555
      %3557 = vmatmul.f32.gmra.mxu0 %v3446
      %v3558 = vpop.f32.mrf.mxu0
      %v3559 = vadd.f32 %v3416, %v3558
      %3560 = vmatmul.f32.gmra.mxu0 %v3449
      %v3561 = vpop.f32.mrf.mxu0
      %v3562 = vadd.f32 %v3416, %v3561
      %3563 = vmatmul.f32.gmra.mxu0 %v3452
      %v3564 = vpop.f32.mrf.mxu0
      %v3565 = vadd.f32 %v3416, %v3564
      %3566 = vmatmul.f32.gmra.mxu0 %v3455
      %v3567 = vpop.f32.mrf.mxu0
      %v3568 = vadd.f32 %v3416, %v3567
      %3569 = vmatmul.f32.gmra.mxu0 %v3458
      %v3570 = vpop.f32.mrf.mxu0
      %v3571 = vadd.f32 %v3416, %v3570
      %3572 = vmatmul.f32.gmra.mxu0 %v3461
      %v3573 = vpop.f32.mrf.mxu0
      %v3574 = vadd.f32 %v3416, %v3573
      %3575 = vmatmul.f32.gmra.mxu0 %v3464
      %v3576 = vpop.f32.mrf.mxu0
      %v3577 = vadd.f32 %v3416, %v3576
      %3578 = vmatmul.f32.gmra.mxu0 %v3467
      %v3579 = vpop.f32.mrf.mxu0
      %v3580 = vadd.f32 %v3416, %v3579
      %3581 = vmatmul.f32.gmra.mxu0 %v3470
      %v3582 = vpop.f32.mrf.mxu0
      %v3583 = vadd.f32 %v3416, %v3582
      %3584 = vmatmul.f32.gmra.mxu0 %v3473
      %v3585 = vpop.f32.mrf.mxu0
      %v3586 = vadd.f32 %v3416, %v3585
      %3587 = vmatmul.f32.gmra.mxu0 %v3476
      %v3588 = vpop.f32.mrf.mxu0
      %v3589 = vadd.f32 %v3416, %v3588
      %3590 = vmatmul.f32.gmra.mxu0 %v3479
      %v3591 = vpop.f32.mrf.mxu0
      %v3592 = vadd.f32 %v3416, %v3591
      %3593 = vmatmul.f32.gmra.mxu0 %v3482
      %v3594 = vpop.f32.mrf.mxu0
      %v3595 = vadd.f32 %v3416, %v3594
      %3596 = vmatmul.f32.gmra.mxu0 %v3485
      %v3597 = vpop.f32.mrf.mxu0
      %v3598 = vadd.f32 %v3416, %v3597
      %3599 = vmatmul.f32.gmra.mxu0 %v3488
      %v3600 = vpop.f32.mrf.mxu0
      %v3601 = vadd.f32 %v3416, %v3600
      %3602 = vmatmul.f32.gmra.mxu0 %v3491
      %v3603 = vpop.f32.mrf.mxu0
      %v3604 = vadd.f32 %v3416, %v3603
      %3605 = vmatmul.f32.gmra.mxu0 %v3494
      %v3606 = vpop.f32.mrf.mxu0
      %v3607 = vadd.f32 %v3416, %v3606
      %3608 = vmatmul.f32.gmra.mxu0 %v3497
      %v3609 = vpop.f32.mrf.mxu0
      %v3610 = vadd.f32 %v3416, %v3609
      %3611 = vmatmul.f32.gmra.mxu0 %v3500
      %v3612 = vpop.f32.mrf.mxu0
      %v3613 = vadd.f32 %v3416, %v3612
      %3614 = vmatmul.f32.gmra.mxu0 %v3503
      %v3615 = vpop.f32.mrf.mxu0
      %v3616 = vadd.f32 %v3416, %v3615
      %3617 = vmatmul.f32.gmra.mxu0 %v3506
      %v3618 = vpop.f32.mrf.mxu0
      %v3619 = vadd.f32 %v3416, %v3618
      %3620 = vmatmul.f32.gmra.mxu0 %v3509
      %v3621 = vpop.f32.mrf.mxu0
      %v3622 = vadd.f32 %v3416, %v3621
      %3623 = vmatmul.f32.gmra.mxu0 %v3512
      %v3624 = vpop.f32.mrf.mxu0
      %v3625 = vadd.f32 %v3416, %v3624
      %3626 = vdwg.mxu0
      %v3627 = vadd.f32 %v3532, %v333
      %v3628 = vadd.f32 %v3535, %v334
      %v3629 = vadd.f32 %v3538, %v335
      %v3630 = vadd.f32 %v3541, %v336
      %v3631 = vadd.f32 %v3544, %v337
      %v3632 = vadd.f32 %v3547, %v338
      %v3633 = vadd.f32 %v3550, %v339
      %v3634 = vadd.f32 %v3553, %v340
      %v3635 = vadd.f32 %v3556, %v341
      %v3636 = vadd.f32 %v3559, %v342
      %v3637 = vadd.f32 %v3562, %v343
      %v3638 = vadd.f32 %v3565, %v344
      %v3639 = vadd.f32 %v3568, %v345
      %v3640 = vadd.f32 %v3571, %v346
      %v3641 = vadd.f32 %v3574, %v347
      %v3642 = vadd.f32 %v3577, %v348
      %v3643 = vadd.f32 %v3580, %v349
      %v3644 = vadd.f32 %v3583, %v350
      %v3645 = vadd.f32 %v3586, %v351
      %v3646 = vadd.f32 %v3589, %v352
      %v3647 = vadd.f32 %v3592, %v353
      %v3648 = vadd.f32 %v3595, %v354
      %v3649 = vadd.f32 %v3598, %v355
      %v3650 = vadd.f32 %v3601, %v356
      %v3651 = vadd.f32 %v3604, %v357
      %v3652 = vadd.f32 %v3607, %v358
      %v3653 = vadd.f32 %v3610, %v359
      %v3654 = vadd.f32 %v3613, %v360
      %v3655 = vadd.f32 %v3616, %v361
      %v3656 = vadd.f32 %v3619, %v362
      %v3657 = vadd.f32 %v3622, %v363
      %v3658 = vadd.f32 %v3625, %v364
      %3659 = vst.msk [vmem:[%s332] sm:$0xff] %vm370, %v3627
      %3660 = vst.msk [vmem:[%s332 + $0x8] sm:$0xff] %vm370, %v3628
      %3661 = vst.msk [vmem:[%s332 + $0x10] sm:$0xff] %vm370, %v3629
      %3662 = vst.msk [vmem:[%s332 + $0x18] sm:$0xff] %vm370, %v3630
      %3663 = vst.msk [vmem:[%s332 + $0x20] sm:$0xff] %vm370, %v3631
      %3664 = vst.msk [vmem:[%s332 + $0x28] sm:$0xff] %vm370, %v3632
      %3665 = vst.msk [vmem:[%s332 + $0x30] sm:$0xff] %vm370, %v3633
      %3666 = vst.msk [vmem:[%s332 + $0x38] sm:$0xff] %vm370, %v3634
      %3667 = vst.msk [vmem:[%s332 + $0x40] sm:$0xff] %vm370, %v3635
      %3668 = vst.msk [vmem:[%s332 + $0x48] sm:$0xff] %vm370, %v3636
      %3669 = vst.msk [vmem:[%s332 + $0x50] sm:$0xff] %vm370, %v3637
      %3670 = vst.msk [vmem:[%s332 + $0x58] sm:$0xff] %vm370, %v3638
      %3671 = vst.msk [vmem:[%s332 + $0x60] sm:$0xff] %vm370, %v3639
      %3672 = vst.msk [vmem:[%s332 + $0x68] sm:$0xff] %vm370, %v3640
      %3673 = vst.msk [vmem:[%s332 + $0x70] sm:$0xff] %vm370, %v3641
      %3674 = vst.msk [vmem:[%s332 + $0x78] sm:$0xff] %vm370, %v3642
      %3675 = vst.msk [vmem:[%s332 + $0x80] sm:$0xff] %vm370, %v3643
      %3676 = vst.msk [vmem:[%s332 + $0x88] sm:$0xff] %vm370, %v3644
      %3677 = vst.msk [vmem:[%s332 + $0x90] sm:$0xff] %vm370, %v3645
      %3678 = vst.msk [vmem:[%s332 + $0x98] sm:$0xff] %vm370, %v3646
      %3679 = vst.msk [vmem:[%s332 + $0xa0] sm:$0xff] %vm370, %v3647
      %3680 = vst.msk [vmem:[%s332 + $0xa8] sm:$0xff] %vm370, %v3648
      %3681 = vst.msk [vmem:[%s332 + $0xb0] sm:$0xff] %vm370, %v3649
      %3682 = vst.msk [vmem:[%s332 + $0xb8] sm:$0xff] %vm370, %v3650
      %3683 = vst.msk [vmem:[%s332 + $0xc0] sm:$0xff] %vm370, %v3651
      %3684 = vst.msk [vmem:[%s332 + $0xc8] sm:$0xff] %vm370, %v3652
      %3685 = vst.msk [vmem:[%s332 + $0xd0] sm:$0xff] %vm370, %v3653
      %3686 = vst.msk [vmem:[%s332 + $0xd8] sm:$0xff] %vm370, %v3654
      %3687 = vst.msk [vmem:[%s332 + $0xe0] sm:$0xff] %vm370, %v3655
      %3688 = vst.msk [vmem:[%s332 + $0xe8] sm:$0xff] %vm370, %v3656
      %3689 = vst.msk [vmem:[%s332 + $0xf0] sm:$0xff] %vm370, %v3657
      %3690 = vst.msk [vmem:[%s332 + $0xf8] sm:$0xff] %vm370, %v3658
      %p3691 = scmp.lt.s32.totalorder %s20, 1
      %s3692 = scalar_select %p3691, %s20, 1
      %s3693 = smul.addr %s3692, 32
      %s3694 = smul.addr %s3693, 8
      %s3695 = scalar_lea.vmem %s9, %s3694
      // Predicated region
      $region57: #{mbconv_forward.1} parent=55 // pred_check
        %p3696 = pneg %p232
      $region58: #{mbconv_forward.1} parent=55 // pred_check_branch
        %3698 = sbr.rel (%p3696) target = $region60
      $region59: #{mbconv_forward.1} parent=55 // pred_region
        _
      $region60: #{mbconv_forward.1} parent=55 // pred_fallthru
        _
    $region56: #{mbconv_forward.1} parent=5 // pred_fallthru
      _
    %p3699 = scmp.le.s32.totalorder 2, %s15
    // Predicated region
    $region61: #{mbconv_forward.1} parent=5 // pred_check
      %p3700 = pneg %p3699
    $region62: #{mbconv_forward.1} parent=5 // pred_check_branch
      %3702 = sbr.rel (%p3700) target = $region64
    $region63: #{mbconv_forward.1} parent=5 // pred_region
      %s3703 = ssub.s32 %s15, 2
      // Predicated region
      $region65: #{mbconv_forward.1} parent=63 // pred_check
        %p3704 = pneg %p238
      $region66: #{mbconv_forward.1} parent=63 // pred_check_branch
        %3706 = sbr.rel (%p3704) target = $region68
      $region67: #{mbconv_forward.1} parent=63 // pred_region
        %p3707 = scmp.lt.s32.totalorder %s21, 1
        %s3708 = scalar_select %p3707, %s21, 1
        %s3709 = smul.addr %s3708, 32
        %s3710 = smul.addr %s3709, 8
        %s3711 = scalar_lea.vmem %s9, %s3710
      $region68: #{mbconv_forward.1} parent=63 // pred_fallthru
        _
    $region64: #{mbconv_forward.1} parent=5 // pred_fallthru
      _
  $region6: #{mbconv_forward.1} parent=0 // loop_footer
    %s19 = sadd.s32 1, %s15
  $region7: #{mbconv_forward.1} parent=0 // loop_footer_branch
    %14 = sbr.rel target = $region3
  $region8: #{mbconv_forward.1} parent=0 // loop_exit
    _

</llo_original>
